<compile_context>
chip_gen: v6e
topology: v6e:2x2x1
jax: 0.10.0
libtpu: 0.0.40
codegen_flags: <defaults>
</compile_context>

<pallas_src>
import functools

import jax
import jax.numpy as jnp
import numpy as np
from jax.experimental import pallas as pl
from jax.experimental.pallas import tpu as pltpu


# ----------------------------------------------------------------------------
# Fused kernel: one grid step == one batch element.
# ----------------------------------------------------------------------------
def _make_mha_kernel(has_mask, num_heads, dh_k, dh_v, scale, eps):
    def kernel(*refs):
        if has_mask:
            mask_ref, refs = refs[0], refs[1:]
        else:
            mask_ref = None
        (q_ref, k_ref, v_ref, res_ref,
         wq_ref, bq_ref, wk_ref, bk_ref, wv_ref, bv_ref,
         wd_ref, bd_ref, g_ref, beta_ref,
         out_ref, probs_ref, ctx_ref) = refs

        # --- Q / K / V projections (weights pre-transposed to [Din, Dout]) ---
        xq = q_ref[0]          # [S, D]
        xk = k_ref[0]
        xv = v_ref[0]
        # Fold the 1/sqrt(dh) scale into Q: (scale*Q) @ K^T == scale*(Q @ K^T).
        Q = (jnp.dot(xq, wq_ref[...], preferred_element_type=jnp.float32)
             + bq_ref[...]) * scale                              # [S, Dk]
        K = jnp.dot(xk, wk_ref[...], preferred_element_type=jnp.float32) + bk_ref[...]
        V = jnp.dot(xv, wv_ref[...], preferred_element_type=jnp.float32) + bv_ref[...]

        add_mask = mask_ref[0, 0] if mask_ref is not None else None  # [S, S]

        # --- per-head scaled-dot-product attention (unrolled head loop) ------
        for h in range(num_heads):
            qh = Q[:, h * dh_k:(h + 1) * dh_k]                   # [S, dh_k]
            kh = K[:, h * dh_k:(h + 1) * dh_k]
            vh = V[:, h * dh_v:(h + 1) * dh_v]                   # [S, dh_v]

            s = jnp.dot(qh, kh.T, preferred_element_type=jnp.float32)  # [S, S]
            if add_mask is not None:
                s = s + add_mask
            s = s - jnp.max(s, axis=-1, keepdims=True)
            e = jnp.exp(s)
            denom = jnp.sum(e, axis=-1, keepdims=True)
            p = e * pl.reciprocal(denom, approx=False)
            # attention_probs_dropout (p=0.0): identity.

            probs_ref[0, h] = p.astype(probs_ref.dtype)
            ctx_ref[:, h * dh_v:(h + 1) * dh_v] = jnp.dot(
                p, vh, preferred_element_type=jnp.float32)

        # --- output dense + (eval-mode) dropout + residual + LayerNorm -------
        hidden = (jnp.dot(ctx_ref[...], wd_ref[...],
                          preferred_element_type=jnp.float32) + bd_ref[...])
        # hidden_dropout (p=0.5): identity in eval mode.
        x = hidden + res_ref[0]
        mean = jnp.mean(x, axis=-1, keepdims=True)
        var = jnp.mean((x - mean) ** 2, axis=-1, keepdims=True)   # biased (torch)
        xn = (x - mean) * jax.lax.rsqrt(var + eps)
        out_ref[0] = (xn * g_ref[...] + beta_ref[...]).astype(out_ref.dtype)

    return kernel


# ----------------------------------------------------------------------------
# One-time parameter preprocessing (NOT in the per-step hot path).
# ----------------------------------------------------------------------------
def prepare_params(raw):
    """Transpose weights to [Din, Dout] and reshape 1-D params to [1, D] once."""
    return {
        "num_heads": raw["num_heads"],
        "wq_t": jnp.transpose(raw["wq"]), "bq": raw["bq"].reshape(1, -1),
        "wk_t": jnp.transpose(raw["wk"]), "bk": raw["bk"].reshape(1, -1),
        "wv_t": jnp.transpose(raw["wv"]), "bv": raw["bv"].reshape(1, -1),
        "wd_t": jnp.transpose(raw["wd"]), "bd": raw["bd"].reshape(1, -1),
        "ln_gamma": raw["ln_gamma"].reshape(1, -1),
        "ln_beta": raw["ln_beta"].reshape(1, -1),
        "ln_eps": float(raw["ln_eps"]),
    }


# ----------------------------------------------------------------------------
# Forward pass: single fused pallas_call.
# ----------------------------------------------------------------------------
def multi_head_attention_forward(params, q, k, v, input_tensor,
                                 attention_mask=None, head_mask=None):
    # TODO(synk): head_mask is not applied (forward is exercised with head_mask=None).
    B, S, D = q.shape
    H = params["num_heads"]
    Dk = params["wq_t"].shape[1]
    Dv = params["wv_t"].shape[1]
    dh_k = Dk // H
    dh_v = Dv // H
    scale = 1.0 / float(np.sqrt(dh_k))
    eps = params["ln_eps"]
    has_mask = attention_mask is not None

    kernel = _make_mha_kernel(has_mask, H, dh_k, dh_v, scale, eps)

    def act_spec(d):
        return pl.BlockSpec((1, S, d), lambda b: (b, 0, 0))

    def mat_spec(r, c):
        return pl.BlockSpec((r, c), lambda b: (0, 0))

    inputs, in_specs = [], []
    if has_mask:
        mask = jnp.broadcast_to(attention_mask, (B, 1, S, S)).astype(jnp.float32)
        inputs.append(mask)
        in_specs.append(pl.BlockSpec((1, 1, S, S), lambda b: (b, 0, 0, 0)))

    inputs += [q, k, v, input_tensor,
               params["wq_t"], params["bq"],
               params["wk_t"], params["bk"],
               params["wv_t"], params["bv"],
               params["wd_t"], params["bd"],
               params["ln_gamma"], params["ln_beta"]]
    in_specs += [act_spec(D), act_spec(D), act_spec(D), act_spec(D),
                 mat_spec(D, Dk), mat_spec(1, Dk),
                 mat_spec(D, Dk), mat_spec(1, Dk),
                 mat_spec(D, Dv), mat_spec(1, Dv),
                 mat_spec(Dv, D), mat_spec(1, D),
                 mat_spec(1, D), mat_spec(1, D)]

    out, probs = pl.pallas_call(
        kernel,
        out_shape=(jax.ShapeDtypeStruct((B, S, D), q.dtype),
                   jax.ShapeDtypeStruct((B, H, S, S), jnp.float32)),
        grid_spec=pltpu.PrefetchScalarGridSpec(
            num_scalar_prefetch=0,
            grid=(B,),
            in_specs=in_specs,
            out_specs=(pl.BlockSpec((1, S, D), lambda b: (b, 0, 0)),
                       pl.BlockSpec((1, H, S, S), lambda b: (b, 0, 0, 0))),
            scratch_shapes=[pltpu.VMEM((S, Dv), jnp.float32)],
        ),
        compiler_params=pltpu.CompilerParams(
            dimension_semantics=("parallel",)),
    )(*inputs)
    return out, probs


# ----------------------------------------------------------------------------
# Pure-JAX reference (uses raw PyTorch-convention params) for verification.
# ----------------------------------------------------------------------------
def reference_forward(params, q, k, v, input_tensor, attention_mask=None):
    B, S, D = q.shape
    H = params["num_heads"]
    Dk = params["wq"].shape[0]
    Dv = params["wv"].shape[0]
    Dh = Dk // H
    scale = 1.0 / float(np.sqrt(Dh))

    def lin(x, w, b):
        return x @ w.T + b

    qh = lin(q, params["wq"], params["bq"]).reshape(B, S, H, Dh).transpose(0, 2, 1, 3)
    kh = lin(k, params["wk"], params["bk"]).reshape(B, S, H, Dh).transpose(0, 2, 1, 3)
    vh = lin(v, params["wv"], params["bv"]).reshape(B, S, H, Dv // H).transpose(0, 2, 1, 3)

    mask = jnp.zeros((B, 1, S, S)) if attention_mask is None else attention_mask
    scores = jnp.einsum("bhsd,bhtd->bhst", qh, kh) * scale + mask
    probs = jax.nn.softmax(scores, axis=-1)
    ctx = jnp.einsum("bhst,bhtd->bhsd", probs, vh).transpose(0, 2, 1, 3).reshape(B, S, Dv)

    hidden = lin(ctx, params["wd"], params["bd"])
    x = hidden + input_tensor
    mean = x.mean(-1, keepdims=True)
    var = ((x - mean) ** 2).mean(-1, keepdims=True)
    out = (x - mean) / jnp.sqrt(var + params["ln_eps"]) * params["ln_gamma"] + params["ln_beta"]
    return out, probs


if __name__ == "__main__":
    B, S, D, H = 2, 8, 32, 8   # batch, seq, dim_hidden, num_attention_heads

    key = jax.random.PRNGKey(0)
    keys = jax.random.split(key, 12)

    def init_w(k_, shape):
        return jax.random.normal(k_, shape, dtype=jnp.float32) * 0.02

    params = {
        "num_heads": H,
        "wq": init_w(keys[0], (D, D)), "bq": init_w(keys[1], (D,)),
        "wk": init_w(keys[2], (D, D)), "bk": init_w(keys[3], (D,)),
        "wv": init_w(keys[4], (D, D)), "bv": init_w(keys[5], (D,)),
        "wd": init_w(keys[6], (D, D)), "bd": init_w(keys[7], (D,)),
        "ln_gamma": jnp.ones((D,), jnp.float32),
        "ln_beta": jnp.zeros((D,), jnp.float32),
        "ln_eps": 1e-12,
    }

    q = jax.random.normal(keys[8], (B, S, D), dtype=jnp.float32)
    k = jax.random.normal(keys[9], (B, S, D), dtype=jnp.float32)
    v = jax.random.normal(keys[10], (B, S, D), dtype=jnp.float32)
    input_tensor = jax.random.normal(keys[11], (B, S, D), dtype=jnp.float32)

    # One-time setup (weight transpose happens here, outside the hot path).
    prepared = prepare_params(params)

    fwd = jax.jit(lambda q_, k_, v_, r_: multi_head_attention_forward(
        prepared, q_, k_, v_, r_, attention_mask=None, head_mask=None))

    out, probs = fwd(q, k, v, input_tensor)
    out = jax.block_until_ready(out)
    probs = jax.block_until_ready(probs)

    ref_out, ref_probs = reference_forward(params, q, k, v, input_tensor)
    np.testing.assert_allclose(np.asarray(out), np.asarray(ref_out), atol=1e-5, rtol=1e-5)
    np.testing.assert_allclose(np.asarray(probs), np.asarray(ref_probs), atol=1e-5, rtol=1e-5)

    print("KERNEL_OK")
</pallas_src>

<mosaic_0001>
module attributes {stable_mosaic.version = 11 : i64} {
  func.func @kernel(%arg0: i32, %arg1: memref<1x8x32xf32, #tpu.memory_space<vmem>>, %arg2: memref<1x8x32xf32, #tpu.memory_space<vmem>>, %arg3: memref<1x8x32xf32, #tpu.memory_space<vmem>>, %arg4: memref<1x8x32xf32, #tpu.memory_space<vmem>>, %arg5: memref<32x32xf32, #tpu.memory_space<vmem>>, %arg6: memref<1x32xf32, #tpu.memory_space<vmem>>, %arg7: memref<32x32xf32, #tpu.memory_space<vmem>>, %arg8: memref<1x32xf32, #tpu.memory_space<vmem>>, %arg9: memref<32x32xf32, #tpu.memory_space<vmem>>, %arg10: memref<1x32xf32, #tpu.memory_space<vmem>>, %arg11: memref<32x32xf32, #tpu.memory_space<vmem>>, %arg12: memref<1x32xf32, #tpu.memory_space<vmem>>, %arg13: memref<1x32xf32, #tpu.memory_space<vmem>>, %arg14: memref<1x32xf32, #tpu.memory_space<vmem>>, %arg15: memref<1x8x32xf32, #tpu.memory_space<vmem>>, %arg16: memref<1x8x8x8xf32, #tpu.memory_space<vmem>>, %arg17: memref<8x32xf32, #tpu.memory_space<vmem>>) attributes {dimension_semantics = [#tpu.dimension_semantics<parallel>], iteration_bounds = array<i64: 2>, scalar_prefetch = 0 : i64, scratch_operands = 1 : i64, tpu.core_type = #tpu.core_type<tc>, window_params = [{transform_indices = @transform_0, window_bounds = array<i64: 1, 8, 32>}, {transform_indices = @transform_1, window_bounds = array<i64: 1, 8, 32>}, {transform_indices = @transform_2, window_bounds = array<i64: 1, 8, 32>}, {transform_indices = @transform_3, window_bounds = array<i64: 1, 8, 32>}, {pipeline_mode = #tpu.pipeline_mode<synchronous>, transform_indices = @transform_4, window_bounds = array<i64: 32, 32>}, {pipeline_mode = #tpu.pipeline_mode<synchronous>, transform_indices = @transform_5, window_bounds = array<i64: 1, 32>}, {pipeline_mode = #tpu.pipeline_mode<synchronous>, transform_indices = @transform_6, window_bounds = array<i64: 32, 32>}, {pipeline_mode = #tpu.pipeline_mode<synchronous>, transform_indices = @transform_7, window_bounds = array<i64: 1, 32>}, {pipeline_mode = #tpu.pipeline_mode<synchronous>, transform_indices = @transform_8, window_bounds = array<i64: 32, 32>}, {pipeline_mode = #tpu.pipeline_mode<synchronous>, transform_indices = @transform_9, window_bounds = array<i64: 1, 32>}, {pipeline_mode = #tpu.pipeline_mode<synchronous>, transform_indices = @transform_10, window_bounds = array<i64: 32, 32>}, {pipeline_mode = #tpu.pipeline_mode<synchronous>, transform_indices = @transform_11, window_bounds = array<i64: 1, 32>}, {pipeline_mode = #tpu.pipeline_mode<synchronous>, transform_indices = @transform_12, window_bounds = array<i64: 1, 32>}, {pipeline_mode = #tpu.pipeline_mode<synchronous>, transform_indices = @transform_13, window_bounds = array<i64: 1, 32>}, {transform_indices = @transform_14, window_bounds = array<i64: 1, 8, 32>}, {transform_indices = @transform_15, window_bounds = array<i64: 1, 8, 8, 8>}]} {
    %c0 = arith.constant 0 : index
    %c0_0 = arith.constant 0 : index
    %c0_1 = arith.constant 0 : index
    %0 = vector.load %arg1[%c0, %c0_0, %c0_1] : memref<1x8x32xf32, #tpu.memory_space<vmem>>, vector<1x8x32xf32>
    %1 = vector.shape_cast %0 : vector<1x8x32xf32> to vector<8x32xf32>
    %c0_2 = arith.constant 0 : index
    %c0_3 = arith.constant 0 : index
    %c0_4 = arith.constant 0 : index
    %2 = vector.load %arg2[%c0_2, %c0_3, %c0_4] : memref<1x8x32xf32, #tpu.memory_space<vmem>>, vector<1x8x32xf32>
    %3 = vector.shape_cast %2 : vector<1x8x32xf32> to vector<8x32xf32>
    %c0_5 = arith.constant 0 : index
    %c0_6 = arith.constant 0 : index
    %c0_7 = arith.constant 0 : index
    %4 = vector.load %arg3[%c0_5, %c0_6, %c0_7] : memref<1x8x32xf32, #tpu.memory_space<vmem>>, vector<1x8x32xf32>
    %5 = vector.shape_cast %4 : vector<1x8x32xf32> to vector<8x32xf32>
    %c0_8 = arith.constant 0 : index
    %c0_9 = arith.constant 0 : index
    %6 = vector.load %arg5[%c0_8, %c0_9] : memref<32x32xf32, #tpu.memory_space<vmem>>, vector<32x32xf32>
    %cst = arith.constant dense<0.000000e+00> : vector<8x32xf32>
    %7 = tpu.matmul %1, %6, %cst {dimension_numbers = #tpu.dot_dimension_numbers<[1], [0], [0], [1], [0, 0, 1, 1], [], []>} : vector<8x32xf32>, vector<32x32xf32>, vector<8x32xf32> -> vector<8x32xf32>
    %c0_10 = arith.constant 0 : index
    %c0_11 = arith.constant 0 : index
    %8 = vector.load %arg6[%c0_10, %c0_11] : memref<1x32xf32, #tpu.memory_space<vmem>>, vector<1x32xf32>
    %9 = vector.broadcast %8 : vector<1x32xf32> to vector<8x32xf32>
    %10 = arith.addf %7, %9 : vector<8x32xf32>
    %cst_12 = arith.constant 5.000000e-01 : f32
    %11 = vector.broadcast %cst_12 : f32 to vector<8x32xf32>
    %12 = arith.mulf %10, %11 : vector<8x32xf32>
    %c0_13 = arith.constant 0 : index
    %c0_14 = arith.constant 0 : index
    %13 = vector.load %arg7[%c0_13, %c0_14] : memref<32x32xf32, #tpu.memory_space<vmem>>, vector<32x32xf32>
    %cst_15 = arith.constant dense<0.000000e+00> : vector<8x32xf32>
    %14 = tpu.matmul %3, %13, %cst_15 {dimension_numbers = #tpu.dot_dimension_numbers<[1], [0], [0], [1], [0, 0, 1, 1], [], []>} : vector<8x32xf32>, vector<32x32xf32>, vector<8x32xf32> -> vector<8x32xf32>
    %c0_16 = arith.constant 0 : index
    %c0_17 = arith.constant 0 : index
    %15 = vector.load %arg8[%c0_16, %c0_17] : memref<1x32xf32, #tpu.memory_space<vmem>>, vector<1x32xf32>
    %16 = vector.broadcast %15 : vector<1x32xf32> to vector<8x32xf32>
    %17 = arith.addf %14, %16 : vector<8x32xf32>
    %c0_18 = arith.constant 0 : index
    %c0_19 = arith.constant 0 : index
    %18 = vector.load %arg9[%c0_18, %c0_19] : memref<32x32xf32, #tpu.memory_space<vmem>>, vector<32x32xf32>
    %cst_20 = arith.constant dense<0.000000e+00> : vector<8x32xf32>
    %19 = tpu.matmul %5, %18, %cst_20 {dimension_numbers = #tpu.dot_dimension_numbers<[1], [0], [0], [1], [0, 0, 1, 1], [], []>} : vector<8x32xf32>, vector<32x32xf32>, vector<8x32xf32> -> vector<8x32xf32>
    %c0_21 = arith.constant 0 : index
    %c0_22 = arith.constant 0 : index
    %20 = vector.load %arg10[%c0_21, %c0_22] : memref<1x32xf32, #tpu.memory_space<vmem>>, vector<1x32xf32>
    %21 = vector.broadcast %20 : vector<1x32xf32> to vector<8x32xf32>
    %22 = arith.addf %19, %21 : vector<8x32xf32>
    %23 = vector.extract_strided_slice %12 {offsets = [0, 0], sizes = [8, 4], strides = [1, 1]} : vector<8x32xf32> to vector<8x4xf32>
    %24 = vector.extract_strided_slice %17 {offsets = [0, 0], sizes = [8, 4], strides = [1, 1]} : vector<8x32xf32> to vector<8x4xf32>
    %25 = vector.extract_strided_slice %22 {offsets = [0, 0], sizes = [8, 4], strides = [1, 1]} : vector<8x32xf32> to vector<8x4xf32>
    %26 = tpu.transpose %24, [1, 0] : vector<8x4xf32> -> vector<4x8xf32>
    %cst_23 = arith.constant dense<0.000000e+00> : vector<8x8xf32>
    %27 = tpu.matmul %23, %26, %cst_23 {dimension_numbers = #tpu.dot_dimension_numbers<[1], [0], [0], [1], [0, 0, 1, 1], [], []>} : vector<8x4xf32>, vector<4x8xf32>, vector<8x8xf32> -> vector<8x8xf32>
    %cst_24 = arith.constant dense<0xFF800000> : vector<8xf32>
    %28 = vector.multi_reduction <maximumf>, %27, %cst_24 [1] : vector<8x8xf32> to vector<8xf32>
    %29 = vector.shape_cast %28 : vector<8xf32> to vector<8x1xf32>
    %30 = vector.broadcast %29 : vector<8x1xf32> to vector<8x8xf32>
    %31 = arith.subf %27, %30 : vector<8x8xf32>
    %32 = math.exp %31 : vector<8x8xf32>
    %cst_25 = arith.constant dense<0.000000e+00> : vector<8xf32>
    %33 = vector.multi_reduction <add>, %32, %cst_25 [1] : vector<8x8xf32> to vector<8xf32>
    %34 = vector.shape_cast %33 : vector<8xf32> to vector<8x1xf32>
    %35 = tpu.reciprocal %34 : vector<8x1xf32> -> vector<8x1xf32>
    %36 = vector.broadcast %35 : vector<8x1xf32> to vector<8x8xf32>
    %37 = arith.mulf %32, %36 : vector<8x8xf32>
    %c0_26 = arith.constant 0 : index
    %c0_27 = arith.constant 0 : index
    %c0_28 = arith.constant 0 : index
    %c0_29 = arith.constant 0 : index
    %38 = vector.load %arg16[%c0_26, %c0_27, %c0_28, %c0_29] : memref<1x8x8x8xf32, #tpu.memory_space<vmem>>, vector<1x1x8x8xf32>
    %39 = vector.shape_cast %38 : vector<1x1x8x8xf32> to vector<8x8xf32>
    %40 = vector.shape_cast %37 : vector<8x8xf32> to vector<1x1x8x8xf32>
    tpu.vector_store %arg16[%c0_26, %c0_27, %c0_28, %c0_29], %40 {strides = array<i32>} : memref<1x8x8x8xf32, #tpu.memory_space<vmem>>, vector<1x1x8x8xf32>,
    %cst_30 = arith.constant dense<0.000000e+00> : vector<8x4xf32>
    %41 = tpu.matmul %37, %25, %cst_30 {dimension_numbers = #tpu.dot_dimension_numbers<[1], [0], [0], [1], [0, 0, 1, 1], [], []>} : vector<8x8xf32>, vector<8x4xf32>, vector<8x4xf32> -> vector<8x4xf32>
    %c0_31 = arith.constant 0 : index
    %c0_32 = arith.constant 0 : index
    %42 = vector.load %arg17[%c0_31, %c0_32] : memref<8x32xf32, #tpu.memory_space<vmem>>, vector<8x4xf32>
    tpu.vector_store %arg17[%c0_31, %c0_32], %41 {strides = array<i32>} : memref<8x32xf32, #tpu.memory_space<vmem>>, vector<8x4xf32>,
    %43 = vector.extract_strided_slice %12 {offsets = [0, 4], sizes = [8, 4], strides = [1, 1]} : vector<8x32xf32> to vector<8x4xf32>
    %44 = vector.extract_strided_slice %17 {offsets = [0, 4], sizes = [8, 4], strides = [1, 1]} : vector<8x32xf32> to vector<8x4xf32>
    %45 = vector.extract_strided_slice %22 {offsets = [0, 4], sizes = [8, 4], strides = [1, 1]} : vector<8x32xf32> to vector<8x4xf32>
    %46 = tpu.transpose %44, [1, 0] : vector<8x4xf32> -> vector<4x8xf32>
    %cst_33 = arith.constant dense<0.000000e+00> : vector<8x8xf32>
    %47 = tpu.matmul %43, %46, %cst_33 {dimension_numbers = #tpu.dot_dimension_numbers<[1], [0], [0], [1], [0, 0, 1, 1], [], []>} : vector<8x4xf32>, vector<4x8xf32>, vector<8x8xf32> -> vector<8x8xf32>
    %cst_34 = arith.constant dense<0xFF800000> : vector<8xf32>
    %48 = vector.multi_reduction <maximumf>, %47, %cst_34 [1] : vector<8x8xf32> to vector<8xf32>
    %49 = vector.shape_cast %48 : vector<8xf32> to vector<8x1xf32>
    %50 = vector.broadcast %49 : vector<8x1xf32> to vector<8x8xf32>
    %51 = arith.subf %47, %50 : vector<8x8xf32>
    %52 = math.exp %51 : vector<8x8xf32>
    %cst_35 = arith.constant dense<0.000000e+00> : vector<8xf32>
    %53 = vector.multi_reduction <add>, %52, %cst_35 [1] : vector<8x8xf32> to vector<8xf32>
    %54 = vector.shape_cast %53 : vector<8xf32> to vector<8x1xf32>
    %55 = tpu.reciprocal %54 : vector<8x1xf32> -> vector<8x1xf32>
    %56 = vector.broadcast %55 : vector<8x1xf32> to vector<8x8xf32>
    %57 = arith.mulf %52, %56 : vector<8x8xf32>
    %c0_36 = arith.constant 0 : index
    %c1 = arith.constant 1 : index
    %c0_37 = arith.constant 0 : index
    %c0_38 = arith.constant 0 : index
    %58 = vector.load %arg16[%c0_36, %c1, %c0_37, %c0_38] : memref<1x8x8x8xf32, #tpu.memory_space<vmem>>, vector<1x1x8x8xf32>
    %59 = vector.shape_cast %58 : vector<1x1x8x8xf32> to vector<8x8xf32>
    %60 = vector.shape_cast %57 : vector<8x8xf32> to vector<1x1x8x8xf32>
    tpu.vector_store %arg16[%c0_36, %c1, %c0_37, %c0_38], %60 {strides = array<i32>} : memref<1x8x8x8xf32, #tpu.memory_space<vmem>>, vector<1x1x8x8xf32>,
    %cst_39 = arith.constant dense<0.000000e+00> : vector<8x4xf32>
    %61 = tpu.matmul %57, %45, %cst_39 {dimension_numbers = #tpu.dot_dimension_numbers<[1], [0], [0], [1], [0, 0, 1, 1], [], []>} : vector<8x8xf32>, vector<8x4xf32>, vector<8x4xf32> -> vector<8x4xf32>
    %c0_40 = arith.constant 0 : index
    %c4 = arith.constant 4 : index
    %62 = vector.load %arg17[%c0_40, %c4] : memref<8x32xf32, #tpu.memory_space<vmem>>, vector<8x4xf32>
    tpu.vector_store %arg17[%c0_40, %c4], %61 {strides = array<i32>} : memref<8x32xf32, #tpu.memory_space<vmem>>, vector<8x4xf32>,
    %63 = vector.extract_strided_slice %12 {offsets = [0, 8], sizes = [8, 4], strides = [1, 1]} : vector<8x32xf32> to vector<8x4xf32>
    %64 = vector.extract_strided_slice %17 {offsets = [0, 8], sizes = [8, 4], strides = [1, 1]} : vector<8x32xf32> to vector<8x4xf32>
    %65 = vector.extract_strided_slice %22 {offsets = [0, 8], sizes = [8, 4], strides = [1, 1]} : vector<8x32xf32> to vector<8x4xf32>
    %66 = tpu.transpose %64, [1, 0] : vector<8x4xf32> -> vector<4x8xf32>
    %cst_41 = arith.constant dense<0.000000e+00> : vector<8x8xf32>
    %67 = tpu.matmul %63, %66, %cst_41 {dimension_numbers = #tpu.dot_dimension_numbers<[1], [0], [0], [1], [0, 0, 1, 1], [], []>} : vector<8x4xf32>, vector<4x8xf32>, vector<8x8xf32> -> vector<8x8xf32>
    %cst_42 = arith.constant dense<0xFF800000> : vector<8xf32>
    %68 = vector.multi_reduction <maximumf>, %67, %cst_42 [1] : vector<8x8xf32> to vector<8xf32>
    %69 = vector.shape_cast %68 : vector<8xf32> to vector<8x1xf32>
    %70 = vector.broadcast %69 : vector<8x1xf32> to vector<8x8xf32>
    %71 = arith.subf %67, %70 : vector<8x8xf32>
    %72 = math.exp %71 : vector<8x8xf32>
    %cst_43 = arith.constant dense<0.000000e+00> : vector<8xf32>
    %73 = vector.multi_reduction <add>, %72, %cst_43 [1] : vector<8x8xf32> to vector<8xf32>
    %74 = vector.shape_cast %73 : vector<8xf32> to vector<8x1xf32>
    %75 = tpu.reciprocal %74 : vector<8x1xf32> -> vector<8x1xf32>
    %76 = vector.broadcast %75 : vector<8x1xf32> to vector<8x8xf32>
    %77 = arith.mulf %72, %76 : vector<8x8xf32>
    %c0_44 = arith.constant 0 : index
    %c2 = arith.constant 2 : index
    %c0_45 = arith.constant 0 : index
    %c0_46 = arith.constant 0 : index
    %78 = vector.load %arg16[%c0_44, %c2, %c0_45, %c0_46] : memref<1x8x8x8xf32, #tpu.memory_space<vmem>>, vector<1x1x8x8xf32>
    %79 = vector.shape_cast %78 : vector<1x1x8x8xf32> to vector<8x8xf32>
    %80 = vector.shape_cast %77 : vector<8x8xf32> to vector<1x1x8x8xf32>
    tpu.vector_store %arg16[%c0_44, %c2, %c0_45, %c0_46], %80 {strides = array<i32>} : memref<1x8x8x8xf32, #tpu.memory_space<vmem>>, vector<1x1x8x8xf32>,
    %cst_47 = arith.constant dense<0.000000e+00> : vector<8x4xf32>
    %81 = tpu.matmul %77, %65, %cst_47 {dimension_numbers = #tpu.dot_dimension_numbers<[1], [0], [0], [1], [0, 0, 1, 1], [], []>} : vector<8x8xf32>, vector<8x4xf32>, vector<8x4xf32> -> vector<8x4xf32>
    %c0_48 = arith.constant 0 : index
    %c8 = arith.constant 8 : index
    %82 = vector.load %arg17[%c0_48, %c8] : memref<8x32xf32, #tpu.memory_space<vmem>>, vector<8x4xf32>
    tpu.vector_store %arg17[%c0_48, %c8], %81 {strides = array<i32>} : memref<8x32xf32, #tpu.memory_space<vmem>>, vector<8x4xf32>,
    %83 = vector.extract_strided_slice %12 {offsets = [0, 12], sizes = [8, 4], strides = [1, 1]} : vector<8x32xf32> to vector<8x4xf32>
    %84 = vector.extract_strided_slice %17 {offsets = [0, 12], sizes = [8, 4], strides = [1, 1]} : vector<8x32xf32> to vector<8x4xf32>
    %85 = vector.extract_strided_slice %22 {offsets = [0, 12], sizes = [8, 4], strides = [1, 1]} : vector<8x32xf32> to vector<8x4xf32>
    %86 = tpu.transpose %84, [1, 0] : vector<8x4xf32> -> vector<4x8xf32>
    %cst_49 = arith.constant dense<0.000000e+00> : vector<8x8xf32>
    %87 = tpu.matmul %83, %86, %cst_49 {dimension_numbers = #tpu.dot_dimension_numbers<[1], [0], [0], [1], [0, 0, 1, 1], [], []>} : vector<8x4xf32>, vector<4x8xf32>, vector<8x8xf32> -> vector<8x8xf32>
    %cst_50 = arith.constant dense<0xFF800000> : vector<8xf32>
    %88 = vector.multi_reduction <maximumf>, %87, %cst_50 [1] : vector<8x8xf32> to vector<8xf32>
    %89 = vector.shape_cast %88 : vector<8xf32> to vector<8x1xf32>
    %90 = vector.broadcast %89 : vector<8x1xf32> to vector<8x8xf32>
    %91 = arith.subf %87, %90 : vector<8x8xf32>
    %92 = math.exp %91 : vector<8x8xf32>
    %cst_51 = arith.constant dense<0.000000e+00> : vector<8xf32>
    %93 = vector.multi_reduction <add>, %92, %cst_51 [1] : vector<8x8xf32> to vector<8xf32>
    %94 = vector.shape_cast %93 : vector<8xf32> to vector<8x1xf32>
    %95 = tpu.reciprocal %94 : vector<8x1xf32> -> vector<8x1xf32>
    %96 = vector.broadcast %95 : vector<8x1xf32> to vector<8x8xf32>
    %97 = arith.mulf %92, %96 : vector<8x8xf32>
    %c0_52 = arith.constant 0 : index
    %c3 = arith.constant 3 : index
    %c0_53 = arith.constant 0 : index
    %c0_54 = arith.constant 0 : index
    %98 = vector.load %arg16[%c0_52, %c3, %c0_53, %c0_54] : memref<1x8x8x8xf32, #tpu.memory_space<vmem>>, vector<1x1x8x8xf32>
    %99 = vector.shape_cast %98 : vector<1x1x8x8xf32> to vector<8x8xf32>
    %100 = vector.shape_cast %97 : vector<8x8xf32> to vector<1x1x8x8xf32>
    tpu.vector_store %arg16[%c0_52, %c3, %c0_53, %c0_54], %100 {strides = array<i32>} : memref<1x8x8x8xf32, #tpu.memory_space<vmem>>, vector<1x1x8x8xf32>,
    %cst_55 = arith.constant dense<0.000000e+00> : vector<8x4xf32>
    %101 = tpu.matmul %97, %85, %cst_55 {dimension_numbers = #tpu.dot_dimension_numbers<[1], [0], [0], [1], [0, 0, 1, 1], [], []>} : vector<8x8xf32>, vector<8x4xf32>, vector<8x4xf32> -> vector<8x4xf32>
    %c0_56 = arith.constant 0 : index
    %c12 = arith.constant 12 : index
    %102 = vector.load %arg17[%c0_56, %c12] : memref<8x32xf32, #tpu.memory_space<vmem>>, vector<8x4xf32>
    tpu.vector_store %arg17[%c0_56, %c12], %101 {strides = array<i32>} : memref<8x32xf32, #tpu.memory_space<vmem>>, vector<8x4xf32>,
    %103 = vector.extract_strided_slice %12 {offsets = [0, 16], sizes = [8, 4], strides = [1, 1]} : vector<8x32xf32> to vector<8x4xf32>
    %104 = vector.extract_strided_slice %17 {offsets = [0, 16], sizes = [8, 4], strides = [1, 1]} : vector<8x32xf32> to vector<8x4xf32>
    %105 = vector.extract_strided_slice %22 {offsets = [0, 16], sizes = [8, 4], strides = [1, 1]} : vector<8x32xf32> to vector<8x4xf32>
    %106 = tpu.transpose %104, [1, 0] : vector<8x4xf32> -> vector<4x8xf32>
    %cst_57 = arith.constant dense<0.000000e+00> : vector<8x8xf32>
    %107 = tpu.matmul %103, %106, %cst_57 {dimension_numbers = #tpu.dot_dimension_numbers<[1], [0], [0], [1], [0, 0, 1, 1], [], []>} : vector<8x4xf32>, vector<4x8xf32>, vector<8x8xf32> -> vector<8x8xf32>
    %cst_58 = arith.constant dense<0xFF800000> : vector<8xf32>
    %108 = vector.multi_reduction <maximumf>, %107, %cst_58 [1] : vector<8x8xf32> to vector<8xf32>
    %109 = vector.shape_cast %108 : vector<8xf32> to vector<8x1xf32>
    %110 = vector.broadcast %109 : vector<8x1xf32> to vector<8x8xf32>
    %111 = arith.subf %107, %110 : vector<8x8xf32>
    %112 = math.exp %111 : vector<8x8xf32>
    %cst_59 = arith.constant dense<0.000000e+00> : vector<8xf32>
    %113 = vector.multi_reduction <add>, %112, %cst_59 [1] : vector<8x8xf32> to vector<8xf32>
    %114 = vector.shape_cast %113 : vector<8xf32> to vector<8x1xf32>
    %115 = tpu.reciprocal %114 : vector<8x1xf32> -> vector<8x1xf32>
    %116 = vector.broadcast %115 : vector<8x1xf32> to vector<8x8xf32>
    %117 = arith.mulf %112, %116 : vector<8x8xf32>
    %c0_60 = arith.constant 0 : index
    %c4_61 = arith.constant 4 : index
    %c0_62 = arith.constant 0 : index
    %c0_63 = arith.constant 0 : index
    %118 = vector.load %arg16[%c0_60, %c4_61, %c0_62, %c0_63] : memref<1x8x8x8xf32, #tpu.memory_space<vmem>>, vector<1x1x8x8xf32>
    %119 = vector.shape_cast %118 : vector<1x1x8x8xf32> to vector<8x8xf32>
    %120 = vector.shape_cast %117 : vector<8x8xf32> to vector<1x1x8x8xf32>
    tpu.vector_store %arg16[%c0_60, %c4_61, %c0_62, %c0_63], %120 {strides = array<i32>} : memref<1x8x8x8xf32, #tpu.memory_space<vmem>>, vector<1x1x8x8xf32>,
    %cst_64 = arith.constant dense<0.000000e+00> : vector<8x4xf32>
    %121 = tpu.matmul %117, %105, %cst_64 {dimension_numbers = #tpu.dot_dimension_numbers<[1], [0], [0], [1], [0, 0, 1, 1], [], []>} : vector<8x8xf32>, vector<8x4xf32>, vector<8x4xf32> -> vector<8x4xf32>
    %c0_65 = arith.constant 0 : index
    %c16 = arith.constant 16 : index
    %122 = vector.load %arg17[%c0_65, %c16] : memref<8x32xf32, #tpu.memory_space<vmem>>, vector<8x4xf32>
    tpu.vector_store %arg17[%c0_65, %c16], %121 {strides = array<i32>} : memref<8x32xf32, #tpu.memory_space<vmem>>, vector<8x4xf32>,
    %123 = vector.extract_strided_slice %12 {offsets = [0, 20], sizes = [8, 4], strides = [1, 1]} : vector<8x32xf32> to vector<8x4xf32>
    %124 = vector.extract_strided_slice %17 {offsets = [0, 20], sizes = [8, 4], strides = [1, 1]} : vector<8x32xf32> to vector<8x4xf32>
    %125 = vector.extract_strided_slice %22 {offsets = [0, 20], sizes = [8, 4], strides = [1, 1]} : vector<8x32xf32> to vector<8x4xf32>
    %126 = tpu.transpose %124, [1, 0] : vector<8x4xf32> -> vector<4x8xf32>
    %cst_66 = arith.constant dense<0.000000e+00> : vector<8x8xf32>
    %127 = tpu.matmul %123, %126, %cst_66 {dimension_numbers = #tpu.dot_dimension_numbers<[1], [0], [0], [1], [0, 0, 1, 1], [], []>} : vector<8x4xf32>, vector<4x8xf32>, vector<8x8xf32> -> vector<8x8xf32>
    %cst_67 = arith.constant dense<0xFF800000> : vector<8xf32>
    %128 = vector.multi_reduction <maximumf>, %127, %cst_67 [1] : vector<8x8xf32> to vector<8xf32>
    %129 = vector.shape_cast %128 : vector<8xf32> to vector<8x1xf32>
    %130 = vector.broadcast %129 : vector<8x1xf32> to vector<8x8xf32>
    %131 = arith.subf %127, %130 : vector<8x8xf32>
    %132 = math.exp %131 : vector<8x8xf32>
    %cst_68 = arith.constant dense<0.000000e+00> : vector<8xf32>
    %133 = vector.multi_reduction <add>, %132, %cst_68 [1] : vector<8x8xf32> to vector<8xf32>
    %134 = vector.shape_cast %133 : vector<8xf32> to vector<8x1xf32>
    %135 = tpu.reciprocal %134 : vector<8x1xf32> -> vector<8x1xf32>
    %136 = vector.broadcast %135 : vector<8x1xf32> to vector<8x8xf32>
    %137 = arith.mulf %132, %136 : vector<8x8xf32>
    %c0_69 = arith.constant 0 : index
    %c5 = arith.constant 5 : index
    %c0_70 = arith.constant 0 : index
    %c0_71 = arith.constant 0 : index
    %138 = vector.load %arg16[%c0_69, %c5, %c0_70, %c0_71] : memref<1x8x8x8xf32, #tpu.memory_space<vmem>>, vector<1x1x8x8xf32>
    %139 = vector.shape_cast %138 : vector<1x1x8x8xf32> to vector<8x8xf32>
    %140 = vector.shape_cast %137 : vector<8x8xf32> to vector<1x1x8x8xf32>
    tpu.vector_store %arg16[%c0_69, %c5, %c0_70, %c0_71], %140 {strides = array<i32>} : memref<1x8x8x8xf32, #tpu.memory_space<vmem>>, vector<1x1x8x8xf32>,
    %cst_72 = arith.constant dense<0.000000e+00> : vector<8x4xf32>
    %141 = tpu.matmul %137, %125, %cst_72 {dimension_numbers = #tpu.dot_dimension_numbers<[1], [0], [0], [1], [0, 0, 1, 1], [], []>} : vector<8x8xf32>, vector<8x4xf32>, vector<8x4xf32> -> vector<8x4xf32>
    %c0_73 = arith.constant 0 : index
    %c20 = arith.constant 20 : index
    %142 = vector.load %arg17[%c0_73, %c20] : memref<8x32xf32, #tpu.memory_space<vmem>>, vector<8x4xf32>
    tpu.vector_store %arg17[%c0_73, %c20], %141 {strides = array<i32>} : memref<8x32xf32, #tpu.memory_space<vmem>>, vector<8x4xf32>,
    %143 = vector.extract_strided_slice %12 {offsets = [0, 24], sizes = [8, 4], strides = [1, 1]} : vector<8x32xf32> to vector<8x4xf32>
    %144 = vector.extract_strided_slice %17 {offsets = [0, 24], sizes = [8, 4], strides = [1, 1]} : vector<8x32xf32> to vector<8x4xf32>
    %145 = vector.extract_strided_slice %22 {offsets = [0, 24], sizes = [8, 4], strides = [1, 1]} : vector<8x32xf32> to vector<8x4xf32>
    %146 = tpu.transpose %144, [1, 0] : vector<8x4xf32> -> vector<4x8xf32>
    %cst_74 = arith.constant dense<0.000000e+00> : vector<8x8xf32>
    %147 = tpu.matmul %143, %146, %cst_74 {dimension_numbers = #tpu.dot_dimension_numbers<[1], [0], [0], [1], [0, 0, 1, 1], [], []>} : vector<8x4xf32>, vector<4x8xf32>, vector<8x8xf32> -> vector<8x8xf32>
    %cst_75 = arith.constant dense<0xFF800000> : vector<8xf32>
    %148 = vector.multi_reduction <maximumf>, %147, %cst_75 [1] : vector<8x8xf32> to vector<8xf32>
    %149 = vector.shape_cast %148 : vector<8xf32> to vector<8x1xf32>
    %150 = vector.broadcast %149 : vector<8x1xf32> to vector<8x8xf32>
    %151 = arith.subf %147, %150 : vector<8x8xf32>
    %152 = math.exp %151 : vector<8x8xf32>
    %cst_76 = arith.constant dense<0.000000e+00> : vector<8xf32>
    %153 = vector.multi_reduction <add>, %152, %cst_76 [1] : vector<8x8xf32> to vector<8xf32>
    %154 = vector.shape_cast %153 : vector<8xf32> to vector<8x1xf32>
    %155 = tpu.reciprocal %154 : vector<8x1xf32> -> vector<8x1xf32>
    %156 = vector.broadcast %155 : vector<8x1xf32> to vector<8x8xf32>
    %157 = arith.mulf %152, %156 : vector<8x8xf32>
    %c0_77 = arith.constant 0 : index
    %c6 = arith.constant 6 : index
    %c0_78 = arith.constant 0 : index
    %c0_79 = arith.constant 0 : index
    %158 = vector.load %arg16[%c0_77, %c6, %c0_78, %c0_79] : memref<1x8x8x8xf32, #tpu.memory_space<vmem>>, vector<1x1x8x8xf32>
    %159 = vector.shape_cast %158 : vector<1x1x8x8xf32> to vector<8x8xf32>
    %160 = vector.shape_cast %157 : vector<8x8xf32> to vector<1x1x8x8xf32>
    tpu.vector_store %arg16[%c0_77, %c6, %c0_78, %c0_79], %160 {strides = array<i32>} : memref<1x8x8x8xf32, #tpu.memory_space<vmem>>, vector<1x1x8x8xf32>,
    %cst_80 = arith.constant dense<0.000000e+00> : vector<8x4xf32>
    %161 = tpu.matmul %157, %145, %cst_80 {dimension_numbers = #tpu.dot_dimension_numbers<[1], [0], [0], [1], [0, 0, 1, 1], [], []>} : vector<8x8xf32>, vector<8x4xf32>, vector<8x4xf32> -> vector<8x4xf32>
    %c0_81 = arith.constant 0 : index
    %c24 = arith.constant 24 : index
    %162 = vector.load %arg17[%c0_81, %c24] : memref<8x32xf32, #tpu.memory_space<vmem>>, vector<8x4xf32>
    tpu.vector_store %arg17[%c0_81, %c24], %161 {strides = array<i32>} : memref<8x32xf32, #tpu.memory_space<vmem>>, vector<8x4xf32>,
    %163 = vector.extract_strided_slice %12 {offsets = [0, 28], sizes = [8, 4], strides = [1, 1]} : vector<8x32xf32> to vector<8x4xf32>
    %164 = vector.extract_strided_slice %17 {offsets = [0, 28], sizes = [8, 4], strides = [1, 1]} : vector<8x32xf32> to vector<8x4xf32>
    %165 = vector.extract_strided_slice %22 {offsets = [0, 28], sizes = [8, 4], strides = [1, 1]} : vector<8x32xf32> to vector<8x4xf32>
    %166 = tpu.transpose %164, [1, 0] : vector<8x4xf32> -> vector<4x8xf32>
    %cst_82 = arith.constant dense<0.000000e+00> : vector<8x8xf32>
    %167 = tpu.matmul %163, %166, %cst_82 {dimension_numbers = #tpu.dot_dimension_numbers<[1], [0], [0], [1], [0, 0, 1, 1], [], []>} : vector<8x4xf32>, vector<4x8xf32>, vector<8x8xf32> -> vector<8x8xf32>
    %cst_83 = arith.constant dense<0xFF800000> : vector<8xf32>
    %168 = vector.multi_reduction <maximumf>, %167, %cst_83 [1] : vector<8x8xf32> to vector<8xf32>
    %169 = vector.shape_cast %168 : vector<8xf32> to vector<8x1xf32>
    %170 = vector.broadcast %169 : vector<8x1xf32> to vector<8x8xf32>
    %171 = arith.subf %167, %170 : vector<8x8xf32>
    %172 = math.exp %171 : vector<8x8xf32>
    %cst_84 = arith.constant dense<0.000000e+00> : vector<8xf32>
    %173 = vector.multi_reduction <add>, %172, %cst_84 [1] : vector<8x8xf32> to vector<8xf32>
    %174 = vector.shape_cast %173 : vector<8xf32> to vector<8x1xf32>
    %175 = tpu.reciprocal %174 : vector<8x1xf32> -> vector<8x1xf32>
    %176 = vector.broadcast %175 : vector<8x1xf32> to vector<8x8xf32>
    %177 = arith.mulf %172, %176 : vector<8x8xf32>
    %c0_85 = arith.constant 0 : index
    %c7 = arith.constant 7 : index
    %c0_86 = arith.constant 0 : index
    %c0_87 = arith.constant 0 : index
    %178 = vector.load %arg16[%c0_85, %c7, %c0_86, %c0_87] : memref<1x8x8x8xf32, #tpu.memory_space<vmem>>, vector<1x1x8x8xf32>
    %179 = vector.shape_cast %178 : vector<1x1x8x8xf32> to vector<8x8xf32>
    %180 = vector.shape_cast %177 : vector<8x8xf32> to vector<1x1x8x8xf32>
    tpu.vector_store %arg16[%c0_85, %c7, %c0_86, %c0_87], %180 {strides = array<i32>} : memref<1x8x8x8xf32, #tpu.memory_space<vmem>>, vector<1x1x8x8xf32>,
    %cst_88 = arith.constant dense<0.000000e+00> : vector<8x4xf32>
    %181 = tpu.matmul %177, %165, %cst_88 {dimension_numbers = #tpu.dot_dimension_numbers<[1], [0], [0], [1], [0, 0, 1, 1], [], []>} : vector<8x8xf32>, vector<8x4xf32>, vector<8x4xf32> -> vector<8x4xf32>
    %c0_89 = arith.constant 0 : index
    %c28 = arith.constant 28 : index
    %182 = vector.load %arg17[%c0_89, %c28] : memref<8x32xf32, #tpu.memory_space<vmem>>, vector<8x4xf32>
    tpu.vector_store %arg17[%c0_89, %c28], %181 {strides = array<i32>} : memref<8x32xf32, #tpu.memory_space<vmem>>, vector<8x4xf32>,
    %c0_90 = arith.constant 0 : index
    %c0_91 = arith.constant 0 : index
    %183 = vector.load %arg17[%c0_90, %c0_91] : memref<8x32xf32, #tpu.memory_space<vmem>>, vector<8x32xf32>
    %c0_92 = arith.constant 0 : index
    %c0_93 = arith.constant 0 : index
    %184 = vector.load %arg11[%c0_92, %c0_93] : memref<32x32xf32, #tpu.memory_space<vmem>>, vector<32x32xf32>
    %cst_94 = arith.constant dense<0.000000e+00> : vector<8x32xf32>
    %185 = tpu.matmul %183, %184, %cst_94 {dimension_numbers = #tpu.dot_dimension_numbers<[1], [0], [0], [1], [0, 0, 1, 1], [], []>} : vector<8x32xf32>, vector<32x32xf32>, vector<8x32xf32> -> vector<8x32xf32>
    %c0_95 = arith.constant 0 : index
    %c0_96 = arith.constant 0 : index
    %186 = vector.load %arg12[%c0_95, %c0_96] : memref<1x32xf32, #tpu.memory_space<vmem>>, vector<1x32xf32>
    %187 = vector.broadcast %186 : vector<1x32xf32> to vector<8x32xf32>
    %188 = arith.addf %185, %187 : vector<8x32xf32>
    %c0_97 = arith.constant 0 : index
    %c0_98 = arith.constant 0 : index
    %c0_99 = arith.constant 0 : index
    %189 = vector.load %arg4[%c0_97, %c0_98, %c0_99] : memref<1x8x32xf32, #tpu.memory_space<vmem>>, vector<1x8x32xf32>
    %190 = vector.shape_cast %189 : vector<1x8x32xf32> to vector<8x32xf32>
    %191 = arith.addf %188, %190 : vector<8x32xf32>
    %cst_100 = arith.constant dense<0.000000e+00> : vector<8xf32>
    %192 = vector.multi_reduction <add>, %191, %cst_100 [1] : vector<8x32xf32> to vector<8xf32>
    %193 = vector.shape_cast %192 : vector<8xf32> to vector<8x1xf32>
    %cst_101 = arith.constant 3.200000e+01 : f32
    %194 = vector.broadcast %cst_101 : f32 to vector<8x1xf32>
    %195 = arith.divf %193, %194 : vector<8x1xf32>
    %196 = vector.broadcast %195 : vector<8x1xf32> to vector<8x32xf32>
    %197 = arith.subf %191, %196 : vector<8x32xf32>
    %198 = arith.mulf %197, %197 : vector<8x32xf32>
    %cst_102 = arith.constant dense<0.000000e+00> : vector<8xf32>
    %199 = vector.multi_reduction <add>, %198, %cst_102 [1] : vector<8x32xf32> to vector<8xf32>
    %200 = vector.shape_cast %199 : vector<8xf32> to vector<8x1xf32>
    %cst_103 = arith.constant 3.200000e+01 : f32
    %201 = vector.broadcast %cst_103 : f32 to vector<8x1xf32>
    %202 = arith.divf %200, %201 : vector<8x1xf32>
    %203 = vector.broadcast %195 : vector<8x1xf32> to vector<8x32xf32>
    %204 = arith.subf %191, %203 : vector<8x32xf32>
    %cst_104 = arith.constant 9.99999996E-13 : f32
    %205 = vector.broadcast %cst_104 : f32 to vector<8x1xf32>
    %206 = arith.addf %202, %205 : vector<8x1xf32>
    %207 = math.rsqrt %206 : vector<8x1xf32>
    %208 = vector.broadcast %207 : vector<8x1xf32> to vector<8x32xf32>
    %209 = arith.mulf %204, %208 : vector<8x32xf32>
    %c0_105 = arith.constant 0 : index
    %c0_106 = arith.constant 0 : index
    %210 = vector.load %arg13[%c0_105, %c0_106] : memref<1x32xf32, #tpu.memory_space<vmem>>, vector<1x32xf32>
    %211 = vector.broadcast %210 : vector<1x32xf32> to vector<8x32xf32>
    %212 = arith.mulf %209, %211 : vector<8x32xf32>
    %c0_107 = arith.constant 0 : index
    %c0_108 = arith.constant 0 : index
    %213 = vector.load %arg14[%c0_107, %c0_108] : memref<1x32xf32, #tpu.memory_space<vmem>>, vector<1x32xf32>
    %214 = vector.broadcast %213 : vector<1x32xf32> to vector<8x32xf32>
    %215 = arith.addf %212, %214 : vector<8x32xf32>
    %c0_109 = arith.constant 0 : index
    %c0_110 = arith.constant 0 : index
    %c0_111 = arith.constant 0 : index
    %216 = vector.load %arg15[%c0_109, %c0_110, %c0_111] : memref<1x8x32xf32, #tpu.memory_space<vmem>>, vector<1x8x32xf32>
    %217 = vector.shape_cast %216 : vector<1x8x32xf32> to vector<8x32xf32>
    %218 = vector.shape_cast %215 : vector<8x32xf32> to vector<1x8x32xf32>
    tpu.vector_store %arg15[%c0_109, %c0_110, %c0_111], %218 {strides = array<i32>} : memref<1x8x32xf32, #tpu.memory_space<vmem>>, vector<1x8x32xf32>,
    return
  }
  func.func @transform_0(%arg0: i32) -> (i32, i32, i32) {
    %c0_i32 = arith.constant 0 : i32
    %c0_i32_0 = arith.constant 0 : i32
    %c0_i32_1 = arith.constant 0 : i32
    return %arg0, %c0_i32, %c0_i32_0 : i32, i32, i32
  }
  func.func @transform_1(%arg0: i32) -> (i32, i32, i32) {
    %c0_i32 = arith.constant 0 : i32
    %c0_i32_0 = arith.constant 0 : i32
    %c0_i32_1 = arith.constant 0 : i32
    return %arg0, %c0_i32, %c0_i32_0 : i32, i32, i32
  }
  func.func @transform_2(%arg0: i32) -> (i32, i32, i32) {
    %c0_i32 = arith.constant 0 : i32
    %c0_i32_0 = arith.constant 0 : i32
    %c0_i32_1 = arith.constant 0 : i32
    return %arg0, %c0_i32, %c0_i32_0 : i32, i32, i32
  }
  func.func @transform_3(%arg0: i32) -> (i32, i32, i32) {
    %c0_i32 = arith.constant 0 : i32
    %c0_i32_0 = arith.constant 0 : i32
    %c0_i32_1 = arith.constant 0 : i32
    return %arg0, %c0_i32, %c0_i32_0 : i32, i32, i32
  }
  func.func @transform_4(%arg0: i32) -> (i32, i32) {
    %c0_i32 = arith.constant 0 : i32
    %c0_i32_0 = arith.constant 0 : i32
    %c0_i32_1 = arith.constant 0 : i32
    return %c0_i32, %c0_i32_0 : i32, i32
  }
  func.func @transform_5(%arg0: i32) -> (i32, i32) {
    %c0_i32 = arith.constant 0 : i32
    %c0_i32_0 = arith.constant 0 : i32
    %c0_i32_1 = arith.constant 0 : i32
    return %c0_i32, %c0_i32_0 : i32, i32
  }
  func.func @transform_6(%arg0: i32) -> (i32, i32) {
    %c0_i32 = arith.constant 0 : i32
    %c0_i32_0 = arith.constant 0 : i32
    %c0_i32_1 = arith.constant 0 : i32
    return %c0_i32, %c0_i32_0 : i32, i32
  }
  func.func @transform_7(%arg0: i32) -> (i32, i32) {
    %c0_i32 = arith.constant 0 : i32
    %c0_i32_0 = arith.constant 0 : i32
    %c0_i32_1 = arith.constant 0 : i32
    return %c0_i32, %c0_i32_0 : i32, i32
  }
  func.func @transform_8(%arg0: i32) -> (i32, i32) {
    %c0_i32 = arith.constant 0 : i32
    %c0_i32_0 = arith.constant 0 : i32
    %c0_i32_1 = arith.constant 0 : i32
    return %c0_i32, %c0_i32_0 : i32, i32
  }
  func.func @transform_9(%arg0: i32) -> (i32, i32) {
    %c0_i32 = arith.constant 0 : i32
    %c0_i32_0 = arith.constant 0 : i32
    %c0_i32_1 = arith.constant 0 : i32
    return %c0_i32, %c0_i32_0 : i32, i32
  }
  func.func @transform_10(%arg0: i32) -> (i32, i32) {
    %c0_i32 = arith.constant 0 : i32
    %c0_i32_0 = arith.constant 0 : i32
    %c0_i32_1 = arith.constant 0 : i32
    return %c0_i32, %c0_i32_0 : i32, i32
  }
  func.func @transform_11(%arg0: i32) -> (i32, i32) {
    %c0_i32 = arith.constant 0 : i32
    %c0_i32_0 = arith.constant 0 : i32
    %c0_i32_1 = arith.constant 0 : i32
    return %c0_i32, %c0_i32_0 : i32, i32
  }
  func.func @transform_12(%arg0: i32) -> (i32, i32) {
    %c0_i32 = arith.constant 0 : i32
    %c0_i32_0 = arith.constant 0 : i32
    %c0_i32_1 = arith.constant 0 : i32
    return %c0_i32, %c0_i32_0 : i32, i32
  }
  func.func @transform_13(%arg0: i32) -> (i32, i32) {
    %c0_i32 = arith.constant 0 : i32
    %c0_i32_0 = arith.constant 0 : i32
    %c0_i32_1 = arith.constant 0 : i32
    return %c0_i32, %c0_i32_0 : i32, i32
  }
  func.func @transform_14(%arg0: i32) -> (i32, i32, i32) {
    %c0_i32 = arith.constant 0 : i32
    %c0_i32_0 = arith.constant 0 : i32
    %c0_i32_1 = arith.constant 0 : i32
    return %arg0, %c0_i32, %c0_i32_0 : i32, i32, i32
  }
  func.func @transform_15(%arg0: i32) -> (i32, i32, i32, i32) {
    %c0_i32 = arith.constant 0 : i32
    %c0_i32_0 = arith.constant 0 : i32
    %c0_i32_1 = arith.constant 0 : i32
    %c0_i32_2 = arith.constant 0 : i32
    return %arg0, %c0_i32, %c0_i32_0, %c0_i32_1 : i32, i32, i32, i32
  }
}

</mosaic_0001>

<llo_original>
// kernel: _lambda_.1
$region0: #{_lambda_.1}
  #allocation0 [shape = 'u32[]', space=smem, size = 0x4, offset = 0x4, fixed_abs, tag = 'smem constant byte address 0x4 - core index']
  #allocation1 [shape = 'u32[144,128]{1,0:T(1,128)}', space=vmem, size = 0x12000, scoped, tag = 'internal scratch']
  #allocation2 [shape = 'f32[8,32]{1,0:T(8,128)}', space=vmem, size = 0x1000, scoped, tag = 'scratch operand']
  %s0 = inlined_call_operand.hbm [shape: f32[2,8,32], index: 0, kind: input, shape index: {}]
  %s1 = inlined_call_operand.hbm [shape: f32[2,8,32], index: 1, kind: input, shape index: {}]
  %s2 = inlined_call_operand.hbm [shape: f32[2,8,32], index: 2, kind: input, shape index: {}]
  %s3 = inlined_call_operand.hbm [shape: f32[2,8,32], index: 3, kind: input, shape index: {}]
  %s4 = inlined_call_operand.hbm [shape: f32[32,32], index: 4, kind: input, shape index: {}]
  %s5 = inlined_call_operand.vmem [shape: f32[1,32], index: 5, kind: input, shape index: {}]
  %s6 = inlined_call_operand.hbm [shape: f32[32,32], index: 6, kind: input, shape index: {}]
  %s7 = inlined_call_operand.vmem [shape: f32[1,32], index: 7, kind: input, shape index: {}]
  %s8 = inlined_call_operand.hbm [shape: f32[32,32], index: 8, kind: input, shape index: {}]
  %s9 = inlined_call_operand.vmem [shape: f32[1,32], index: 9, kind: input, shape index: {}]
  %s10 = inlined_call_operand.hbm [shape: f32[32,32], index: 10, kind: input, shape index: {}]
  %s11 = inlined_call_operand.vmem [shape: f32[1,32], index: 11, kind: input, shape index: {}]
  %s12 = inlined_call_operand.vmem [shape: f32[1,32], index: 12, kind: input, shape index: {}]
  %s13 = inlined_call_operand.vmem [shape: f32[1,32], index: 13, kind: input, shape index: {}]
  %s14 = inlined_call_operand.hbm [shape: f32[2,8,32], index: 14, kind: output, shape index: {0}]
  %s15 = inlined_call_operand.hbm [shape: f32[2,8,8,8], index: 15, kind: output, shape index: {1}]
  %16 = xla_tuple %s14, %s15
  %s17 = sld [smem:[#allocation0]]
  $region129: #{_lambda_.1} parent=0
    _
  %s19 = ssub.s32 1, %s17
  %s20 = scalar_select 0, %s19, %s17
  $region1: #{_lambda_.1} parent=0
    #allocation3 [shape = 'u8[8192]{0}', space=vmem, size = 0x2000, scoped, tag = 'input window, operand 0']
    #allocation4 [shape = 's32[2]{0}', space=sflag, size = 0x8, scoped, tag = 'scoped memory for _lambda_.1']
    #allocation5 [shape = 's32[2]{0}', space=sflag, size = 0x8, scoped, tag = 'scoped memory for _lambda_.1']
    #allocation6 [shape = 'u8[8192]{0}', space=vmem, size = 0x2000, scoped, tag = 'input window, operand 1']
    #allocation7 [shape = 's32[2]{0}', space=sflag, size = 0x8, scoped, tag = 'scoped memory for _lambda_.1']
    #allocation8 [shape = 'u8[8192]{0}', space=vmem, size = 0x2000, scoped, tag = 'input window, operand 2']
    #allocation9 [shape = 'u8[8192]{0}', space=vmem, size = 0x2000, scoped, tag = 'input window, operand 3']
    #allocation10 [shape = 's32[2]{0}', space=sflag, size = 0x8, scoped, tag = 'scoped memory for _lambda_.1']
    #allocation11 [shape = 'u8[16384]{0}', space=vmem, size = 0x4000, scoped, tag = 'input window, operand 4, single buffered']
    #allocation12 [shape = 'u8[16384]{0}', space=vmem, size = 0x4000, scoped, tag = 'input window, operand 6, single buffered']
    #allocation13 [shape = 's32[1]{0}', space=sflag, size = 0x4, scoped, tag = 'scoped memory for _lambda_.1']
    #allocation14 [shape = 'u8[16384]{0}', space=vmem, size = 0x4000, scoped, tag = 'input window, operand 8, single buffered']
    #allocation15 [shape = 'u8[16384]{0}', space=vmem, size = 0x4000, scoped, tag = 'input window, operand 10, single buffered']
    #allocation16 [shape = 's32[1]{0}', space=sflag, size = 0x4, scoped, tag = 'scoped memory for _lambda_.1']
    #allocation17 [shape = 'u8[8192]{0}', space=vmem, size = 0x2000, scoped, tag = 'output window, operand 0']
    #allocation18 [shape = 'u8[65536]{0}', space=vmem, size = 0x10000, scoped, tag = 'output window, operand 1']
    #allocation19 [shape = 's32[2]{0}', space=sflag, size = 0x8, scoped, tag = 'scoped memory for _lambda_.1']
    %21 = vsyncpa [#allocation4], 0
    %s22 = scalar_lea.sflag [#allocation4], 1
    %23 = vsyncpa %s22, 0
    %24 = vsyncpa [#allocation7], 0
    %s25 = scalar_lea.sflag [#allocation7], 1
    %26 = vsyncpa %s25, 0
    %27 = vsyncpa [#allocation10], 0
    %s28 = scalar_lea.sflag [#allocation10], 1
    %29 = vsyncpa %s28, 0
    %30 = vsyncpa [#allocation13], 0
    %31 = vsyncpa [#allocation16], 0
    %32 = vsyncpa [#allocation5], 0
    %s33 = scalar_lea.sflag [#allocation5], 1
    %34 = vsyncpa %s33, 0
    %35 = vsyncpa [#allocation19], 0
    %s36 = scalar_lea.sflag [#allocation19], 1
    %37 = vsyncpa %s36, 0
    loop: start=0, step=1, limit=4
    $region2: #{_lambda_.1} parent=1 // loop_pre_header
      _
    $region3: #{_lambda_.1} parent=1 // loop_header
      %s39 = sphi 0, %s43
      %p40 = scmp.ge.s32.totalorder %s39, 4
      %s49 = sphi 0, %s51
      %s52 = sphi 0, %s49
      %s53 = sphi 0, %s52
      %s69 = sphi 0, %s53
      %s75 = sphi 0, %s77
      %s78 = sphi 0, %s75
      %s79 = sphi 0, %s78
      %s95 = sphi 0, %s79
      %s101 = sphi 0, %s103
      %s104 = sphi 0, %s101
      %s105 = sphi 0, %s104
      %s121 = sphi 0, %s105
      %s127 = sphi 0, %s129
      %s130 = sphi 0, %s127
      %s131 = sphi 0, %s130
      %s147 = sphi 0, %s131
      %s151 = sphi 0, %s151
      %s153 = sphi 0, %s151
      %s154 = sphi 0, %s153
      %s168 = sphi 0, %s154
      %s172 = sphi 0, %s172
      %s174 = sphi 0, %s172
      %s175 = sphi 0, %s174
      %s189 = sphi 0, %s175
      %s193 = sphi 0, %s193
      %s195 = sphi 0, %s193
      %s196 = sphi 0, %s195
      %s210 = sphi 0, %s196
      %s214 = sphi 0, %s214
      %s216 = sphi 0, %s214
      %s217 = sphi 0, %s216
      %s231 = sphi 0, %s217
      %s235 = sphi 0, %s235
      %s237 = sphi 0, %s235
      %s238 = sphi 0, %s237
      %s252 = sphi 0, %s238
      %s256 = sphi 0, %s256
      %s258 = sphi 0, %s256
      %s259 = sphi 0, %s258
      %s273 = sphi 0, %s259
      %s277 = sphi 0, %s277
      %s279 = sphi 0, %s277
      %s280 = sphi 0, %s279
      %s294 = sphi 0, %s280
      %s298 = sphi 0, %s298
      %s300 = sphi 0, %s298
      %s301 = sphi 0, %s300
      %s315 = sphi 0, %s301
      %s319 = sphi 0, %s319
      %s321 = sphi 0, %s319
      %s322 = sphi 0, %s321
      %s336 = sphi 0, %s322
      %s340 = sphi 0, %s340
      %s342 = sphi 0, %s340
      %s343 = sphi 0, %s342
      %s357 = sphi 0, %s343
      %s363 = sphi 0, %s365
      %s366 = sphi 0, %s363
      %s367 = sphi 0, %s366
      %s383 = sphi 0, %s367
      %s389 = sphi 0, %s391
      %s392 = sphi 0, %s389
      %s393 = sphi 0, %s392
      %s409 = sphi 0, %s393
    $region4: #{_lambda_.1} parent=1 // loop_header_branch
      %42 = sbr.rel (%p40) target = $region8
    $region5: #{_lambda_.1} parent=1 // loop_body
      %s44 = ssub.s32 %s39, 1
      %s45 = ssub.s32 %s39, 2
      %s46 = sadd.s32 %s39, 1
      %s47 = ssub.s32 %s39, %s46
      %p48 = scmp.eq.s32.totalorder %s47, 0
      %s50 = sadd.s32 %s49, 1
      %s51 = scalar_select %p48, %s49, %s50
      %p54 = pneg %p48
      %p55 = scmp.eq.s32.totalorder %s39, 1
      %p56 = por %p54, %p55
      %p57 = scmp.ne.s32.totalorder %s49, %s52
      %p58 = scmp.eq.s32.totalorder %s39, 0
      %p59 = por %p57, %p58
      %p60 = scmp.ne.s32.totalorder %s49, %s52
      %p61 = scmp.eq.s32.totalorder %s44, 1
      %p62 = por %p60, %p61
      %p63 = scmp.ne.s32.totalorder %s52, %s53
      %p64 = scmp.eq.s32.totalorder %s44, 0
      %p65 = por %p63, %p64
      %p66 = scmp.ne.s32.totalorder %s52, %s53
      %p67 = scmp.eq.s32.totalorder %s45, 1
      %p68 = por %p66, %p67
      %p70 = scmp.ne.s32.totalorder %s53, %s69
      %p71 = scmp.eq.s32.totalorder %s45, 0
      %p72 = por %p70, %p71
      %s73 = ssub.s32 %s39, %s46
      %p74 = scmp.eq.s32.totalorder %s73, 0
      %s76 = sadd.s32 %s75, 1
      %s77 = scalar_select %p74, %s75, %s76
      %p80 = pneg %p74
      %p81 = scmp.eq.s32.totalorder %s39, 1
      %p82 = por %p80, %p81
      %p83 = scmp.ne.s32.totalorder %s75, %s78
      %p84 = scmp.eq.s32.totalorder %s39, 0
      %p85 = por %p83, %p84
      %p86 = scmp.ne.s32.totalorder %s75, %s78
      %p87 = scmp.eq.s32.totalorder %s44, 1
      %p88 = por %p86, %p87
      %p89 = scmp.ne.s32.totalorder %s78, %s79
      %p90 = scmp.eq.s32.totalorder %s44, 0
      %p91 = por %p89, %p90
      %p92 = scmp.ne.s32.totalorder %s78, %s79
      %p93 = scmp.eq.s32.totalorder %s45, 1
      %p94 = por %p92, %p93
      %p96 = scmp.ne.s32.totalorder %s79, %s95
      %p97 = scmp.eq.s32.totalorder %s45, 0
      %p98 = por %p96, %p97
      %s99 = ssub.s32 %s39, %s46
      %p100 = scmp.eq.s32.totalorder %s99, 0
      %s102 = sadd.s32 %s101, 1
      %s103 = scalar_select %p100, %s101, %s102
      %p106 = pneg %p100
      %p107 = scmp.eq.s32.totalorder %s39, 1
      %p108 = por %p106, %p107
      %p109 = scmp.ne.s32.totalorder %s101, %s104
      %p110 = scmp.eq.s32.totalorder %s39, 0
      %p111 = por %p109, %p110
      %p112 = scmp.ne.s32.totalorder %s101, %s104
      %p113 = scmp.eq.s32.totalorder %s44, 1
      %p114 = por %p112, %p113
      %p115 = scmp.ne.s32.totalorder %s104, %s105
      %p116 = scmp.eq.s32.totalorder %s44, 0
      %p117 = por %p115, %p116
      %p118 = scmp.ne.s32.totalorder %s104, %s105
      %p119 = scmp.eq.s32.totalorder %s45, 1
      %p120 = por %p118, %p119
      %p122 = scmp.ne.s32.totalorder %s105, %s121
      %p123 = scmp.eq.s32.totalorder %s45, 0
      %p124 = por %p122, %p123
      %s125 = ssub.s32 %s39, %s46
      %p126 = scmp.eq.s32.totalorder %s125, 0
      %s128 = sadd.s32 %s127, 1
      %s129 = scalar_select %p126, %s127, %s128
      %p132 = pneg %p126
      %p133 = scmp.eq.s32.totalorder %s39, 1
      %p134 = por %p132, %p133
      %p135 = scmp.ne.s32.totalorder %s127, %s130
      %p136 = scmp.eq.s32.totalorder %s39, 0
      %p137 = por %p135, %p136
      %p138 = scmp.ne.s32.totalorder %s127, %s130
      %p139 = scmp.eq.s32.totalorder %s44, 1
      %p140 = por %p138, %p139
      %p141 = scmp.ne.s32.totalorder %s130, %s131
      %p142 = scmp.eq.s32.totalorder %s44, 0
      %p143 = por %p141, %p142
      %p144 = scmp.ne.s32.totalorder %s130, %s131
      %p145 = scmp.eq.s32.totalorder %s45, 1
      %p146 = por %p144, %p145
      %p148 = scmp.ne.s32.totalorder %s131, %s147
      %p149 = scmp.eq.s32.totalorder %s45, 0
      %p150 = por %p148, %p149
      %s152 = sadd.s32 %s151, 1
      %p155 = scmp.eq.s32.totalorder %s39, 1
      %p156 = scmp.ne.s32.totalorder %s151, %s153
      %p157 = scmp.eq.s32.totalorder %s39, 0
      %p158 = por %p156, %p157
      %p159 = scmp.ne.s32.totalorder %s151, %s153
      %p160 = scmp.eq.s32.totalorder %s44, 1
      %p161 = por %p159, %p160
      %p162 = scmp.ne.s32.totalorder %s153, %s154
      %p163 = scmp.eq.s32.totalorder %s44, 0
      %p164 = por %p162, %p163
      %p165 = scmp.ne.s32.totalorder %s153, %s154
      %p166 = scmp.eq.s32.totalorder %s45, 1
      %p167 = por %p165, %p166
      %p169 = scmp.ne.s32.totalorder %s154, %s168
      %p170 = scmp.eq.s32.totalorder %s45, 0
      %p171 = por %p169, %p170
      %s173 = sadd.s32 %s172, 1
      %p176 = scmp.eq.s32.totalorder %s39, 1
      %p177 = scmp.ne.s32.totalorder %s172, %s174
      %p178 = scmp.eq.s32.totalorder %s39, 0
      %p179 = por %p177, %p178
      %p180 = scmp.ne.s32.totalorder %s172, %s174
      %p181 = scmp.eq.s32.totalorder %s44, 1
      %p182 = por %p180, %p181
      %p183 = scmp.ne.s32.totalorder %s174, %s175
      %p184 = scmp.eq.s32.totalorder %s44, 0
      %p185 = por %p183, %p184
      %p186 = scmp.ne.s32.totalorder %s174, %s175
      %p187 = scmp.eq.s32.totalorder %s45, 1
      %p188 = por %p186, %p187
      %p190 = scmp.ne.s32.totalorder %s175, %s189
      %p191 = scmp.eq.s32.totalorder %s45, 0
      %p192 = por %p190, %p191
      %s194 = sadd.s32 %s193, 1
      %p197 = scmp.eq.s32.totalorder %s39, 1
      %p198 = scmp.ne.s32.totalorder %s193, %s195
      %p199 = scmp.eq.s32.totalorder %s39, 0
      %p200 = por %p198, %p199
      %p201 = scmp.ne.s32.totalorder %s193, %s195
      %p202 = scmp.eq.s32.totalorder %s44, 1
      %p203 = por %p201, %p202
      %p204 = scmp.ne.s32.totalorder %s195, %s196
      %p205 = scmp.eq.s32.totalorder %s44, 0
      %p206 = por %p204, %p205
      %p207 = scmp.ne.s32.totalorder %s195, %s196
      %p208 = scmp.eq.s32.totalorder %s45, 1
      %p209 = por %p207, %p208
      %p211 = scmp.ne.s32.totalorder %s196, %s210
      %p212 = scmp.eq.s32.totalorder %s45, 0
      %p213 = por %p211, %p212
      %s215 = sadd.s32 %s214, 1
      %p218 = scmp.eq.s32.totalorder %s39, 1
      %p219 = scmp.ne.s32.totalorder %s214, %s216
      %p220 = scmp.eq.s32.totalorder %s39, 0
      %p221 = por %p219, %p220
      %p222 = scmp.ne.s32.totalorder %s214, %s216
      %p223 = scmp.eq.s32.totalorder %s44, 1
      %p224 = por %p222, %p223
      %p225 = scmp.ne.s32.totalorder %s216, %s217
      %p226 = scmp.eq.s32.totalorder %s44, 0
      %p227 = por %p225, %p226
      %p228 = scmp.ne.s32.totalorder %s216, %s217
      %p229 = scmp.eq.s32.totalorder %s45, 1
      %p230 = por %p228, %p229
      %p232 = scmp.ne.s32.totalorder %s217, %s231
      %p233 = scmp.eq.s32.totalorder %s45, 0
      %p234 = por %p232, %p233
      %s236 = sadd.s32 %s235, 1
      %p239 = scmp.eq.s32.totalorder %s39, 1
      %p240 = scmp.ne.s32.totalorder %s235, %s237
      %p241 = scmp.eq.s32.totalorder %s39, 0
      %p242 = por %p240, %p241
      %p243 = scmp.ne.s32.totalorder %s235, %s237
      %p244 = scmp.eq.s32.totalorder %s44, 1
      %p245 = por %p243, %p244
      %p246 = scmp.ne.s32.totalorder %s237, %s238
      %p247 = scmp.eq.s32.totalorder %s44, 0
      %p248 = por %p246, %p247
      %p249 = scmp.ne.s32.totalorder %s237, %s238
      %p250 = scmp.eq.s32.totalorder %s45, 1
      %p251 = por %p249, %p250
      %p253 = scmp.ne.s32.totalorder %s238, %s252
      %p254 = scmp.eq.s32.totalorder %s45, 0
      %p255 = por %p253, %p254
      %s257 = sadd.s32 %s256, 1
      %p260 = scmp.eq.s32.totalorder %s39, 1
      %p261 = scmp.ne.s32.totalorder %s256, %s258
      %p262 = scmp.eq.s32.totalorder %s39, 0
      %p263 = por %p261, %p262
      %p264 = scmp.ne.s32.totalorder %s256, %s258
      %p265 = scmp.eq.s32.totalorder %s44, 1
      %p266 = por %p264, %p265
      %p267 = scmp.ne.s32.totalorder %s258, %s259
      %p268 = scmp.eq.s32.totalorder %s44, 0
      %p269 = por %p267, %p268
      %p270 = scmp.ne.s32.totalorder %s258, %s259
      %p271 = scmp.eq.s32.totalorder %s45, 1
      %p272 = por %p270, %p271
      %p274 = scmp.ne.s32.totalorder %s259, %s273
      %p275 = scmp.eq.s32.totalorder %s45, 0
      %p276 = por %p274, %p275
      %s278 = sadd.s32 %s277, 1
      %p281 = scmp.eq.s32.totalorder %s39, 1
      %p282 = scmp.ne.s32.totalorder %s277, %s279
      %p283 = scmp.eq.s32.totalorder %s39, 0
      %p284 = por %p282, %p283
      %p285 = scmp.ne.s32.totalorder %s277, %s279
      %p286 = scmp.eq.s32.totalorder %s44, 1
      %p287 = por %p285, %p286
      %p288 = scmp.ne.s32.totalorder %s279, %s280
      %p289 = scmp.eq.s32.totalorder %s44, 0
      %p290 = por %p288, %p289
      %p291 = scmp.ne.s32.totalorder %s279, %s280
      %p292 = scmp.eq.s32.totalorder %s45, 1
      %p293 = por %p291, %p292
      %p295 = scmp.ne.s32.totalorder %s280, %s294
      %p296 = scmp.eq.s32.totalorder %s45, 0
      %p297 = por %p295, %p296
      %s299 = sadd.s32 %s298, 1
      %p302 = scmp.eq.s32.totalorder %s39, 1
      %p303 = scmp.ne.s32.totalorder %s298, %s300
      %p304 = scmp.eq.s32.totalorder %s39, 0
      %p305 = por %p303, %p304
      %p306 = scmp.ne.s32.totalorder %s298, %s300
      %p307 = scmp.eq.s32.totalorder %s44, 1
      %p308 = por %p306, %p307
      %p309 = scmp.ne.s32.totalorder %s300, %s301
      %p310 = scmp.eq.s32.totalorder %s44, 0
      %p311 = por %p309, %p310
      %p312 = scmp.ne.s32.totalorder %s300, %s301
      %p313 = scmp.eq.s32.totalorder %s45, 1
      %p314 = por %p312, %p313
      %p316 = scmp.ne.s32.totalorder %s301, %s315
      %p317 = scmp.eq.s32.totalorder %s45, 0
      %p318 = por %p316, %p317
      %s320 = sadd.s32 %s319, 1
      %p323 = scmp.eq.s32.totalorder %s39, 1
      %p324 = scmp.ne.s32.totalorder %s319, %s321
      %p325 = scmp.eq.s32.totalorder %s39, 0
      %p326 = por %p324, %p325
      %p327 = scmp.ne.s32.totalorder %s319, %s321
      %p328 = scmp.eq.s32.totalorder %s44, 1
      %p329 = por %p327, %p328
      %p330 = scmp.ne.s32.totalorder %s321, %s322
      %p331 = scmp.eq.s32.totalorder %s44, 0
      %p332 = por %p330, %p331
      %p333 = scmp.ne.s32.totalorder %s321, %s322
      %p334 = scmp.eq.s32.totalorder %s45, 1
      %p335 = por %p333, %p334
      %p337 = scmp.ne.s32.totalorder %s322, %s336
      %p338 = scmp.eq.s32.totalorder %s45, 0
      %p339 = por %p337, %p338
      %s341 = sadd.s32 %s340, 1
      %p344 = scmp.eq.s32.totalorder %s39, 1
      %p345 = scmp.ne.s32.totalorder %s340, %s342
      %p346 = scmp.eq.s32.totalorder %s39, 0
      %p347 = por %p345, %p346
      %p348 = scmp.ne.s32.totalorder %s340, %s342
      %p349 = scmp.eq.s32.totalorder %s44, 1
      %p350 = por %p348, %p349
      %p351 = scmp.ne.s32.totalorder %s342, %s343
      %p352 = scmp.eq.s32.totalorder %s44, 0
      %p353 = por %p351, %p352
      %p354 = scmp.ne.s32.totalorder %s342, %s343
      %p355 = scmp.eq.s32.totalorder %s45, 1
      %p356 = por %p354, %p355
      %p358 = scmp.ne.s32.totalorder %s343, %s357
      %p359 = scmp.eq.s32.totalorder %s45, 0
      %p360 = por %p358, %p359
      %s361 = ssub.s32 %s39, %s46
      %p362 = scmp.eq.s32.totalorder %s361, 0
      %s364 = sadd.s32 %s363, 1
      %s365 = scalar_select %p362, %s363, %s364
      %p368 = pneg %p362
      %p369 = scmp.eq.s32.totalorder %s39, 1
      %p370 = por %p368, %p369
      %p371 = scmp.ne.s32.totalorder %s363, %s366
      %p372 = scmp.eq.s32.totalorder %s39, 0
      %p373 = por %p371, %p372
      %p374 = scmp.ne.s32.totalorder %s363, %s366
      %p375 = scmp.eq.s32.totalorder %s44, 1
      %p376 = por %p374, %p375
      %p377 = scmp.ne.s32.totalorder %s366, %s367
      %p378 = scmp.eq.s32.totalorder %s44, 0
      %p379 = por %p377, %p378
      %p380 = scmp.ne.s32.totalorder %s366, %s367
      %p381 = scmp.eq.s32.totalorder %s45, 1
      %p382 = por %p380, %p381
      %p384 = scmp.ne.s32.totalorder %s367, %s383
      %p385 = scmp.eq.s32.totalorder %s45, 0
      %p386 = por %p384, %p385
      %s387 = ssub.s32 %s39, %s46
      %p388 = scmp.eq.s32.totalorder %s387, 0
      %s390 = sadd.s32 %s389, 1
      %s391 = scalar_select %p388, %s389, %s390
      %p394 = pneg %p388
      %p395 = scmp.eq.s32.totalorder %s39, 1
      %p396 = por %p394, %p395
      %p397 = scmp.ne.s32.totalorder %s389, %s392
      %p398 = scmp.eq.s32.totalorder %s39, 0
      %p399 = por %p397, %p398
      %p400 = scmp.ne.s32.totalorder %s389, %s392
      %p401 = scmp.eq.s32.totalorder %s44, 1
      %p402 = por %p400, %p401
      %p403 = scmp.ne.s32.totalorder %s392, %s393
      %p404 = scmp.eq.s32.totalorder %s44, 0
      %p405 = por %p403, %p404
      %p406 = scmp.ne.s32.totalorder %s392, %s393
      %p407 = scmp.eq.s32.totalorder %s45, 1
      %p408 = por %p406, %p407
      %p410 = scmp.ne.s32.totalorder %s393, %s409
      %p411 = scmp.eq.s32.totalorder %s45, 0
      %p412 = por %p410, %p411
      %p413 = scmp.le.s32.totalorder 1, %s39
      %p414 = scmp.lt.s32.totalorder %s39, 3
      %p415 = pnand %p413, %p414
      %p416 = pneg %p415
      // Predicated region
      $region9: #{_lambda_.1} parent=5 // pred_check
        _
      $region10: #{_lambda_.1} parent=5 // pred_check_branch
        %418 = sbr.rel (%p415) target = $region12
      $region11: #{_lambda_.1} parent=5 // pred_region
        %s419 = ssub.s32 %s39, 1
        // Predicated region
        $region13: #{_lambda_.1} parent=11 // pred_check
          %p420 = pneg %p164
        $region14: #{_lambda_.1} parent=11 // pred_check_branch
          %422 = sbr.rel (%p420) target = $region16
        $region15: #{_lambda_.1} parent=11 // pred_region
          %s424 = ssub.s32 512, 512
          %425 = vsyncadd [#allocation10], %s424
          %s426 = sshll.u32 [#allocation11], 4
          %s427 = int_to_ptr.vmem [resolvable:$true] %s426
          %432 = dma.hbm_to_vmem [thread:$0]  %s4, 512, %s427, [#allocation10], 128, 128, 8
        $region16: #{_lambda_.1} parent=11 // pred_fallthru
          _
        // Predicated region
        $region17: #{_lambda_.1} parent=11 // pred_check
          %p433 = pneg %p185
        $region18: #{_lambda_.1} parent=11 // pred_check_branch
          %435 = sbr.rel (%p433) target = $region20
        $region19: #{_lambda_.1} parent=11 // pred_region
          _
        $region20: #{_lambda_.1} parent=11 // pred_fallthru
          _
        // Predicated region
        $region21: #{_lambda_.1} parent=11 // pred_check
          %p436 = pneg %p206
        $region22: #{_lambda_.1} parent=11 // pred_check_branch
          %438 = sbr.rel (%p436) target = $region24
        $region23: #{_lambda_.1} parent=11 // pred_region
          %s440 = ssub.s32 512, 512
          %441 = vsyncadd [#allocation13], %s440
          %s442 = sshll.u32 [#allocation12], 4
          %s443 = int_to_ptr.vmem [resolvable:$true] %s442
          %448 = dma.hbm_to_vmem [thread:$0]  %s6, 512, %s443, [#allocation13], 128, 128, 8
        $region24: #{_lambda_.1} parent=11 // pred_fallthru
          _
        // Predicated region
        $region25: #{_lambda_.1} parent=11 // pred_check
          %p449 = pneg %p227
        $region26: #{_lambda_.1} parent=11 // pred_check_branch
          %451 = sbr.rel (%p449) target = $region28
        $region27: #{_lambda_.1} parent=11 // pred_region
          _
        $region28: #{_lambda_.1} parent=11 // pred_fallthru
          _
        // Predicated region
        $region29: #{_lambda_.1} parent=11 // pred_check
          %p452 = pneg %p248
        $region30: #{_lambda_.1} parent=11 // pred_check_branch
          %454 = sbr.rel (%p452) target = $region32
        $region31: #{_lambda_.1} parent=11 // pred_region
          %s456 = ssub.s32 512, 512
          %457 = vsyncadd [#allocation13], %s456
          %s458 = sshll.u32 [#allocation14], 4
          %s459 = int_to_ptr.vmem [resolvable:$true] %s458
          %464 = dma.hbm_to_vmem [thread:$0]  %s8, 512, %s459, [#allocation13], 128, 128, 8
        $region32: #{_lambda_.1} parent=11 // pred_fallthru
          _
        // Predicated region
        $region33: #{_lambda_.1} parent=11 // pred_check
          %p465 = pneg %p269
        $region34: #{_lambda_.1} parent=11 // pred_check_branch
          %467 = sbr.rel (%p465) target = $region36
        $region35: #{_lambda_.1} parent=11 // pred_region
          _
        $region36: #{_lambda_.1} parent=11 // pred_fallthru
          _
        // Predicated region
        $region37: #{_lambda_.1} parent=11 // pred_check
          %p468 = pneg %p290
        $region38: #{_lambda_.1} parent=11 // pred_check_branch
          %470 = sbr.rel (%p468) target = $region40
        $region39: #{_lambda_.1} parent=11 // pred_region
          %s472 = ssub.s32 512, 512
          %473 = vsyncadd [#allocation16], %s472
          %s474 = sshll.u32 [#allocation15], 4
          %s475 = int_to_ptr.vmem [resolvable:$true] %s474
          %480 = dma.hbm_to_vmem [thread:$0]  %s10, 512, %s475, [#allocation16], 128, 128, 8
        $region40: #{_lambda_.1} parent=11 // pred_fallthru
          _
        // Predicated region
        $region41: #{_lambda_.1} parent=11 // pred_check
          %p481 = pneg %p311
        $region42: #{_lambda_.1} parent=11 // pred_check_branch
          %483 = sbr.rel (%p481) target = $region44
        $region43: #{_lambda_.1} parent=11 // pred_region
          _
        $region44: #{_lambda_.1} parent=11 // pred_fallthru
          _
        // Predicated region
        $region45: #{_lambda_.1} parent=11 // pred_check
          %p484 = pneg %p332
        $region46: #{_lambda_.1} parent=11 // pred_check_branch
          %486 = sbr.rel (%p484) target = $region48
        $region47: #{_lambda_.1} parent=11 // pred_region
          _
        $region48: #{_lambda_.1} parent=11 // pred_fallthru
          _
        // Predicated region
        $region49: #{_lambda_.1} parent=11 // pred_check
          %p487 = pneg %p353
        $region50: #{_lambda_.1} parent=11 // pred_check_branch
          %489 = sbr.rel (%p487) target = $region52
        $region51: #{_lambda_.1} parent=11 // pred_region
          _
        $region52: #{_lambda_.1} parent=11 // pred_fallthru
          _
      $region12: #{_lambda_.1} parent=5 // pred_fallthru
        _
      %p490 = scmp.lt.s32.totalorder %s39, 2
      // Predicated region
      $region53: #{_lambda_.1} parent=5 // pred_check
        %p491 = pneg %p490
      $region54: #{_lambda_.1} parent=5 // pred_check_branch
        %493 = sbr.rel (%p491) target = $region56
      $region55: #{_lambda_.1} parent=5 // pred_region
        // Predicated region
        $region57: #{_lambda_.1} parent=55 // pred_check
          %p494 = pneg %p59
        $region58: #{_lambda_.1} parent=55 // pred_check_branch
          %496 = sbr.rel (%p494) target = $region60
        $region59: #{_lambda_.1} parent=55 // pred_region
          %s497 = sand.u32 %s49, 1
          %s498 = scalar_lea.sflag [#allocation4], %s497
          %s499 = sand.u32 %s49, 1
          %s500 = smul.addr %s499, 8
          %s501 = scalar_lea.vmem [#allocation3], %s500
          %s503 = ssub.s32 128, 128
          %504 = vsyncadd %s498, %s503
          %s505 = smul.addr %s39, 128
          %s506 = scalar_lea.hbm %s0, %s505
          %s508 = sshll.u32 %s501, 4
          %s509 = int_to_ptr.vmem [resolvable:$true] %s508
          %511 = dma.hbm_to_vmem [thread:$0]  %s506, 128, %s509, %s498
        $region60: #{_lambda_.1} parent=55 // pred_fallthru
          _
        // Predicated region
        $region61: #{_lambda_.1} parent=55 // pred_check
          %p512 = pneg %p85
        $region62: #{_lambda_.1} parent=55 // pred_check_branch
          %514 = sbr.rel (%p512) target = $region64
        $region63: #{_lambda_.1} parent=55 // pred_region
          %s515 = sand.u32 %s39, 1
          %s516 = scalar_lea.sflag [#allocation7], %s515
          %s517 = sand.u32 %s75, 1
          %s518 = smul.addr %s517, 8
          %s519 = scalar_lea.vmem [#allocation6], %s518
          %s521 = ssub.s32 128, 128
          %522 = vsyncadd %s516, %s521
          %s523 = smul.addr %s39, 128
          %s524 = scalar_lea.hbm %s1, %s523
          %s526 = sshll.u32 %s519, 4
          %s527 = int_to_ptr.vmem [resolvable:$true] %s526
          %529 = dma.hbm_to_vmem [thread:$0]  %s524, 128, %s527, %s516
        $region64: #{_lambda_.1} parent=55 // pred_fallthru
          _
        // Predicated region
        $region65: #{_lambda_.1} parent=55 // pred_check
          %p530 = pneg %p111
        $region66: #{_lambda_.1} parent=55 // pred_check_branch
          %532 = sbr.rel (%p530) target = $region68
        $region67: #{_lambda_.1} parent=55 // pred_region
          %s533 = sand.u32 %s39, 1
          %s534 = scalar_lea.sflag [#allocation7], %s533
          %s535 = sand.u32 %s101, 1
          %s536 = smul.addr %s535, 8
          %s537 = scalar_lea.vmem [#allocation8], %s536
          %s539 = ssub.s32 128, 128
          %540 = vsyncadd %s534, %s539
          %s541 = smul.addr %s39, 128
          %s542 = scalar_lea.hbm %s2, %s541
          %s544 = sshll.u32 %s537, 4
          %s545 = int_to_ptr.vmem [resolvable:$true] %s544
          %547 = dma.hbm_to_vmem [thread:$0]  %s542, 128, %s545, %s534
        $region68: #{_lambda_.1} parent=55 // pred_fallthru
          _
        // Predicated region
        $region69: #{_lambda_.1} parent=55 // pred_check
          %p548 = pneg %p137
        $region70: #{_lambda_.1} parent=55 // pred_check_branch
          %550 = sbr.rel (%p548) target = $region72
        $region71: #{_lambda_.1} parent=55 // pred_region
          %s551 = sand.u32 %s39, 1
          %s552 = scalar_lea.sflag [#allocation10], %s551
          %s553 = sand.u32 %s127, 1
          %s554 = smul.addr %s553, 8
          %s555 = scalar_lea.vmem [#allocation9], %s554
          %s557 = ssub.s32 128, 128
          %558 = vsyncadd %s552, %s557
          %s559 = smul.addr %s39, 128
          %s560 = scalar_lea.hbm %s3, %s559
          %s562 = sshll.u32 %s555, 4
          %s563 = int_to_ptr.vmem [resolvable:$true] %s562
          %565 = dma.hbm_to_vmem [thread:$0]  %s560, 128, %s563, %s552
        $region72: #{_lambda_.1} parent=55 // pred_fallthru
          _
      $region56: #{_lambda_.1} parent=5 // pred_fallthru
        _
      %p566 = scmp.le.s32.totalorder 1, %s39
      %p567 = scmp.lt.s32.totalorder %s39, 3
      %p568 = pnand %p566, %p567
      %p569 = pneg %p568
      // Predicated region
      $region73: #{_lambda_.1} parent=5 // pred_check
        _
      $region74: #{_lambda_.1} parent=5 // pred_check_branch
        %571 = sbr.rel (%p568) target = $region76
      $region75: #{_lambda_.1} parent=5 // pred_region
        %s572 = ssub.s32 %s39, 1
        %s573 = sand.u32 %s52, 1
        %s574 = scalar_lea.sflag [#allocation4], %s573
        %s575 = sand.u32 %s52, 1
        %s576 = smul.addr %s575, 8
        %s577 = scalar_lea.vmem [#allocation3], %s576
        // Predicated region
        $region77: #{_lambda_.1} parent=75 // pred_check
          %p578 = pneg %p65
        $region78: #{_lambda_.1} parent=75 // pred_check_branch
          %580 = sbr.rel (%p578) target = $region80
        $region79: #{_lambda_.1} parent=75 // pred_region
          %581 = dma.done %s574, 128
        $region80: #{_lambda_.1} parent=75 // pred_fallthru
          _
        %s582 = sand.u32 %s44, 1
        %s583 = scalar_lea.sflag [#allocation7], %s582
        %s584 = sand.u32 %s78, 1
        %s585 = smul.addr %s584, 8
        %s586 = scalar_lea.vmem [#allocation6], %s585
        // Predicated region
        $region81: #{_lambda_.1} parent=75 // pred_check
          %p587 = pneg %p91
        $region82: #{_lambda_.1} parent=75 // pred_check_branch
          %589 = sbr.rel (%p587) target = $region84
        $region83: #{_lambda_.1} parent=75 // pred_region
          %590 = dma.done %s583, 128
        $region84: #{_lambda_.1} parent=75 // pred_fallthru
          _
        %s591 = sand.u32 %s44, 1
        %s592 = scalar_lea.sflag [#allocation7], %s591
        %s593 = sand.u32 %s104, 1
        %s594 = smul.addr %s593, 8
        %s595 = scalar_lea.vmem [#allocation8], %s594
        // Predicated region
        $region85: #{_lambda_.1} parent=75 // pred_check
          %p596 = pneg %p117
        $region86: #{_lambda_.1} parent=75 // pred_check_branch
          %598 = sbr.rel (%p596) target = $region88
        $region87: #{_lambda_.1} parent=75 // pred_region
          %599 = dma.done %s592, 128
        $region88: #{_lambda_.1} parent=75 // pred_fallthru
          _
        %s600 = sand.u32 %s44, 1
        %s601 = scalar_lea.sflag [#allocation10], %s600
        %s602 = sand.u32 %s130, 1
        %s603 = smul.addr %s602, 8
        %s604 = scalar_lea.vmem [#allocation9], %s603
        // Predicated region
        $region89: #{_lambda_.1} parent=75 // pred_check
          %p605 = pneg %p143
        $region90: #{_lambda_.1} parent=75 // pred_check_branch
          %607 = sbr.rel (%p605) target = $region92
        $region91: #{_lambda_.1} parent=75 // pred_region
          %608 = dma.done %s601, 128
        $region92: #{_lambda_.1} parent=75 // pred_fallthru
          _
        // Predicated region
        $region93: #{_lambda_.1} parent=75 // pred_check
          %p609 = pneg %p164
        $region94: #{_lambda_.1} parent=75 // pred_check_branch
          %611 = sbr.rel (%p609) target = $region96
        $region95: #{_lambda_.1} parent=75 // pred_region
          %612 = dma.done [#allocation10], 512
        $region96: #{_lambda_.1} parent=75 // pred_fallthru
          _
        // Predicated region
        $region97: #{_lambda_.1} parent=75 // pred_check
          %p613 = pneg %p206
        $region98: #{_lambda_.1} parent=75 // pred_check_branch
          %615 = sbr.rel (%p613) target = $region100
        $region99: #{_lambda_.1} parent=75 // pred_region
          %616 = dma.done [#allocation13], 512
        $region100: #{_lambda_.1} parent=75 // pred_fallthru
          _
        // Predicated region
        $region101: #{_lambda_.1} parent=75 // pred_check
          %p617 = pneg %p248
        $region102: #{_lambda_.1} parent=75 // pred_check_branch
          %619 = sbr.rel (%p617) target = $region104
        $region103: #{_lambda_.1} parent=75 // pred_region
          %620 = dma.done [#allocation13], 512
        $region104: #{_lambda_.1} parent=75 // pred_fallthru
          _
        // Predicated region
        $region105: #{_lambda_.1} parent=75 // pred_check
          %p621 = pneg %p290
        $region106: #{_lambda_.1} parent=75 // pred_check_branch
          %623 = sbr.rel (%p621) target = $region108
        $region107: #{_lambda_.1} parent=75 // pred_region
          %624 = dma.done [#allocation16], 512
        $region108: #{_lambda_.1} parent=75 // pred_fallthru
          _
        %s625 = sand.u32 %s52, 1
        %s626 = scalar_lea.sflag [#allocation4], %s625
        %s627 = sand.u32 %s52, 1
        %s628 = smul.addr %s627, 8
        %s629 = scalar_lea.vmem [#allocation3], %s628
        %p630 = pneg %p65
        %p631 = pneg %p62
        %s632 = sand.u32 %s44, 1
        %s633 = scalar_lea.sflag [#allocation7], %s632
        %s634 = sand.u32 %s78, 1
        %s635 = smul.addr %s634, 8
        %s636 = scalar_lea.vmem [#allocation6], %s635
        %p637 = pneg %p91
        %p638 = pneg %p88
        %s639 = sand.u32 %s44, 1
        %s640 = scalar_lea.sflag [#allocation7], %s639
        %s641 = sand.u32 %s104, 1
        %s642 = smul.addr %s641, 8
        %s643 = scalar_lea.vmem [#allocation8], %s642
        %p644 = pneg %p117
        %p645 = pneg %p114
        %s646 = sand.u32 %s44, 1
        %s647 = scalar_lea.sflag [#allocation10], %s646
        %s648 = sand.u32 %s130, 1
        %s649 = smul.addr %s648, 8
        %s650 = scalar_lea.vmem [#allocation9], %s649
        %p651 = pneg %p143
        %p652 = pneg %p140
        %p653 = pneg %p164
        %p654 = pneg %p161
        %p655 = pneg %p185
        %p656 = pneg %p182
        %p657 = pneg %p206
        %p658 = pneg %p203
        %p659 = pneg %p227
        %p660 = pneg %p224
        %p661 = pneg %p248
        %p662 = pneg %p245
        %p663 = pneg %p269
        %p664 = pneg %p266
        %p665 = pneg %p290
        %p666 = pneg %p287
        %p667 = pneg %p311
        %p668 = pneg %p308
        %p669 = pneg %p332
        %p670 = pneg %p329
        %p671 = pneg %p353
        %p672 = pneg %p350
        %p673 = pneg %p379
        %p674 = pneg %p376
        %s675 = sand.u32 %s366, 1
        %s676 = scalar_lea.sflag [#allocation5], %s675
        %s677 = sand.u32 %s366, 1
        %s678 = smul.addr %s677, 8
        %s679 = scalar_lea.vmem [#allocation17], %s678
        %p680 = pneg %p405
        %p681 = pneg %p402
        %s682 = sand.u32 %s392, 1
        %s683 = scalar_lea.sflag [#allocation19], %s682
        %s684 = sand.u32 %s392, 1
        %s685 = smul.addr %s684, 64
        %s686 = scalar_lea.vmem [#allocation18], %s685
        %v687 = vld [vmem:[%s577] sm:$0xff]
        %v688 = vld [vmem:[%s586] sm:$0xff]
        %v689 = vld [vmem:[%s595] sm:$0xff]
        %v690 = vld [vmem:[#allocation11] sm:$0xff]
        %v691 = vld [vmem:[#allocation11 + $0x8] sm:$0xff]
        %v692 = vld [vmem:[#allocation11 + $0x10] sm:$0xff]
        %v693 = vld [vmem:[#allocation11 + $0x18] sm:$0xff]
        %v694 = vld [vmem:[%s5] sm:$0x1]
        %v696 = vlaneseq
        %v697 = vshrl.u32 %v696, 7
        %v698 = vsub.s32 0, %v697
        %v699 = vrot.slane %v694, %v698
        %vm701 = vcmask 261120
        %v703 = vsel %vm701, %v687, 0
        %705 = vmatprep.subr.mxu0 0.0
        %706 = vmatpush1.msra.mxu0 0.0
        %707 = vmatprep.subr.mxu0 0.0
        %708 = vmatpush1.msra.mxu0 0.0
        %709 = vmatprep.subr.mxu0 0.0
        %710 = vmatpush1.msra.mxu0 0.0
        %711 = vmatprep.subr.mxu0 0.0
        %712 = vmatpush1.msra.mxu0 0.0
        %713 = vmatprep.subr.mxu0 0.0
        %714 = vmatpush1.msra.mxu0 0.0
        %715 = vmatprep.subr.mxu0 0.0
        %716 = vmatpush1.msra.mxu0 0.0
        %717 = vmatprep.subr.mxu0 0.0
        %718 = vmatpush1.msra.mxu0 0.0
        %719 = vmatprep.subr.mxu0 0.0
        %720 = vmatpush1.msra.mxu0 0.0
        %721 = vmatprep.subr.mxu0 0.0
        %722 = vmatpush1.msra.mxu0 0.0
        %723 = vmatprep.subr.mxu0 0.0
        %724 = vmatpush1.msra.mxu0 0.0
        %725 = vmatprep.subr.mxu0 0.0
        %726 = vmatpush1.msra.mxu0 0.0
        %727 = vmatprep.subr.mxu0 0.0
        %728 = vmatpush1.msra.mxu0 0.0
        %729 = vmatprep.subr.mxu0 0.0
        %730 = vmatpush1.msra.mxu0 %v693
        %731 = vmatprep.subr.mxu0 0.0
        %732 = vmatpush1.msra.mxu0 %v692
        %733 = vmatprep.subr.mxu0 0.0
        %734 = vmatpush1.msra.mxu0 %v691
        %735 = vmatprep.subr.mxu0 0.0
        %736 = vmatpush1.msra.mxu0 %v690
        %737 = vmatprep.subr.mxu0 0.0
        %738 = vmatpush2.msra.mxu0 0.0
        %739 = vmatprep.subr.mxu0 0.0
        %740 = vmatpush2.msra.mxu0 0.0
        %741 = vmatprep.subr.mxu0 0.0
        %742 = vmatpush2.msra.mxu0 0.0
        %743 = vmatprep.subr.mxu0 0.0
        %744 = vmatpush2.msra.mxu0 0.0
        %745 = vmatprep.subr.mxu0 0.0
        %746 = vmatpush2.msra.mxu0 0.0
        %747 = vmatprep.subr.mxu0 0.0
        %748 = vmatpush2.msra.mxu0 0.0
        %749 = vmatprep.subr.mxu0 0.0
        %750 = vmatpush2.msra.mxu0 0.0
        %751 = vmatprep.subr.mxu0 0.0
        %752 = vmatpush2.msra.mxu0 0.0
        %753 = vmatprep.subr.mxu0 0.0
        %754 = vmatpush2.msra.mxu0 0.0
        %755 = vmatprep.subr.mxu0 0.0
        %756 = vmatpush2.msra.mxu0 0.0
        %757 = vmatprep.subr.mxu0 0.0
        %758 = vmatpush2.msra.mxu0 0.0
        %759 = vmatprep.subr.mxu0 0.0
        %760 = vmatpush2.msra.mxu0 0.0
        %761 = vmatprep.subr.mxu0 0.0
        %762 = vmatpush2.msra.mxu0 0.0
        %763 = vmatprep.subr.mxu0 0.0
        %764 = vmatpush2.msra.mxu0 0.0
        %765 = vmatprep.subr.mxu0 0.0
        %766 = vmatpush2.msra.mxu0 0.0
        %767 = vmatprep.subr.mxu0 0.0
        %768 = vmatpush2.msra.mxu0 0.0
        %769 = vmatprep.mubr.f32.mxu0 0.0
        %770 = vmatmul.mubr.f32.gmra.mxu0 %v703
        %v771 = vpop.f32.mrf.mxu0
        %v772 = vadd.f32 %v699, %v771
        %v773 = vpop.f32.mrf.mxu0
        %774 = vdwg.mxu0
        %v775 = vmul.f32 %v772, 0.5
        %v776 = vld [vmem:[#allocation12] sm:$0xff]
        %v777 = vld [vmem:[#allocation12 + $0x8] sm:$0xff]
        %v778 = vld [vmem:[#allocation12 + $0x10] sm:$0xff]
        %v779 = vld [vmem:[#allocation12 + $0x18] sm:$0xff]
        %v780 = vld [vmem:[%s7] sm:$0x1]
        %v782 = vlaneseq
        %v783 = vshrl.u32 %v782, 7
        %v784 = vsub.s32 0, %v783
        %v785 = vrot.slane %v780, %v784
        %v788 = vsel %vm701, %v688, 0
        %790 = vmatprep.subr.mxu0 0.0
        %791 = vmatpush1.msra.mxu0 0.0
        %792 = vmatprep.subr.mxu0 0.0
        %793 = vmatpush1.msra.mxu0 0.0
        %794 = vmatprep.subr.mxu0 0.0
        %795 = vmatpush1.msra.mxu0 0.0
        %796 = vmatprep.subr.mxu0 0.0
        %797 = vmatpush1.msra.mxu0 0.0
        %798 = vmatprep.subr.mxu0 0.0
        %799 = vmatpush1.msra.mxu0 0.0
        %800 = vmatprep.subr.mxu0 0.0
        %801 = vmatpush1.msra.mxu0 0.0
        %802 = vmatprep.subr.mxu0 0.0
        %803 = vmatpush1.msra.mxu0 0.0
        %804 = vmatprep.subr.mxu0 0.0
        %805 = vmatpush1.msra.mxu0 0.0
        %806 = vmatprep.subr.mxu0 0.0
        %807 = vmatpush1.msra.mxu0 0.0
        %808 = vmatprep.subr.mxu0 0.0
        %809 = vmatpush1.msra.mxu0 0.0
        %810 = vmatprep.subr.mxu0 0.0
        %811 = vmatpush1.msra.mxu0 0.0
        %812 = vmatprep.subr.mxu0 0.0
        %813 = vmatpush1.msra.mxu0 0.0
        %814 = vmatprep.subr.mxu0 0.0
        %815 = vmatpush1.msra.mxu0 %v779
        %816 = vmatprep.subr.mxu0 0.0
        %817 = vmatpush1.msra.mxu0 %v778
        %818 = vmatprep.subr.mxu0 0.0
        %819 = vmatpush1.msra.mxu0 %v777
        %820 = vmatprep.subr.mxu0 0.0
        %821 = vmatpush1.msra.mxu0 %v776
        %822 = vmatprep.subr.mxu0 0.0
        %823 = vmatpush2.msra.mxu0 0.0
        %824 = vmatprep.subr.mxu0 0.0
        %825 = vmatpush2.msra.mxu0 0.0
        %826 = vmatprep.subr.mxu0 0.0
        %827 = vmatpush2.msra.mxu0 0.0
        %828 = vmatprep.subr.mxu0 0.0
        %829 = vmatpush2.msra.mxu0 0.0
        %830 = vmatprep.subr.mxu0 0.0
        %831 = vmatpush2.msra.mxu0 0.0
        %832 = vmatprep.subr.mxu0 0.0
        %833 = vmatpush2.msra.mxu0 0.0
        %834 = vmatprep.subr.mxu0 0.0
        %835 = vmatpush2.msra.mxu0 0.0
        %836 = vmatprep.subr.mxu0 0.0
        %837 = vmatpush2.msra.mxu0 0.0
        %838 = vmatprep.subr.mxu0 0.0
        %839 = vmatpush2.msra.mxu0 0.0
        %840 = vmatprep.subr.mxu0 0.0
        %841 = vmatpush2.msra.mxu0 0.0
        %842 = vmatprep.subr.mxu0 0.0
        %843 = vmatpush2.msra.mxu0 0.0
        %844 = vmatprep.subr.mxu0 0.0
        %845 = vmatpush2.msra.mxu0 0.0
        %846 = vmatprep.subr.mxu0 0.0
        %847 = vmatpush2.msra.mxu0 0.0
        %848 = vmatprep.subr.mxu0 0.0
        %849 = vmatpush2.msra.mxu0 0.0
        %850 = vmatprep.subr.mxu0 0.0
        %851 = vmatpush2.msra.mxu0 0.0
        %852 = vmatprep.subr.mxu0 0.0
        %853 = vmatpush2.msra.mxu0 0.0
        %854 = vmatprep.mubr.f32.mxu0 0.0
        %855 = vmatmul.mubr.f32.gmra.mxu0 %v788
        %v856 = vpop.f32.mrf.mxu0
        %v857 = vadd.f32 %v785, %v856
        %v858 = vpop.f32.mrf.mxu0
        %859 = vdwg.mxu0
        %v860 = vld [vmem:[#allocation14] sm:$0xff]
        %v861 = vld [vmem:[#allocation14 + $0x8] sm:$0xff]
        %v862 = vld [vmem:[#allocation14 + $0x10] sm:$0xff]
        %v863 = vld [vmem:[#allocation14 + $0x18] sm:$0xff]
        %v864 = vld [vmem:[%s9] sm:$0x1]
        %v866 = vlaneseq
        %v867 = vshrl.u32 %v866, 7
        %v868 = vsub.s32 0, %v867
        %v869 = vrot.slane %v864, %v868
        %v872 = vsel %vm701, %v689, 0
        %874 = vmatprep.subr.mxu0 0.0
        %875 = vmatpush1.msra.mxu0 0.0
        %876 = vmatprep.subr.mxu0 0.0
        %877 = vmatpush1.msra.mxu0 0.0
        %878 = vmatprep.subr.mxu0 0.0
        %879 = vmatpush1.msra.mxu0 0.0
        %880 = vmatprep.subr.mxu0 0.0
        %881 = vmatpush1.msra.mxu0 0.0
        %882 = vmatprep.subr.mxu0 0.0
        %883 = vmatpush1.msra.mxu0 0.0
        %884 = vmatprep.subr.mxu0 0.0
        %885 = vmatpush1.msra.mxu0 0.0
        %886 = vmatprep.subr.mxu0 0.0
        %887 = vmatpush1.msra.mxu0 0.0
        %888 = vmatprep.subr.mxu0 0.0
        %889 = vmatpush1.msra.mxu0 0.0
        %890 = vmatprep.subr.mxu0 0.0
        %891 = vmatpush1.msra.mxu0 0.0
        %892 = vmatprep.subr.mxu0 0.0
        %893 = vmatpush1.msra.mxu0 0.0
        %894 = vmatprep.subr.mxu0 0.0
        %895 = vmatpush1.msra.mxu0 0.0
        %896 = vmatprep.subr.mxu0 0.0
        %897 = vmatpush1.msra.mxu0 0.0
        %898 = vmatprep.subr.mxu0 0.0
        %899 = vmatpush1.msra.mxu0 %v863
        %900 = vmatprep.subr.mxu0 0.0
        %901 = vmatpush1.msra.mxu0 %v862
        %902 = vmatprep.subr.mxu0 0.0
        %903 = vmatpush1.msra.mxu0 %v861
        %904 = vmatprep.subr.mxu0 0.0
        %905 = vmatpush1.msra.mxu0 %v860
        %906 = vmatprep.subr.mxu0 0.0
        %907 = vmatpush2.msra.mxu0 0.0
        %908 = vmatprep.subr.mxu0 0.0
        %909 = vmatpush2.msra.mxu0 0.0
        %910 = vmatprep.subr.mxu0 0.0
        %911 = vmatpush2.msra.mxu0 0.0
        %912 = vmatprep.subr.mxu0 0.0
        %913 = vmatpush2.msra.mxu0 0.0
        %914 = vmatprep.subr.mxu0 0.0
        %915 = vmatpush2.msra.mxu0 0.0
        %916 = vmatprep.subr.mxu0 0.0
        %917 = vmatpush2.msra.mxu0 0.0
        %918 = vmatprep.subr.mxu0 0.0
        %919 = vmatpush2.msra.mxu0 0.0
        %920 = vmatprep.subr.mxu0 0.0
        %921 = vmatpush2.msra.mxu0 0.0
        %922 = vmatprep.subr.mxu0 0.0
        %923 = vmatpush2.msra.mxu0 0.0
        %924 = vmatprep.subr.mxu0 0.0
        %925 = vmatpush2.msra.mxu0 0.0
        %926 = vmatprep.subr.mxu0 0.0
        %927 = vmatpush2.msra.mxu0 0.0
        %928 = vmatprep.subr.mxu0 0.0
        %929 = vmatpush2.msra.mxu0 0.0
        %930 = vmatprep.subr.mxu0 0.0
        %931 = vmatpush2.msra.mxu0 0.0
        %932 = vmatprep.subr.mxu0 0.0
        %933 = vmatpush2.msra.mxu0 0.0
        %934 = vmatprep.subr.mxu0 0.0
        %935 = vmatpush2.msra.mxu0 0.0
        %936 = vmatprep.subr.mxu0 0.0
        %937 = vmatpush2.msra.mxu0 0.0
        %938 = vmatprep.mubr.f32.mxu0 0.0
        %939 = vmatmul.mubr.f32.gmra.mxu0 %v872
        %v940 = vpop.f32.mrf.mxu0
        %v941 = vadd.f32 %v869, %v940
        %v942 = vpop.f32.mrf.mxu0
        %943 = vdwg.mxu0
        %vm944 = vcmask 31744
        %v946 = vsel %vm944, %v775, 0
        %v949 = vsel %vm944, %v857, 0
        %951 = vmatprep.subr.mxu0 0.0
        %952 = vmatpush1.xpose.msra.mxu0 0.0
        %953 = vmatprep.subr.mxu0 0.0
        %954 = vmatpush1.xpose.msra.mxu0 0.0
        %955 = vmatprep.subr.mxu0 0.0
        %956 = vmatpush1.xpose.msra.mxu0 0.0
        %957 = vmatprep.subr.mxu0 0.0
        %958 = vmatpush1.xpose.msra.mxu0 0.0
        %959 = vmatprep.subr.mxu0 0.0
        %960 = vmatpush1.xpose.msra.mxu0 0.0
        %961 = vmatprep.subr.mxu0 0.0
        %962 = vmatpush1.xpose.msra.mxu0 0.0
        %963 = vmatprep.subr.mxu0 0.0
        %964 = vmatpush1.xpose.msra.mxu0 0.0
        %965 = vmatprep.subr.mxu0 0.0
        %966 = vmatpush1.xpose.msra.mxu0 0.0
        %967 = vmatprep.subr.mxu0 0.0
        %968 = vmatpush1.xpose.msra.mxu0 0.0
        %969 = vmatprep.subr.mxu0 0.0
        %970 = vmatpush1.xpose.msra.mxu0 0.0
        %971 = vmatprep.subr.mxu0 0.0
        %972 = vmatpush1.xpose.msra.mxu0 0.0
        %973 = vmatprep.subr.mxu0 0.0
        %974 = vmatpush1.xpose.msra.mxu0 0.0
        %975 = vmatprep.subr.mxu0 0.0
        %976 = vmatpush1.xpose.msra.mxu0 0.0
        %977 = vmatprep.subr.mxu0 0.0
        %978 = vmatpush1.xpose.msra.mxu0 0.0
        %979 = vmatprep.subr.mxu0 0.0
        %980 = vmatpush1.xpose.msra.mxu0 0.0
        %981 = vmatprep.subr.mxu0 0.0
        %982 = vmatpush1.xpose.msra.mxu0 %v949
        %983 = vmatprep.subr.mxu0 0.0
        %984 = vmatpush2.xpose.msra.mxu0 0.0
        %985 = vmatprep.subr.mxu0 0.0
        %986 = vmatpush2.xpose.msra.mxu0 0.0
        %987 = vmatprep.subr.mxu0 0.0
        %988 = vmatpush2.xpose.msra.mxu0 0.0
        %989 = vmatprep.subr.mxu0 0.0
        %990 = vmatpush2.xpose.msra.mxu0 0.0
        %991 = vmatprep.subr.mxu0 0.0
        %992 = vmatpush2.xpose.msra.mxu0 0.0
        %993 = vmatprep.subr.mxu0 0.0
        %994 = vmatpush2.xpose.msra.mxu0 0.0
        %995 = vmatprep.subr.mxu0 0.0
        %996 = vmatpush2.xpose.msra.mxu0 0.0
        %997 = vmatprep.subr.mxu0 0.0
        %998 = vmatpush2.xpose.msra.mxu0 0.0
        %999 = vmatprep.subr.mxu0 0.0
        %1000 = vmatpush2.xpose.msra.mxu0 0.0
        %1001 = vmatprep.subr.mxu0 0.0
        %1002 = vmatpush2.xpose.msra.mxu0 0.0
        %1003 = vmatprep.subr.mxu0 0.0
        %1004 = vmatpush2.xpose.msra.mxu0 0.0
        %1005 = vmatprep.subr.mxu0 0.0
        %1006 = vmatpush2.xpose.msra.mxu0 0.0
        %1007 = vmatprep.subr.mxu0 0.0
        %1008 = vmatpush2.xpose.msra.mxu0 0.0
        %1009 = vmatprep.subr.mxu0 0.0
        %1010 = vmatpush2.xpose.msra.mxu0 0.0
        %1011 = vmatprep.subr.mxu0 0.0
        %1012 = vmatpush2.xpose.msra.mxu0 0.0
        %1013 = vmatprep.subr.mxu0 0.0
        %1014 = vmatpush2.xpose.msra.mxu0 0.0
        %1015 = vmatprep.mubr.f32.mxu0 0.0
        %1016 = vmatmul.mubr.f32.gmra.mxu0 %v946
        %v1017 = vpop.f32.mrf.mxu0
        %v1018 = vadd.f32 0.0, %v1017
        %v1019 = vpop.f32.mrf.mxu0
        %1020 = vdwg.mxu0
        %vm1021 = vcmask 64512
        %v1022 = vsel %vm1021, %v1018, -inf
        %1023 = vmax.xlane.f32.xlu0 %v1022
        %v1024 = vpop.xlane.xlu0 %1023
        %v1025 = vsub.f32 %v1018, %v1024
        %v1026 = vmul.f32 %v1025, 1.442695
        %v1027 = vpow.pop %v1026
        %v1028 = vsel %vm1021, %v1027, 0.0
        %1029 = vadd.xlane.f32.xlu0 %v1028
        %v1030 = vpop.xlane.xlu0 %1029
        %v1031 = vrcp.pop %v1030
        %v1032 = vmul.f32 %v1027, %v1031
        %1033 = vst.msk [vmem:[%s686] sm:$0xff] %vm1021, %v1032
        %v1035 = vsel %vm1021, %v1032, 0
        %1037 = vmatprep.subr.mxu0 0.0
        %1038 = vmatpush1.msra.mxu0 0.0
        %1039 = vmatprep.subr.mxu0 0.0
        %1040 = vmatpush1.msra.mxu0 0.0
        %1041 = vmatprep.subr.mxu0 0.0
        %1042 = vmatpush1.msra.mxu0 0.0
        %1043 = vmatprep.subr.mxu0 0.0
        %1044 = vmatpush1.msra.mxu0 0.0
        %1045 = vmatprep.subr.mxu0 0.0
        %1046 = vmatpush1.msra.mxu0 0.0
        %1047 = vmatprep.subr.mxu0 0.0
        %1048 = vmatpush1.msra.mxu0 0.0
        %1049 = vmatprep.subr.mxu0 0.0
        %1050 = vmatpush1.msra.mxu0 0.0
        %1051 = vmatprep.subr.mxu0 0.0
        %1052 = vmatpush1.msra.mxu0 0.0
        %1053 = vmatprep.subr.mxu0 0.0
        %1054 = vmatpush1.msra.mxu0 0.0
        %1055 = vmatprep.subr.mxu0 0.0
        %1056 = vmatpush1.msra.mxu0 0.0
        %1057 = vmatprep.subr.mxu0 0.0
        %1058 = vmatpush1.msra.mxu0 0.0
        %1059 = vmatprep.subr.mxu0 0.0
        %1060 = vmatpush1.msra.mxu0 0.0
        %1061 = vmatprep.subr.mxu0 0.0
        %1062 = vmatpush1.msra.mxu0 0.0
        %1063 = vmatprep.subr.mxu0 0.0
        %1064 = vmatpush1.msra.mxu0 0.0
        %1065 = vmatprep.subr.mxu0 0.0
        %1066 = vmatpush1.msra.mxu0 0.0
        %1067 = vmatprep.subr.mxu0 0.0
        %1068 = vmatpush1.msra.mxu0 %v941
        %1069 = vmatprep.subr.mxu0 0.0
        %1070 = vmatpush2.msra.mxu0 0.0
        %1071 = vmatprep.subr.mxu0 0.0
        %1072 = vmatpush2.msra.mxu0 0.0
        %1073 = vmatprep.subr.mxu0 0.0
        %1074 = vmatpush2.msra.mxu0 0.0
        %1075 = vmatprep.subr.mxu0 0.0
        %1076 = vmatpush2.msra.mxu0 0.0
        %1077 = vmatprep.subr.mxu0 0.0
        %1078 = vmatpush2.msra.mxu0 0.0
        %1079 = vmatprep.subr.mxu0 0.0
        %1080 = vmatpush2.msra.mxu0 0.0
        %1081 = vmatprep.subr.mxu0 0.0
        %1082 = vmatpush2.msra.mxu0 0.0
        %1083 = vmatprep.subr.mxu0 0.0
        %1084 = vmatpush2.msra.mxu0 0.0
        %1085 = vmatprep.subr.mxu0 0.0
        %1086 = vmatpush2.msra.mxu0 0.0
        %1087 = vmatprep.subr.mxu0 0.0
        %1088 = vmatpush2.msra.mxu0 0.0
        %1089 = vmatprep.subr.mxu0 0.0
        %1090 = vmatpush2.msra.mxu0 0.0
        %1091 = vmatprep.subr.mxu0 0.0
        %1092 = vmatpush2.msra.mxu0 0.0
        %1093 = vmatprep.subr.mxu0 0.0
        %1094 = vmatpush2.msra.mxu0 0.0
        %1095 = vmatprep.subr.mxu0 0.0
        %1096 = vmatpush2.msra.mxu0 0.0
        %1097 = vmatprep.subr.mxu0 0.0
        %1098 = vmatpush2.msra.mxu0 0.0
        %1099 = vmatprep.subr.mxu0 0.0
        %1100 = vmatpush2.msra.mxu0 0.0
        %1101 = vmatprep.mubr.f32.mxu0 0.0
        %1102 = vmatmul.mubr.f32.gmra.mxu0 %v1035
        %v1103 = vpop.f32.mrf.mxu0
        %v1104 = vadd.f32 0.0, %v1103
        %v1105 = vpop.f32.mrf.mxu0
        %1106 = vdwg.mxu0
        %1107 = vst.msk [vmem:[#allocation2] sm:$0xff] %vm944, %v1104
        %1108 = vrot.lane.b32.xlu0 %v775, 124
        %v1109 = vpop.permute.xlu0 %1108
        %1110 = vrot.lane.b32.xlu0 %v857, 124
        %v1111 = vpop.permute.xlu0 %1110
        %v1112 = vsel %vm944, %v1109, 0
        %v1114 = vsel %vm944, %v1111, 0
        %1116 = vmatprep.subr.mxu0 0.0
        %1117 = vmatpush1.xpose.msra.mxu0 0.0
        %1118 = vmatprep.subr.mxu0 0.0
        %1119 = vmatpush1.xpose.msra.mxu0 0.0
        %1120 = vmatprep.subr.mxu0 0.0
        %1121 = vmatpush1.xpose.msra.mxu0 0.0
        %1122 = vmatprep.subr.mxu0 0.0
        %1123 = vmatpush1.xpose.msra.mxu0 0.0
        %1124 = vmatprep.subr.mxu0 0.0
        %1125 = vmatpush1.xpose.msra.mxu0 0.0
        %1126 = vmatprep.subr.mxu0 0.0
        %1127 = vmatpush1.xpose.msra.mxu0 0.0
        %1128 = vmatprep.subr.mxu0 0.0
        %1129 = vmatpush1.xpose.msra.mxu0 0.0
        %1130 = vmatprep.subr.mxu0 0.0
        %1131 = vmatpush1.xpose.msra.mxu0 0.0
        %1132 = vmatprep.subr.mxu0 0.0
        %1133 = vmatpush1.xpose.msra.mxu0 0.0
        %1134 = vmatprep.subr.mxu0 0.0
        %1135 = vmatpush1.xpose.msra.mxu0 0.0
        %1136 = vmatprep.subr.mxu0 0.0
        %1137 = vmatpush1.xpose.msra.mxu0 0.0
        %1138 = vmatprep.subr.mxu0 0.0
        %1139 = vmatpush1.xpose.msra.mxu0 0.0
        %1140 = vmatprep.subr.mxu0 0.0
        %1141 = vmatpush1.xpose.msra.mxu0 0.0
        %1142 = vmatprep.subr.mxu0 0.0
        %1143 = vmatpush1.xpose.msra.mxu0 0.0
        %1144 = vmatprep.subr.mxu0 0.0
        %1145 = vmatpush1.xpose.msra.mxu0 0.0
        %1146 = vmatprep.subr.mxu0 0.0
        %1147 = vmatpush1.xpose.msra.mxu0 %v1114
        %1148 = vmatprep.subr.mxu0 0.0
        %1149 = vmatpush2.xpose.msra.mxu0 0.0
        %1150 = vmatprep.subr.mxu0 0.0
        %1151 = vmatpush2.xpose.msra.mxu0 0.0
        %1152 = vmatprep.subr.mxu0 0.0
        %1153 = vmatpush2.xpose.msra.mxu0 0.0
        %1154 = vmatprep.subr.mxu0 0.0
        %1155 = vmatpush2.xpose.msra.mxu0 0.0
        %1156 = vmatprep.subr.mxu0 0.0
        %1157 = vmatpush2.xpose.msra.mxu0 0.0
        %1158 = vmatprep.subr.mxu0 0.0
        %1159 = vmatpush2.xpose.msra.mxu0 0.0
        %1160 = vmatprep.subr.mxu0 0.0
        %1161 = vmatpush2.xpose.msra.mxu0 0.0
        %1162 = vmatprep.subr.mxu0 0.0
        %1163 = vmatpush2.xpose.msra.mxu0 0.0
        %1164 = vmatprep.subr.mxu0 0.0
        %1165 = vmatpush2.xpose.msra.mxu0 0.0
        %1166 = vmatprep.subr.mxu0 0.0
        %1167 = vmatpush2.xpose.msra.mxu0 0.0
        %1168 = vmatprep.subr.mxu0 0.0
        %1169 = vmatpush2.xpose.msra.mxu0 0.0
        %1170 = vmatprep.subr.mxu0 0.0
        %1171 = vmatpush2.xpose.msra.mxu0 0.0
        %1172 = vmatprep.subr.mxu0 0.0
        %1173 = vmatpush2.xpose.msra.mxu0 0.0
        %1174 = vmatprep.subr.mxu0 0.0
        %1175 = vmatpush2.xpose.msra.mxu0 0.0
        %1176 = vmatprep.subr.mxu0 0.0
        %1177 = vmatpush2.xpose.msra.mxu0 0.0
        %1178 = vmatprep.subr.mxu0 0.0
        %1179 = vmatpush2.xpose.msra.mxu0 0.0
        %1180 = vmatprep.mubr.f32.mxu0 0.0
        %1181 = vmatmul.mubr.f32.gmra.mxu0 %v1112
        %v1182 = vpop.f32.mrf.mxu0
        %v1183 = vadd.f32 0.0, %v1182
        %v1184 = vpop.f32.mrf.mxu0
        %1185 = vdwg.mxu0
        %v1186 = vsel %vm1021, %v1183, -inf
        %1187 = vmax.xlane.f32.xlu0 %v1186
        %v1188 = vpop.xlane.xlu0 %1187
        %v1189 = vsub.f32 %v1183, %v1188
        %v1190 = vmul.f32 %v1189, 1.442695
        %v1191 = vpow.pop %v1190
        %v1192 = vsel %vm1021, %v1191, 0.0
        %1193 = vadd.xlane.f32.xlu0 %v1192
        %v1194 = vpop.xlane.xlu0 %1193
        %v1195 = vrcp.pop %v1194
        %v1196 = vmul.f32 %v1191, %v1195
        %s1197 = scalar_lea.vmem %s686, 8 [#allocation18]
        %1198 = vst.msk [vmem:[%s1197] sm:$0xff] %vm1021, %v1196
        %1200 = vrot.lane.b32.xlu0 %v941, 124
        %v1201 = vpop.permute.xlu0 %1200
        %v1204 = vsel %vm1021, %v1196, 0
        %1206 = vmatprep.subr.mxu0 0.0
        %1207 = vmatpush1.msra.mxu0 0.0
        %1208 = vmatprep.subr.mxu0 0.0
        %1209 = vmatpush1.msra.mxu0 0.0
        %1210 = vmatprep.subr.mxu0 0.0
        %1211 = vmatpush1.msra.mxu0 0.0
        %1212 = vmatprep.subr.mxu0 0.0
        %1213 = vmatpush1.msra.mxu0 0.0
        %1214 = vmatprep.subr.mxu0 0.0
        %1215 = vmatpush1.msra.mxu0 0.0
        %1216 = vmatprep.subr.mxu0 0.0
        %1217 = vmatpush1.msra.mxu0 0.0
        %1218 = vmatprep.subr.mxu0 0.0
        %1219 = vmatpush1.msra.mxu0 0.0
        %1220 = vmatprep.subr.mxu0 0.0
        %1221 = vmatpush1.msra.mxu0 0.0
        %1222 = vmatprep.subr.mxu0 0.0
        %1223 = vmatpush1.msra.mxu0 0.0
        %1224 = vmatprep.subr.mxu0 0.0
        %1225 = vmatpush1.msra.mxu0 0.0
        %1226 = vmatprep.subr.mxu0 0.0
        %1227 = vmatpush1.msra.mxu0 0.0
        %1228 = vmatprep.subr.mxu0 0.0
        %1229 = vmatpush1.msra.mxu0 0.0
        %1230 = vmatprep.subr.mxu0 0.0
        %1231 = vmatpush1.msra.mxu0 0.0
        %1232 = vmatprep.subr.mxu0 0.0
        %1233 = vmatpush1.msra.mxu0 0.0
        %1234 = vmatprep.subr.mxu0 0.0
        %1235 = vmatpush1.msra.mxu0 0.0
        %1236 = vmatprep.subr.mxu0 0.0
        %1237 = vmatpush1.msra.mxu0 %v1201
        %1238 = vmatprep.subr.mxu0 0.0
        %1239 = vmatpush2.msra.mxu0 0.0
        %1240 = vmatprep.subr.mxu0 0.0
        %1241 = vmatpush2.msra.mxu0 0.0
        %1242 = vmatprep.subr.mxu0 0.0
        %1243 = vmatpush2.msra.mxu0 0.0
        %1244 = vmatprep.subr.mxu0 0.0
        %1245 = vmatpush2.msra.mxu0 0.0
        %1246 = vmatprep.subr.mxu0 0.0
        %1247 = vmatpush2.msra.mxu0 0.0
        %1248 = vmatprep.subr.mxu0 0.0
        %1249 = vmatpush2.msra.mxu0 0.0
        %1250 = vmatprep.subr.mxu0 0.0
        %1251 = vmatpush2.msra.mxu0 0.0
        %1252 = vmatprep.subr.mxu0 0.0
        %1253 = vmatpush2.msra.mxu0 0.0
        %1254 = vmatprep.subr.mxu0 0.0
        %1255 = vmatpush2.msra.mxu0 0.0
        %1256 = vmatprep.subr.mxu0 0.0
        %1257 = vmatpush2.msra.mxu0 0.0
        %1258 = vmatprep.subr.mxu0 0.0
        %1259 = vmatpush2.msra.mxu0 0.0
        %1260 = vmatprep.subr.mxu0 0.0
        %1261 = vmatpush2.msra.mxu0 0.0
        %1262 = vmatprep.subr.mxu0 0.0
        %1263 = vmatpush2.msra.mxu0 0.0
        %1264 = vmatprep.subr.mxu0 0.0
        %1265 = vmatpush2.msra.mxu0 0.0
        %1266 = vmatprep.subr.mxu0 0.0
        %1267 = vmatpush2.msra.mxu0 0.0
        %1268 = vmatprep.subr.mxu0 0.0
        %1269 = vmatpush2.msra.mxu0 0.0
        %1270 = vmatprep.mubr.f32.mxu0 0.0
        %1271 = vmatmul.mubr.f32.gmra.mxu0 %v1204
        %v1272 = vpop.f32.mrf.mxu0
        %v1273 = vadd.f32 0.0, %v1272
        %v1274 = vpop.f32.mrf.mxu0
        %1275 = vdwg.mxu0
        %1277 = vrot.lane.b32.xlu0 %v1273, 4
        %v1278 = vpop.permute.xlu0 %1277
        %vm1280 = vcmask 64544
        %1281 = vst.msk [vmem:[#allocation2] sm:$0xff] %vm1280, %v1278
        %1282 = vrot.lane.b32.xlu0 %v775, 120
        %v1283 = vpop.permute.xlu0 %1282
        %1284 = vrot.lane.b32.xlu0 %v857, 120
        %v1285 = vpop.permute.xlu0 %1284
        %v1286 = vsel %vm944, %v1283, 0
        %v1288 = vsel %vm944, %v1285, 0
        %1290 = vmatprep.subr.mxu0 0.0
        %1291 = vmatpush1.xpose.msra.mxu0 0.0
        %1292 = vmatprep.subr.mxu0 0.0
        %1293 = vmatpush1.xpose.msra.mxu0 0.0
        %1294 = vmatprep.subr.mxu0 0.0
        %1295 = vmatpush1.xpose.msra.mxu0 0.0
        %1296 = vmatprep.subr.mxu0 0.0
        %1297 = vmatpush1.xpose.msra.mxu0 0.0
        %1298 = vmatprep.subr.mxu0 0.0
        %1299 = vmatpush1.xpose.msra.mxu0 0.0
        %1300 = vmatprep.subr.mxu0 0.0
        %1301 = vmatpush1.xpose.msra.mxu0 0.0
        %1302 = vmatprep.subr.mxu0 0.0
        %1303 = vmatpush1.xpose.msra.mxu0 0.0
        %1304 = vmatprep.subr.mxu0 0.0
        %1305 = vmatpush1.xpose.msra.mxu0 0.0
        %1306 = vmatprep.subr.mxu0 0.0
        %1307 = vmatpush1.xpose.msra.mxu0 0.0
        %1308 = vmatprep.subr.mxu0 0.0
        %1309 = vmatpush1.xpose.msra.mxu0 0.0
        %1310 = vmatprep.subr.mxu0 0.0
        %1311 = vmatpush1.xpose.msra.mxu0 0.0
        %1312 = vmatprep.subr.mxu0 0.0
        %1313 = vmatpush1.xpose.msra.mxu0 0.0
        %1314 = vmatprep.subr.mxu0 0.0
        %1315 = vmatpush1.xpose.msra.mxu0 0.0
        %1316 = vmatprep.subr.mxu0 0.0
        %1317 = vmatpush1.xpose.msra.mxu0 0.0
        %1318 = vmatprep.subr.mxu0 0.0
        %1319 = vmatpush1.xpose.msra.mxu0 0.0
        %1320 = vmatprep.subr.mxu0 0.0
        %1321 = vmatpush1.xpose.msra.mxu0 %v1288
        %1322 = vmatprep.subr.mxu0 0.0
        %1323 = vmatpush2.xpose.msra.mxu0 0.0
        %1324 = vmatprep.subr.mxu0 0.0
        %1325 = vmatpush2.xpose.msra.mxu0 0.0
        %1326 = vmatprep.subr.mxu0 0.0
        %1327 = vmatpush2.xpose.msra.mxu0 0.0
        %1328 = vmatprep.subr.mxu0 0.0
        %1329 = vmatpush2.xpose.msra.mxu0 0.0
        %1330 = vmatprep.subr.mxu0 0.0
        %1331 = vmatpush2.xpose.msra.mxu0 0.0
        %1332 = vmatprep.subr.mxu0 0.0
        %1333 = vmatpush2.xpose.msra.mxu0 0.0
        %1334 = vmatprep.subr.mxu0 0.0
        %1335 = vmatpush2.xpose.msra.mxu0 0.0
        %1336 = vmatprep.subr.mxu0 0.0
        %1337 = vmatpush2.xpose.msra.mxu0 0.0
        %1338 = vmatprep.subr.mxu0 0.0
        %1339 = vmatpush2.xpose.msra.mxu0 0.0
        %1340 = vmatprep.subr.mxu0 0.0
        %1341 = vmatpush2.xpose.msra.mxu0 0.0
        %1342 = vmatprep.subr.mxu0 0.0
        %1343 = vmatpush2.xpose.msra.mxu0 0.0
        %1344 = vmatprep.subr.mxu0 0.0
        %1345 = vmatpush2.xpose.msra.mxu0 0.0
        %1346 = vmatprep.subr.mxu0 0.0
        %1347 = vmatpush2.xpose.msra.mxu0 0.0
        %1348 = vmatprep.subr.mxu0 0.0
        %1349 = vmatpush2.xpose.msra.mxu0 0.0
        %1350 = vmatprep.subr.mxu0 0.0
        %1351 = vmatpush2.xpose.msra.mxu0 0.0
        %1352 = vmatprep.subr.mxu0 0.0
        %1353 = vmatpush2.xpose.msra.mxu0 0.0
        %1354 = vmatprep.mubr.f32.mxu0 0.0
        %1355 = vmatmul.mubr.f32.gmra.mxu0 %v1286
        %v1356 = vpop.f32.mrf.mxu0
        %v1357 = vadd.f32 0.0, %v1356
        %v1358 = vpop.f32.mrf.mxu0
        %1359 = vdwg.mxu0
        %v1360 = vsel %vm1021, %v1357, -inf
        %1361 = vmax.xlane.f32.xlu0 %v1360
        %v1362 = vpop.xlane.xlu0 %1361
        %v1363 = vsub.f32 %v1357, %v1362
        %v1364 = vmul.f32 %v1363, 1.442695
        %v1365 = vpow.pop %v1364
        %v1366 = vsel %vm1021, %v1365, 0.0
        %1367 = vadd.xlane.f32.xlu0 %v1366
        %v1368 = vpop.xlane.xlu0 %1367
        %v1369 = vrcp.pop %v1368
        %v1370 = vmul.f32 %v1365, %v1369
        %s1371 = scalar_lea.vmem %s686, 16 [#allocation18]
        %1372 = vst.msk [vmem:[%s1371] sm:$0xff] %vm1021, %v1370
        %1373 = vrot.lane.b32.xlu0 %v941, 120
        %v1374 = vpop.permute.xlu0 %1373
        %v1377 = vsel %vm1021, %v1370, 0
        %1379 = vmatprep.subr.mxu0 0.0
        %1380 = vmatpush1.msra.mxu0 0.0
        %1381 = vmatprep.subr.mxu0 0.0
        %1382 = vmatpush1.msra.mxu0 0.0
        %1383 = vmatprep.subr.mxu0 0.0
        %1384 = vmatpush1.msra.mxu0 0.0
        %1385 = vmatprep.subr.mxu0 0.0
        %1386 = vmatpush1.msra.mxu0 0.0
        %1387 = vmatprep.subr.mxu0 0.0
        %1388 = vmatpush1.msra.mxu0 0.0
        %1389 = vmatprep.subr.mxu0 0.0
        %1390 = vmatpush1.msra.mxu0 0.0
        %1391 = vmatprep.subr.mxu0 0.0
        %1392 = vmatpush1.msra.mxu0 0.0
        %1393 = vmatprep.subr.mxu0 0.0
        %1394 = vmatpush1.msra.mxu0 0.0
        %1395 = vmatprep.subr.mxu0 0.0
        %1396 = vmatpush1.msra.mxu0 0.0
        %1397 = vmatprep.subr.mxu0 0.0
        %1398 = vmatpush1.msra.mxu0 0.0
        %1399 = vmatprep.subr.mxu0 0.0
        %1400 = vmatpush1.msra.mxu0 0.0
        %1401 = vmatprep.subr.mxu0 0.0
        %1402 = vmatpush1.msra.mxu0 0.0
        %1403 = vmatprep.subr.mxu0 0.0
        %1404 = vmatpush1.msra.mxu0 0.0
        %1405 = vmatprep.subr.mxu0 0.0
        %1406 = vmatpush1.msra.mxu0 0.0
        %1407 = vmatprep.subr.mxu0 0.0
        %1408 = vmatpush1.msra.mxu0 0.0
        %1409 = vmatprep.subr.mxu0 0.0
        %1410 = vmatpush1.msra.mxu0 %v1374
        %1411 = vmatprep.subr.mxu0 0.0
        %1412 = vmatpush2.msra.mxu0 0.0
        %1413 = vmatprep.subr.mxu0 0.0
        %1414 = vmatpush2.msra.mxu0 0.0
        %1415 = vmatprep.subr.mxu0 0.0
        %1416 = vmatpush2.msra.mxu0 0.0
        %1417 = vmatprep.subr.mxu0 0.0
        %1418 = vmatpush2.msra.mxu0 0.0
        %1419 = vmatprep.subr.mxu0 0.0
        %1420 = vmatpush2.msra.mxu0 0.0
        %1421 = vmatprep.subr.mxu0 0.0
        %1422 = vmatpush2.msra.mxu0 0.0
        %1423 = vmatprep.subr.mxu0 0.0
        %1424 = vmatpush2.msra.mxu0 0.0
        %1425 = vmatprep.subr.mxu0 0.0
        %1426 = vmatpush2.msra.mxu0 0.0
        %1427 = vmatprep.subr.mxu0 0.0
        %1428 = vmatpush2.msra.mxu0 0.0
        %1429 = vmatprep.subr.mxu0 0.0
        %1430 = vmatpush2.msra.mxu0 0.0
        %1431 = vmatprep.subr.mxu0 0.0
        %1432 = vmatpush2.msra.mxu0 0.0
        %1433 = vmatprep.subr.mxu0 0.0
        %1434 = vmatpush2.msra.mxu0 0.0
        %1435 = vmatprep.subr.mxu0 0.0
        %1436 = vmatpush2.msra.mxu0 0.0
        %1437 = vmatprep.subr.mxu0 0.0
        %1438 = vmatpush2.msra.mxu0 0.0
        %1439 = vmatprep.subr.mxu0 0.0
        %1440 = vmatpush2.msra.mxu0 0.0
        %1441 = vmatprep.subr.mxu0 0.0
        %1442 = vmatpush2.msra.mxu0 0.0
        %1443 = vmatprep.mubr.f32.mxu0 0.0
        %1444 = vmatmul.mubr.f32.gmra.mxu0 %v1377
        %v1445 = vpop.f32.mrf.mxu0
        %v1446 = vadd.f32 0.0, %v1445
        %v1447 = vpop.f32.mrf.mxu0
        %1448 = vdwg.mxu0
        %1450 = vrot.lane.b32.xlu0 %v1446, 8
        %v1451 = vpop.permute.xlu0 %1450
        %vm1453 = vcmask 97344
        %1454 = vst.msk [vmem:[#allocation2] sm:$0xff] %vm1453, %v1451
        %1455 = vrot.lane.b32.xlu0 %v775, 116
        %v1456 = vpop.permute.xlu0 %1455
        %1457 = vrot.lane.b32.xlu0 %v857, 116
        %v1458 = vpop.permute.xlu0 %1457
        %v1459 = vsel %vm944, %v1456, 0
        %v1461 = vsel %vm944, %v1458, 0
        %1463 = vmatprep.subr.mxu0 0.0
        %1464 = vmatpush1.xpose.msra.mxu0 0.0
        %1465 = vmatprep.subr.mxu0 0.0
        %1466 = vmatpush1.xpose.msra.mxu0 0.0
        %1467 = vmatprep.subr.mxu0 0.0
        %1468 = vmatpush1.xpose.msra.mxu0 0.0
        %1469 = vmatprep.subr.mxu0 0.0
        %1470 = vmatpush1.xpose.msra.mxu0 0.0
        %1471 = vmatprep.subr.mxu0 0.0
        %1472 = vmatpush1.xpose.msra.mxu0 0.0
        %1473 = vmatprep.subr.mxu0 0.0
        %1474 = vmatpush1.xpose.msra.mxu0 0.0
        %1475 = vmatprep.subr.mxu0 0.0
        %1476 = vmatpush1.xpose.msra.mxu0 0.0
        %1477 = vmatprep.subr.mxu0 0.0
        %1478 = vmatpush1.xpose.msra.mxu0 0.0
        %1479 = vmatprep.subr.mxu0 0.0
        %1480 = vmatpush1.xpose.msra.mxu0 0.0
        %1481 = vmatprep.subr.mxu0 0.0
        %1482 = vmatpush1.xpose.msra.mxu0 0.0
        %1483 = vmatprep.subr.mxu0 0.0
        %1484 = vmatpush1.xpose.msra.mxu0 0.0
        %1485 = vmatprep.subr.mxu0 0.0
        %1486 = vmatpush1.xpose.msra.mxu0 0.0
        %1487 = vmatprep.subr.mxu0 0.0
        %1488 = vmatpush1.xpose.msra.mxu0 0.0
        %1489 = vmatprep.subr.mxu0 0.0
        %1490 = vmatpush1.xpose.msra.mxu0 0.0
        %1491 = vmatprep.subr.mxu0 0.0
        %1492 = vmatpush1.xpose.msra.mxu0 0.0
        %1493 = vmatprep.subr.mxu0 0.0
        %1494 = vmatpush1.xpose.msra.mxu0 %v1461
        %1495 = vmatprep.subr.mxu0 0.0
        %1496 = vmatpush2.xpose.msra.mxu0 0.0
        %1497 = vmatprep.subr.mxu0 0.0
        %1498 = vmatpush2.xpose.msra.mxu0 0.0
        %1499 = vmatprep.subr.mxu0 0.0
        %1500 = vmatpush2.xpose.msra.mxu0 0.0
        %1501 = vmatprep.subr.mxu0 0.0
        %1502 = vmatpush2.xpose.msra.mxu0 0.0
        %1503 = vmatprep.subr.mxu0 0.0
        %1504 = vmatpush2.xpose.msra.mxu0 0.0
        %1505 = vmatprep.subr.mxu0 0.0
        %1506 = vmatpush2.xpose.msra.mxu0 0.0
        %1507 = vmatprep.subr.mxu0 0.0
        %1508 = vmatpush2.xpose.msra.mxu0 0.0
        %1509 = vmatprep.subr.mxu0 0.0
        %1510 = vmatpush2.xpose.msra.mxu0 0.0
        %1511 = vmatprep.subr.mxu0 0.0
        %1512 = vmatpush2.xpose.msra.mxu0 0.0
        %1513 = vmatprep.subr.mxu0 0.0
        %1514 = vmatpush2.xpose.msra.mxu0 0.0
        %1515 = vmatprep.subr.mxu0 0.0
        %1516 = vmatpush2.xpose.msra.mxu0 0.0
        %1517 = vmatprep.subr.mxu0 0.0
        %1518 = vmatpush2.xpose.msra.mxu0 0.0
        %1519 = vmatprep.subr.mxu0 0.0
        %1520 = vmatpush2.xpose.msra.mxu0 0.0
        %1521 = vmatprep.subr.mxu0 0.0
        %1522 = vmatpush2.xpose.msra.mxu0 0.0
        %1523 = vmatprep.subr.mxu0 0.0
        %1524 = vmatpush2.xpose.msra.mxu0 0.0
        %1525 = vmatprep.subr.mxu0 0.0
        %1526 = vmatpush2.xpose.msra.mxu0 0.0
        %1527 = vmatprep.mubr.f32.mxu0 0.0
        %1528 = vmatmul.mubr.f32.gmra.mxu0 %v1459
        %v1529 = vpop.f32.mrf.mxu0
        %v1530 = vadd.f32 0.0, %v1529
        %v1531 = vpop.f32.mrf.mxu0
        %1532 = vdwg.mxu0
        %v1533 = vsel %vm1021, %v1530, -inf
        %1534 = vmax.xlane.f32.xlu0 %v1533
        %v1535 = vpop.xlane.xlu0 %1534
        %v1536 = vsub.f32 %v1530, %v1535
        %v1537 = vmul.f32 %v1536, 1.442695
        %v1538 = vpow.pop %v1537
        %v1539 = vsel %vm1021, %v1538, 0.0
        %1540 = vadd.xlane.f32.xlu0 %v1539
        %v1541 = vpop.xlane.xlu0 %1540
        %v1542 = vrcp.pop %v1541
        %v1543 = vmul.f32 %v1538, %v1542
        %s1544 = scalar_lea.vmem %s686, 24 [#allocation18]
        %1545 = vst.msk [vmem:[%s1544] sm:$0xff] %vm1021, %v1543
        %1546 = vrot.lane.b32.xlu0 %v941, 116
        %v1547 = vpop.permute.xlu0 %1546
        %v1550 = vsel %vm1021, %v1543, 0
        %1552 = vmatprep.subr.mxu0 0.0
        %1553 = vmatpush1.msra.mxu0 0.0
        %1554 = vmatprep.subr.mxu0 0.0
        %1555 = vmatpush1.msra.mxu0 0.0
        %1556 = vmatprep.subr.mxu0 0.0
        %1557 = vmatpush1.msra.mxu0 0.0
        %1558 = vmatprep.subr.mxu0 0.0
        %1559 = vmatpush1.msra.mxu0 0.0
        %1560 = vmatprep.subr.mxu0 0.0
        %1561 = vmatpush1.msra.mxu0 0.0
        %1562 = vmatprep.subr.mxu0 0.0
        %1563 = vmatpush1.msra.mxu0 0.0
        %1564 = vmatprep.subr.mxu0 0.0
        %1565 = vmatpush1.msra.mxu0 0.0
        %1566 = vmatprep.subr.mxu0 0.0
        %1567 = vmatpush1.msra.mxu0 0.0
        %1568 = vmatprep.subr.mxu0 0.0
        %1569 = vmatpush1.msra.mxu0 0.0
        %1570 = vmatprep.subr.mxu0 0.0
        %1571 = vmatpush1.msra.mxu0 0.0
        %1572 = vmatprep.subr.mxu0 0.0
        %1573 = vmatpush1.msra.mxu0 0.0
        %1574 = vmatprep.subr.mxu0 0.0
        %1575 = vmatpush1.msra.mxu0 0.0
        %1576 = vmatprep.subr.mxu0 0.0
        %1577 = vmatpush1.msra.mxu0 0.0
        %1578 = vmatprep.subr.mxu0 0.0
        %1579 = vmatpush1.msra.mxu0 0.0
        %1580 = vmatprep.subr.mxu0 0.0
        %1581 = vmatpush1.msra.mxu0 0.0
        %1582 = vmatprep.subr.mxu0 0.0
        %1583 = vmatpush1.msra.mxu0 %v1547
        %1584 = vmatprep.subr.mxu0 0.0
        %1585 = vmatpush2.msra.mxu0 0.0
        %1586 = vmatprep.subr.mxu0 0.0
        %1587 = vmatpush2.msra.mxu0 0.0
        %1588 = vmatprep.subr.mxu0 0.0
        %1589 = vmatpush2.msra.mxu0 0.0
        %1590 = vmatprep.subr.mxu0 0.0
        %1591 = vmatpush2.msra.mxu0 0.0
        %1592 = vmatprep.subr.mxu0 0.0
        %1593 = vmatpush2.msra.mxu0 0.0
        %1594 = vmatprep.subr.mxu0 0.0
        %1595 = vmatpush2.msra.mxu0 0.0
        %1596 = vmatprep.subr.mxu0 0.0
        %1597 = vmatpush2.msra.mxu0 0.0
        %1598 = vmatprep.subr.mxu0 0.0
        %1599 = vmatpush2.msra.mxu0 0.0
        %1600 = vmatprep.subr.mxu0 0.0
        %1601 = vmatpush2.msra.mxu0 0.0
        %1602 = vmatprep.subr.mxu0 0.0
        %1603 = vmatpush2.msra.mxu0 0.0
        %1604 = vmatprep.subr.mxu0 0.0
        %1605 = vmatpush2.msra.mxu0 0.0
        %1606 = vmatprep.subr.mxu0 0.0
        %1607 = vmatpush2.msra.mxu0 0.0
        %1608 = vmatprep.subr.mxu0 0.0
        %1609 = vmatpush2.msra.mxu0 0.0
        %1610 = vmatprep.subr.mxu0 0.0
        %1611 = vmatpush2.msra.mxu0 0.0
        %1612 = vmatprep.subr.mxu0 0.0
        %1613 = vmatpush2.msra.mxu0 0.0
        %1614 = vmatprep.subr.mxu0 0.0
        %1615 = vmatpush2.msra.mxu0 0.0
        %1616 = vmatprep.mubr.f32.mxu0 0.0
        %1617 = vmatmul.mubr.f32.gmra.mxu0 %v1550
        %v1618 = vpop.f32.mrf.mxu0
        %v1619 = vadd.f32 0.0, %v1618
        %v1620 = vpop.f32.mrf.mxu0
        %1621 = vdwg.mxu0
        %1623 = vrot.lane.b32.xlu0 %v1619, 12
        %v1624 = vpop.permute.xlu0 %1623
        %vm1626 = vcmask 130144
        %1627 = vst.msk [vmem:[#allocation2] sm:$0xff] %vm1626, %v1624
        %1628 = vrot.lane.b32.xlu0 %v775, 112
        %v1629 = vpop.permute.xlu0 %1628
        %1630 = vrot.lane.b32.xlu0 %v857, 112
        %v1631 = vpop.permute.xlu0 %1630
        %v1632 = vsel %vm944, %v1629, 0
        %v1634 = vsel %vm944, %v1631, 0
        %1636 = vmatprep.subr.mxu0 0.0
        %1637 = vmatpush1.xpose.msra.mxu0 0.0
        %1638 = vmatprep.subr.mxu0 0.0
        %1639 = vmatpush1.xpose.msra.mxu0 0.0
        %1640 = vmatprep.subr.mxu0 0.0
        %1641 = vmatpush1.xpose.msra.mxu0 0.0
        %1642 = vmatprep.subr.mxu0 0.0
        %1643 = vmatpush1.xpose.msra.mxu0 0.0
        %1644 = vmatprep.subr.mxu0 0.0
        %1645 = vmatpush1.xpose.msra.mxu0 0.0
        %1646 = vmatprep.subr.mxu0 0.0
        %1647 = vmatpush1.xpose.msra.mxu0 0.0
        %1648 = vmatprep.subr.mxu0 0.0
        %1649 = vmatpush1.xpose.msra.mxu0 0.0
        %1650 = vmatprep.subr.mxu0 0.0
        %1651 = vmatpush1.xpose.msra.mxu0 0.0
        %1652 = vmatprep.subr.mxu0 0.0
        %1653 = vmatpush1.xpose.msra.mxu0 0.0
        %1654 = vmatprep.subr.mxu0 0.0
        %1655 = vmatpush1.xpose.msra.mxu0 0.0
        %1656 = vmatprep.subr.mxu0 0.0
        %1657 = vmatpush1.xpose.msra.mxu0 0.0
        %1658 = vmatprep.subr.mxu0 0.0
        %1659 = vmatpush1.xpose.msra.mxu0 0.0
        %1660 = vmatprep.subr.mxu0 0.0
        %1661 = vmatpush1.xpose.msra.mxu0 0.0
        %1662 = vmatprep.subr.mxu0 0.0
        %1663 = vmatpush1.xpose.msra.mxu0 0.0
        %1664 = vmatprep.subr.mxu0 0.0
        %1665 = vmatpush1.xpose.msra.mxu0 0.0
        %1666 = vmatprep.subr.mxu0 0.0
        %1667 = vmatpush1.xpose.msra.mxu0 %v1634
        %1668 = vmatprep.subr.mxu0 0.0
        %1669 = vmatpush2.xpose.msra.mxu0 0.0
        %1670 = vmatprep.subr.mxu0 0.0
        %1671 = vmatpush2.xpose.msra.mxu0 0.0
        %1672 = vmatprep.subr.mxu0 0.0
        %1673 = vmatpush2.xpose.msra.mxu0 0.0
        %1674 = vmatprep.subr.mxu0 0.0
        %1675 = vmatpush2.xpose.msra.mxu0 0.0
        %1676 = vmatprep.subr.mxu0 0.0
        %1677 = vmatpush2.xpose.msra.mxu0 0.0
        %1678 = vmatprep.subr.mxu0 0.0
        %1679 = vmatpush2.xpose.msra.mxu0 0.0
        %1680 = vmatprep.subr.mxu0 0.0
        %1681 = vmatpush2.xpose.msra.mxu0 0.0
        %1682 = vmatprep.subr.mxu0 0.0
        %1683 = vmatpush2.xpose.msra.mxu0 0.0
        %1684 = vmatprep.subr.mxu0 0.0
        %1685 = vmatpush2.xpose.msra.mxu0 0.0
        %1686 = vmatprep.subr.mxu0 0.0
        %1687 = vmatpush2.xpose.msra.mxu0 0.0
        %1688 = vmatprep.subr.mxu0 0.0
        %1689 = vmatpush2.xpose.msra.mxu0 0.0
        %1690 = vmatprep.subr.mxu0 0.0
        %1691 = vmatpush2.xpose.msra.mxu0 0.0
        %1692 = vmatprep.subr.mxu0 0.0
        %1693 = vmatpush2.xpose.msra.mxu0 0.0
        %1694 = vmatprep.subr.mxu0 0.0
        %1695 = vmatpush2.xpose.msra.mxu0 0.0
        %1696 = vmatprep.subr.mxu0 0.0
        %1697 = vmatpush2.xpose.msra.mxu0 0.0
        %1698 = vmatprep.subr.mxu0 0.0
        %1699 = vmatpush2.xpose.msra.mxu0 0.0
        %1700 = vmatprep.mubr.f32.mxu0 0.0
        %1701 = vmatmul.mubr.f32.gmra.mxu0 %v1632
        %v1702 = vpop.f32.mrf.mxu0
        %v1703 = vadd.f32 0.0, %v1702
        %v1704 = vpop.f32.mrf.mxu0
        %1705 = vdwg.mxu0
        %v1706 = vsel %vm1021, %v1703, -inf
        %1707 = vmax.xlane.f32.xlu0 %v1706
        %v1708 = vpop.xlane.xlu0 %1707
        %v1709 = vsub.f32 %v1703, %v1708
        %v1710 = vmul.f32 %v1709, 1.442695
        %v1711 = vpow.pop %v1710
        %v1712 = vsel %vm1021, %v1711, 0.0
        %1713 = vadd.xlane.f32.xlu0 %v1712
        %v1714 = vpop.xlane.xlu0 %1713
        %v1715 = vrcp.pop %v1714
        %v1716 = vmul.f32 %v1711, %v1715
        %s1717 = scalar_lea.vmem %s686, 32 [#allocation18]
        %1718 = vst.msk [vmem:[%s1717] sm:$0xff] %vm1021, %v1716
        %1719 = vrot.lane.b32.xlu0 %v941, 112
        %v1720 = vpop.permute.xlu0 %1719
        %v1723 = vsel %vm1021, %v1716, 0
        %1725 = vmatprep.subr.mxu0 0.0
        %1726 = vmatpush1.msra.mxu0 0.0
        %1727 = vmatprep.subr.mxu0 0.0
        %1728 = vmatpush1.msra.mxu0 0.0
        %1729 = vmatprep.subr.mxu0 0.0
        %1730 = vmatpush1.msra.mxu0 0.0
        %1731 = vmatprep.subr.mxu0 0.0
        %1732 = vmatpush1.msra.mxu0 0.0
        %1733 = vmatprep.subr.mxu0 0.0
        %1734 = vmatpush1.msra.mxu0 0.0
        %1735 = vmatprep.subr.mxu0 0.0
        %1736 = vmatpush1.msra.mxu0 0.0
        %1737 = vmatprep.subr.mxu0 0.0
        %1738 = vmatpush1.msra.mxu0 0.0
        %1739 = vmatprep.subr.mxu0 0.0
        %1740 = vmatpush1.msra.mxu0 0.0
        %1741 = vmatprep.subr.mxu0 0.0
        %1742 = vmatpush1.msra.mxu0 0.0
        %1743 = vmatprep.subr.mxu0 0.0
        %1744 = vmatpush1.msra.mxu0 0.0
        %1745 = vmatprep.subr.mxu0 0.0
        %1746 = vmatpush1.msra.mxu0 0.0
        %1747 = vmatprep.subr.mxu0 0.0
        %1748 = vmatpush1.msra.mxu0 0.0
        %1749 = vmatprep.subr.mxu0 0.0
        %1750 = vmatpush1.msra.mxu0 0.0
        %1751 = vmatprep.subr.mxu0 0.0
        %1752 = vmatpush1.msra.mxu0 0.0
        %1753 = vmatprep.subr.mxu0 0.0
        %1754 = vmatpush1.msra.mxu0 0.0
        %1755 = vmatprep.subr.mxu0 0.0
        %1756 = vmatpush1.msra.mxu0 %v1720
        %1757 = vmatprep.subr.mxu0 0.0
        %1758 = vmatpush2.msra.mxu0 0.0
        %1759 = vmatprep.subr.mxu0 0.0
        %1760 = vmatpush2.msra.mxu0 0.0
        %1761 = vmatprep.subr.mxu0 0.0
        %1762 = vmatpush2.msra.mxu0 0.0
        %1763 = vmatprep.subr.mxu0 0.0
        %1764 = vmatpush2.msra.mxu0 0.0
        %1765 = vmatprep.subr.mxu0 0.0
        %1766 = vmatpush2.msra.mxu0 0.0
        %1767 = vmatprep.subr.mxu0 0.0
        %1768 = vmatpush2.msra.mxu0 0.0
        %1769 = vmatprep.subr.mxu0 0.0
        %1770 = vmatpush2.msra.mxu0 0.0
        %1771 = vmatprep.subr.mxu0 0.0
        %1772 = vmatpush2.msra.mxu0 0.0
        %1773 = vmatprep.subr.mxu0 0.0
        %1774 = vmatpush2.msra.mxu0 0.0
        %1775 = vmatprep.subr.mxu0 0.0
        %1776 = vmatpush2.msra.mxu0 0.0
        %1777 = vmatprep.subr.mxu0 0.0
        %1778 = vmatpush2.msra.mxu0 0.0
        %1779 = vmatprep.subr.mxu0 0.0
        %1780 = vmatpush2.msra.mxu0 0.0
        %1781 = vmatprep.subr.mxu0 0.0
        %1782 = vmatpush2.msra.mxu0 0.0
        %1783 = vmatprep.subr.mxu0 0.0
        %1784 = vmatpush2.msra.mxu0 0.0
        %1785 = vmatprep.subr.mxu0 0.0
        %1786 = vmatpush2.msra.mxu0 0.0
        %1787 = vmatprep.subr.mxu0 0.0
        %1788 = vmatpush2.msra.mxu0 0.0
        %1789 = vmatprep.mubr.f32.mxu0 0.0
        %1790 = vmatmul.mubr.f32.gmra.mxu0 %v1723
        %v1791 = vpop.f32.mrf.mxu0
        %v1792 = vadd.f32 0.0, %v1791
        %v1793 = vpop.f32.mrf.mxu0
        %1794 = vdwg.mxu0
        %1796 = vrot.lane.b32.xlu0 %v1792, 16
        %v1797 = vpop.permute.xlu0 %1796
        %vm1799 = vcmask 162944
        %1800 = vst.msk [vmem:[#allocation2] sm:$0xff] %vm1799, %v1797
        %1801 = vrot.lane.b32.xlu0 %v775, 108
        %v1802 = vpop.permute.xlu0 %1801
        %1803 = vrot.lane.b32.xlu0 %v857, 108
        %v1804 = vpop.permute.xlu0 %1803
        %v1805 = vsel %vm944, %v1802, 0
        %v1807 = vsel %vm944, %v1804, 0
        %1809 = vmatprep.subr.mxu0 0.0
        %1810 = vmatpush1.xpose.msra.mxu0 0.0
        %1811 = vmatprep.subr.mxu0 0.0
        %1812 = vmatpush1.xpose.msra.mxu0 0.0
        %1813 = vmatprep.subr.mxu0 0.0
        %1814 = vmatpush1.xpose.msra.mxu0 0.0
        %1815 = vmatprep.subr.mxu0 0.0
        %1816 = vmatpush1.xpose.msra.mxu0 0.0
        %1817 = vmatprep.subr.mxu0 0.0
        %1818 = vmatpush1.xpose.msra.mxu0 0.0
        %1819 = vmatprep.subr.mxu0 0.0
        %1820 = vmatpush1.xpose.msra.mxu0 0.0
        %1821 = vmatprep.subr.mxu0 0.0
        %1822 = vmatpush1.xpose.msra.mxu0 0.0
        %1823 = vmatprep.subr.mxu0 0.0
        %1824 = vmatpush1.xpose.msra.mxu0 0.0
        %1825 = vmatprep.subr.mxu0 0.0
        %1826 = vmatpush1.xpose.msra.mxu0 0.0
        %1827 = vmatprep.subr.mxu0 0.0
        %1828 = vmatpush1.xpose.msra.mxu0 0.0
        %1829 = vmatprep.subr.mxu0 0.0
        %1830 = vmatpush1.xpose.msra.mxu0 0.0
        %1831 = vmatprep.subr.mxu0 0.0
        %1832 = vmatpush1.xpose.msra.mxu0 0.0
        %1833 = vmatprep.subr.mxu0 0.0
        %1834 = vmatpush1.xpose.msra.mxu0 0.0
        %1835 = vmatprep.subr.mxu0 0.0
        %1836 = vmatpush1.xpose.msra.mxu0 0.0
        %1837 = vmatprep.subr.mxu0 0.0
        %1838 = vmatpush1.xpose.msra.mxu0 0.0
        %1839 = vmatprep.subr.mxu0 0.0
        %1840 = vmatpush1.xpose.msra.mxu0 %v1807
        %1841 = vmatprep.subr.mxu0 0.0
        %1842 = vmatpush2.xpose.msra.mxu0 0.0
        %1843 = vmatprep.subr.mxu0 0.0
        %1844 = vmatpush2.xpose.msra.mxu0 0.0
        %1845 = vmatprep.subr.mxu0 0.0
        %1846 = vmatpush2.xpose.msra.mxu0 0.0
        %1847 = vmatprep.subr.mxu0 0.0
        %1848 = vmatpush2.xpose.msra.mxu0 0.0
        %1849 = vmatprep.subr.mxu0 0.0
        %1850 = vmatpush2.xpose.msra.mxu0 0.0
        %1851 = vmatprep.subr.mxu0 0.0
        %1852 = vmatpush2.xpose.msra.mxu0 0.0
        %1853 = vmatprep.subr.mxu0 0.0
        %1854 = vmatpush2.xpose.msra.mxu0 0.0
        %1855 = vmatprep.subr.mxu0 0.0
        %1856 = vmatpush2.xpose.msra.mxu0 0.0
        %1857 = vmatprep.subr.mxu0 0.0
        %1858 = vmatpush2.xpose.msra.mxu0 0.0
        %1859 = vmatprep.subr.mxu0 0.0
        %1860 = vmatpush2.xpose.msra.mxu0 0.0
        %1861 = vmatprep.subr.mxu0 0.0
        %1862 = vmatpush2.xpose.msra.mxu0 0.0
        %1863 = vmatprep.subr.mxu0 0.0
        %1864 = vmatpush2.xpose.msra.mxu0 0.0
        %1865 = vmatprep.subr.mxu0 0.0
        %1866 = vmatpush2.xpose.msra.mxu0 0.0
        %1867 = vmatprep.subr.mxu0 0.0
        %1868 = vmatpush2.xpose.msra.mxu0 0.0
        %1869 = vmatprep.subr.mxu0 0.0
        %1870 = vmatpush2.xpose.msra.mxu0 0.0
        %1871 = vmatprep.subr.mxu0 0.0
        %1872 = vmatpush2.xpose.msra.mxu0 0.0
        %1873 = vmatprep.mubr.f32.mxu0 0.0
        %1874 = vmatmul.mubr.f32.gmra.mxu0 %v1805
        %v1875 = vpop.f32.mrf.mxu0
        %v1876 = vadd.f32 0.0, %v1875
        %v1877 = vpop.f32.mrf.mxu0
        %1878 = vdwg.mxu0
        %v1879 = vsel %vm1021, %v1876, -inf
        %1880 = vmax.xlane.f32.xlu0 %v1879
        %v1881 = vpop.xlane.xlu0 %1880
        %v1882 = vsub.f32 %v1876, %v1881
        %v1883 = vmul.f32 %v1882, 1.442695
        %v1884 = vpow.pop %v1883
        %v1885 = vsel %vm1021, %v1884, 0.0
        %1886 = vadd.xlane.f32.xlu0 %v1885
        %v1887 = vpop.xlane.xlu0 %1886
        %v1888 = vrcp.pop %v1887
        %v1889 = vmul.f32 %v1884, %v1888
        %s1890 = scalar_lea.vmem %s686, 40 [#allocation18]
        %1891 = vst.msk [vmem:[%s1890] sm:$0xff] %vm1021, %v1889
        %1892 = vrot.lane.b32.xlu0 %v941, 108
        %v1893 = vpop.permute.xlu0 %1892
        %v1896 = vsel %vm1021, %v1889, 0
        %1898 = vmatprep.subr.mxu0 0.0
        %1899 = vmatpush1.msra.mxu0 0.0
        %1900 = vmatprep.subr.mxu0 0.0
        %1901 = vmatpush1.msra.mxu0 0.0
        %1902 = vmatprep.subr.mxu0 0.0
        %1903 = vmatpush1.msra.mxu0 0.0
        %1904 = vmatprep.subr.mxu0 0.0
        %1905 = vmatpush1.msra.mxu0 0.0
        %1906 = vmatprep.subr.mxu0 0.0
        %1907 = vmatpush1.msra.mxu0 0.0
        %1908 = vmatprep.subr.mxu0 0.0
        %1909 = vmatpush1.msra.mxu0 0.0
        %1910 = vmatprep.subr.mxu0 0.0
        %1911 = vmatpush1.msra.mxu0 0.0
        %1912 = vmatprep.subr.mxu0 0.0
        %1913 = vmatpush1.msra.mxu0 0.0
        %1914 = vmatprep.subr.mxu0 0.0
        %1915 = vmatpush1.msra.mxu0 0.0
        %1916 = vmatprep.subr.mxu0 0.0
        %1917 = vmatpush1.msra.mxu0 0.0
        %1918 = vmatprep.subr.mxu0 0.0
        %1919 = vmatpush1.msra.mxu0 0.0
        %1920 = vmatprep.subr.mxu0 0.0
        %1921 = vmatpush1.msra.mxu0 0.0
        %1922 = vmatprep.subr.mxu0 0.0
        %1923 = vmatpush1.msra.mxu0 0.0
        %1924 = vmatprep.subr.mxu0 0.0
        %1925 = vmatpush1.msra.mxu0 0.0
        %1926 = vmatprep.subr.mxu0 0.0
        %1927 = vmatpush1.msra.mxu0 0.0
        %1928 = vmatprep.subr.mxu0 0.0
        %1929 = vmatpush1.msra.mxu0 %v1893
        %1930 = vmatprep.subr.mxu0 0.0
        %1931 = vmatpush2.msra.mxu0 0.0
        %1932 = vmatprep.subr.mxu0 0.0
        %1933 = vmatpush2.msra.mxu0 0.0
        %1934 = vmatprep.subr.mxu0 0.0
        %1935 = vmatpush2.msra.mxu0 0.0
        %1936 = vmatprep.subr.mxu0 0.0
        %1937 = vmatpush2.msra.mxu0 0.0
        %1938 = vmatprep.subr.mxu0 0.0
        %1939 = vmatpush2.msra.mxu0 0.0
        %1940 = vmatprep.subr.mxu0 0.0
        %1941 = vmatpush2.msra.mxu0 0.0
        %1942 = vmatprep.subr.mxu0 0.0
        %1943 = vmatpush2.msra.mxu0 0.0
        %1944 = vmatprep.subr.mxu0 0.0
        %1945 = vmatpush2.msra.mxu0 0.0
        %1946 = vmatprep.subr.mxu0 0.0
        %1947 = vmatpush2.msra.mxu0 0.0
        %1948 = vmatprep.subr.mxu0 0.0
        %1949 = vmatpush2.msra.mxu0 0.0
        %1950 = vmatprep.subr.mxu0 0.0
        %1951 = vmatpush2.msra.mxu0 0.0
        %1952 = vmatprep.subr.mxu0 0.0
        %1953 = vmatpush2.msra.mxu0 0.0
        %1954 = vmatprep.subr.mxu0 0.0
        %1955 = vmatpush2.msra.mxu0 0.0
        %1956 = vmatprep.subr.mxu0 0.0
        %1957 = vmatpush2.msra.mxu0 0.0
        %1958 = vmatprep.subr.mxu0 0.0
        %1959 = vmatpush2.msra.mxu0 0.0
        %1960 = vmatprep.subr.mxu0 0.0
        %1961 = vmatpush2.msra.mxu0 0.0
        %1962 = vmatprep.mubr.f32.mxu0 0.0
        %1963 = vmatmul.mubr.f32.gmra.mxu0 %v1896
        %v1964 = vpop.f32.mrf.mxu0
        %v1965 = vadd.f32 0.0, %v1964
        %v1966 = vpop.f32.mrf.mxu0
        %1967 = vdwg.mxu0
        %1969 = vrot.lane.b32.xlu0 %v1965, 20
        %v1970 = vpop.permute.xlu0 %1969
        %vm1972 = vcmask 195744
        %1973 = vst.msk [vmem:[#allocation2] sm:$0xff] %vm1972, %v1970
        %1974 = vrot.lane.b32.xlu0 %v775, 104
        %v1975 = vpop.permute.xlu0 %1974
        %1976 = vrot.lane.b32.xlu0 %v857, 104
        %v1977 = vpop.permute.xlu0 %1976
        %v1978 = vsel %vm944, %v1975, 0
        %v1980 = vsel %vm944, %v1977, 0
        %1982 = vmatprep.subr.mxu0 0.0
        %1983 = vmatpush1.xpose.msra.mxu0 0.0
        %1984 = vmatprep.subr.mxu0 0.0
        %1985 = vmatpush1.xpose.msra.mxu0 0.0
        %1986 = vmatprep.subr.mxu0 0.0
        %1987 = vmatpush1.xpose.msra.mxu0 0.0
        %1988 = vmatprep.subr.mxu0 0.0
        %1989 = vmatpush1.xpose.msra.mxu0 0.0
        %1990 = vmatprep.subr.mxu0 0.0
        %1991 = vmatpush1.xpose.msra.mxu0 0.0
        %1992 = vmatprep.subr.mxu0 0.0
        %1993 = vmatpush1.xpose.msra.mxu0 0.0
        %1994 = vmatprep.subr.mxu0 0.0
        %1995 = vmatpush1.xpose.msra.mxu0 0.0
        %1996 = vmatprep.subr.mxu0 0.0
        %1997 = vmatpush1.xpose.msra.mxu0 0.0
        %1998 = vmatprep.subr.mxu0 0.0
        %1999 = vmatpush1.xpose.msra.mxu0 0.0
        %2000 = vmatprep.subr.mxu0 0.0
        %2001 = vmatpush1.xpose.msra.mxu0 0.0
        %2002 = vmatprep.subr.mxu0 0.0
        %2003 = vmatpush1.xpose.msra.mxu0 0.0
        %2004 = vmatprep.subr.mxu0 0.0
        %2005 = vmatpush1.xpose.msra.mxu0 0.0
        %2006 = vmatprep.subr.mxu0 0.0
        %2007 = vmatpush1.xpose.msra.mxu0 0.0
        %2008 = vmatprep.subr.mxu0 0.0
        %2009 = vmatpush1.xpose.msra.mxu0 0.0
        %2010 = vmatprep.subr.mxu0 0.0
        %2011 = vmatpush1.xpose.msra.mxu0 0.0
        %2012 = vmatprep.subr.mxu0 0.0
        %2013 = vmatpush1.xpose.msra.mxu0 %v1980
        %2014 = vmatprep.subr.mxu0 0.0
        %2015 = vmatpush2.xpose.msra.mxu0 0.0
        %2016 = vmatprep.subr.mxu0 0.0
        %2017 = vmatpush2.xpose.msra.mxu0 0.0
        %2018 = vmatprep.subr.mxu0 0.0
        %2019 = vmatpush2.xpose.msra.mxu0 0.0
        %2020 = vmatprep.subr.mxu0 0.0
        %2021 = vmatpush2.xpose.msra.mxu0 0.0
        %2022 = vmatprep.subr.mxu0 0.0
        %2023 = vmatpush2.xpose.msra.mxu0 0.0
        %2024 = vmatprep.subr.mxu0 0.0
        %2025 = vmatpush2.xpose.msra.mxu0 0.0
        %2026 = vmatprep.subr.mxu0 0.0
        %2027 = vmatpush2.xpose.msra.mxu0 0.0
        %2028 = vmatprep.subr.mxu0 0.0
        %2029 = vmatpush2.xpose.msra.mxu0 0.0
        %2030 = vmatprep.subr.mxu0 0.0
        %2031 = vmatpush2.xpose.msra.mxu0 0.0
        %2032 = vmatprep.subr.mxu0 0.0
        %2033 = vmatpush2.xpose.msra.mxu0 0.0
        %2034 = vmatprep.subr.mxu0 0.0
        %2035 = vmatpush2.xpose.msra.mxu0 0.0
        %2036 = vmatprep.subr.mxu0 0.0
        %2037 = vmatpush2.xpose.msra.mxu0 0.0
        %2038 = vmatprep.subr.mxu0 0.0
        %2039 = vmatpush2.xpose.msra.mxu0 0.0
        %2040 = vmatprep.subr.mxu0 0.0
        %2041 = vmatpush2.xpose.msra.mxu0 0.0
        %2042 = vmatprep.subr.mxu0 0.0
        %2043 = vmatpush2.xpose.msra.mxu0 0.0
        %2044 = vmatprep.subr.mxu0 0.0
        %2045 = vmatpush2.xpose.msra.mxu0 0.0
        %2046 = vmatprep.mubr.f32.mxu0 0.0
        %2047 = vmatmul.mubr.f32.gmra.mxu0 %v1978
        %v2048 = vpop.f32.mrf.mxu0
        %v2049 = vadd.f32 0.0, %v2048
        %v2050 = vpop.f32.mrf.mxu0
        %2051 = vdwg.mxu0
        %v2052 = vsel %vm1021, %v2049, -inf
        %2053 = vmax.xlane.f32.xlu0 %v2052
        %v2054 = vpop.xlane.xlu0 %2053
        %v2055 = vsub.f32 %v2049, %v2054
        %v2056 = vmul.f32 %v2055, 1.442695
        %v2057 = vpow.pop %v2056
        %v2058 = vsel %vm1021, %v2057, 0.0
        %2059 = vadd.xlane.f32.xlu0 %v2058
        %v2060 = vpop.xlane.xlu0 %2059
        %v2061 = vrcp.pop %v2060
        %v2062 = vmul.f32 %v2057, %v2061
        %s2063 = scalar_lea.vmem %s686, 48 [#allocation18]
        %2064 = vst.msk [vmem:[%s2063] sm:$0xff] %vm1021, %v2062
        %2065 = vrot.lane.b32.xlu0 %v941, 104
        %v2066 = vpop.permute.xlu0 %2065
        %v2069 = vsel %vm1021, %v2062, 0
        %2071 = vmatprep.subr.mxu0 0.0
        %2072 = vmatpush1.msra.mxu0 0.0
        %2073 = vmatprep.subr.mxu0 0.0
        %2074 = vmatpush1.msra.mxu0 0.0
        %2075 = vmatprep.subr.mxu0 0.0
        %2076 = vmatpush1.msra.mxu0 0.0
        %2077 = vmatprep.subr.mxu0 0.0
        %2078 = vmatpush1.msra.mxu0 0.0
        %2079 = vmatprep.subr.mxu0 0.0
        %2080 = vmatpush1.msra.mxu0 0.0
        %2081 = vmatprep.subr.mxu0 0.0
        %2082 = vmatpush1.msra.mxu0 0.0
        %2083 = vmatprep.subr.mxu0 0.0
        %2084 = vmatpush1.msra.mxu0 0.0
        %2085 = vmatprep.subr.mxu0 0.0
        %2086 = vmatpush1.msra.mxu0 0.0
        %2087 = vmatprep.subr.mxu0 0.0
        %2088 = vmatpush1.msra.mxu0 0.0
        %2089 = vmatprep.subr.mxu0 0.0
        %2090 = vmatpush1.msra.mxu0 0.0
        %2091 = vmatprep.subr.mxu0 0.0
        %2092 = vmatpush1.msra.mxu0 0.0
        %2093 = vmatprep.subr.mxu0 0.0
        %2094 = vmatpush1.msra.mxu0 0.0
        %2095 = vmatprep.subr.mxu0 0.0
        %2096 = vmatpush1.msra.mxu0 0.0
        %2097 = vmatprep.subr.mxu0 0.0
        %2098 = vmatpush1.msra.mxu0 0.0
        %2099 = vmatprep.subr.mxu0 0.0
        %2100 = vmatpush1.msra.mxu0 0.0
        %2101 = vmatprep.subr.mxu0 0.0
        %2102 = vmatpush1.msra.mxu0 %v2066
        %2103 = vmatprep.subr.mxu0 0.0
        %2104 = vmatpush2.msra.mxu0 0.0
        %2105 = vmatprep.subr.mxu0 0.0
        %2106 = vmatpush2.msra.mxu0 0.0
        %2107 = vmatprep.subr.mxu0 0.0
        %2108 = vmatpush2.msra.mxu0 0.0
        %2109 = vmatprep.subr.mxu0 0.0
        %2110 = vmatpush2.msra.mxu0 0.0
        %2111 = vmatprep.subr.mxu0 0.0
        %2112 = vmatpush2.msra.mxu0 0.0
        %2113 = vmatprep.subr.mxu0 0.0
        %2114 = vmatpush2.msra.mxu0 0.0
        %2115 = vmatprep.subr.mxu0 0.0
        %2116 = vmatpush2.msra.mxu0 0.0
        %2117 = vmatprep.subr.mxu0 0.0
        %2118 = vmatpush2.msra.mxu0 0.0
        %2119 = vmatprep.subr.mxu0 0.0
        %2120 = vmatpush2.msra.mxu0 0.0
        %2121 = vmatprep.subr.mxu0 0.0
        %2122 = vmatpush2.msra.mxu0 0.0
        %2123 = vmatprep.subr.mxu0 0.0
        %2124 = vmatpush2.msra.mxu0 0.0
        %2125 = vmatprep.subr.mxu0 0.0
        %2126 = vmatpush2.msra.mxu0 0.0
        %2127 = vmatprep.subr.mxu0 0.0
        %2128 = vmatpush2.msra.mxu0 0.0
        %2129 = vmatprep.subr.mxu0 0.0
        %2130 = vmatpush2.msra.mxu0 0.0
        %2131 = vmatprep.subr.mxu0 0.0
        %2132 = vmatpush2.msra.mxu0 0.0
        %2133 = vmatprep.subr.mxu0 0.0
        %2134 = vmatpush2.msra.mxu0 0.0
        %2135 = vmatprep.mubr.f32.mxu0 0.0
        %2136 = vmatmul.mubr.f32.gmra.mxu0 %v2069
        %v2137 = vpop.f32.mrf.mxu0
        %v2138 = vadd.f32 0.0, %v2137
        %v2139 = vpop.f32.mrf.mxu0
        %2140 = vdwg.mxu0
        %2142 = vrot.lane.b32.xlu0 %v2138, 24
        %v2143 = vpop.permute.xlu0 %2142
        %vm2145 = vcmask 228544
        %2146 = vst.msk [vmem:[#allocation2] sm:$0xff] %vm2145, %v2143
        %2147 = vrot.lane.b32.xlu0 %v775, 100
        %v2148 = vpop.permute.xlu0 %2147
        %2149 = vrot.lane.b32.xlu0 %v857, 100
        %v2150 = vpop.permute.xlu0 %2149
        %v2151 = vsel %vm944, %v2148, 0
        %v2153 = vsel %vm944, %v2150, 0
        %2155 = vmatprep.subr.mxu0 0.0
        %2156 = vmatpush1.xpose.msra.mxu0 0.0
        %2157 = vmatprep.subr.mxu0 0.0
        %2158 = vmatpush1.xpose.msra.mxu0 0.0
        %2159 = vmatprep.subr.mxu0 0.0
        %2160 = vmatpush1.xpose.msra.mxu0 0.0
        %2161 = vmatprep.subr.mxu0 0.0
        %2162 = vmatpush1.xpose.msra.mxu0 0.0
        %2163 = vmatprep.subr.mxu0 0.0
        %2164 = vmatpush1.xpose.msra.mxu0 0.0
        %2165 = vmatprep.subr.mxu0 0.0
        %2166 = vmatpush1.xpose.msra.mxu0 0.0
        %2167 = vmatprep.subr.mxu0 0.0
        %2168 = vmatpush1.xpose.msra.mxu0 0.0
        %2169 = vmatprep.subr.mxu0 0.0
        %2170 = vmatpush1.xpose.msra.mxu0 0.0
        %2171 = vmatprep.subr.mxu0 0.0
        %2172 = vmatpush1.xpose.msra.mxu0 0.0
        %2173 = vmatprep.subr.mxu0 0.0
        %2174 = vmatpush1.xpose.msra.mxu0 0.0
        %2175 = vmatprep.subr.mxu0 0.0
        %2176 = vmatpush1.xpose.msra.mxu0 0.0
        %2177 = vmatprep.subr.mxu0 0.0
        %2178 = vmatpush1.xpose.msra.mxu0 0.0
        %2179 = vmatprep.subr.mxu0 0.0
        %2180 = vmatpush1.xpose.msra.mxu0 0.0
        %2181 = vmatprep.subr.mxu0 0.0
        %2182 = vmatpush1.xpose.msra.mxu0 0.0
        %2183 = vmatprep.subr.mxu0 0.0
        %2184 = vmatpush1.xpose.msra.mxu0 0.0
        %2185 = vmatprep.subr.mxu0 0.0
        %2186 = vmatpush1.xpose.msra.mxu0 %v2153
        %2187 = vmatprep.subr.mxu0 0.0
        %2188 = vmatpush2.xpose.msra.mxu0 0.0
        %2189 = vmatprep.subr.mxu0 0.0
        %2190 = vmatpush2.xpose.msra.mxu0 0.0
        %2191 = vmatprep.subr.mxu0 0.0
        %2192 = vmatpush2.xpose.msra.mxu0 0.0
        %2193 = vmatprep.subr.mxu0 0.0
        %2194 = vmatpush2.xpose.msra.mxu0 0.0
        %2195 = vmatprep.subr.mxu0 0.0
        %2196 = vmatpush2.xpose.msra.mxu0 0.0
        %2197 = vmatprep.subr.mxu0 0.0
        %2198 = vmatpush2.xpose.msra.mxu0 0.0
        %2199 = vmatprep.subr.mxu0 0.0
        %2200 = vmatpush2.xpose.msra.mxu0 0.0
        %2201 = vmatprep.subr.mxu0 0.0
        %2202 = vmatpush2.xpose.msra.mxu0 0.0
        %2203 = vmatprep.subr.mxu0 0.0
        %2204 = vmatpush2.xpose.msra.mxu0 0.0
        %2205 = vmatprep.subr.mxu0 0.0
        %2206 = vmatpush2.xpose.msra.mxu0 0.0
        %2207 = vmatprep.subr.mxu0 0.0
        %2208 = vmatpush2.xpose.msra.mxu0 0.0
        %2209 = vmatprep.subr.mxu0 0.0
        %2210 = vmatpush2.xpose.msra.mxu0 0.0
        %2211 = vmatprep.subr.mxu0 0.0
        %2212 = vmatpush2.xpose.msra.mxu0 0.0
        %2213 = vmatprep.subr.mxu0 0.0
        %2214 = vmatpush2.xpose.msra.mxu0 0.0
        %2215 = vmatprep.subr.mxu0 0.0
        %2216 = vmatpush2.xpose.msra.mxu0 0.0
        %2217 = vmatprep.subr.mxu0 0.0
        %2218 = vmatpush2.xpose.msra.mxu0 0.0
        %2219 = vmatprep.mubr.f32.mxu0 0.0
        %2220 = vmatmul.mubr.f32.gmra.mxu0 %v2151
        %v2221 = vpop.f32.mrf.mxu0
        %v2222 = vadd.f32 0.0, %v2221
        %v2223 = vpop.f32.mrf.mxu0
        %2224 = vdwg.mxu0
        %v2225 = vsel %vm1021, %v2222, -inf
        %2226 = vmax.xlane.f32.xlu0 %v2225
        %v2227 = vpop.xlane.xlu0 %2226
        %v2228 = vsub.f32 %v2222, %v2227
        %v2229 = vmul.f32 %v2228, 1.442695
        %v2230 = vpow.pop %v2229
        %v2231 = vsel %vm1021, %v2230, 0.0
        %2232 = vadd.xlane.f32.xlu0 %v2231
        %v2233 = vpop.xlane.xlu0 %2232
        %v2234 = vrcp.pop %v2233
        %v2235 = vmul.f32 %v2230, %v2234
        %s2236 = scalar_lea.vmem %s686, 56 [#allocation18]
        %2237 = vst.msk [vmem:[%s2236] sm:$0xff] %vm1021, %v2235
        %2238 = vrot.lane.b32.xlu0 %v941, 100
        %v2239 = vpop.permute.xlu0 %2238
        %v2242 = vsel %vm1021, %v2235, 0
        %2244 = vmatprep.subr.mxu0 0.0
        %2245 = vmatpush1.msra.mxu0 0.0
        %2246 = vmatprep.subr.mxu0 0.0
        %2247 = vmatpush1.msra.mxu0 0.0
        %2248 = vmatprep.subr.mxu0 0.0
        %2249 = vmatpush1.msra.mxu0 0.0
        %2250 = vmatprep.subr.mxu0 0.0
        %2251 = vmatpush1.msra.mxu0 0.0
        %2252 = vmatprep.subr.mxu0 0.0
        %2253 = vmatpush1.msra.mxu0 0.0
        %2254 = vmatprep.subr.mxu0 0.0
        %2255 = vmatpush1.msra.mxu0 0.0
        %2256 = vmatprep.subr.mxu0 0.0
        %2257 = vmatpush1.msra.mxu0 0.0
        %2258 = vmatprep.subr.mxu0 0.0
        %2259 = vmatpush1.msra.mxu0 0.0
        %2260 = vmatprep.subr.mxu0 0.0
        %2261 = vmatpush1.msra.mxu0 0.0
        %2262 = vmatprep.subr.mxu0 0.0
        %2263 = vmatpush1.msra.mxu0 0.0
        %2264 = vmatprep.subr.mxu0 0.0
        %2265 = vmatpush1.msra.mxu0 0.0
        %2266 = vmatprep.subr.mxu0 0.0
        %2267 = vmatpush1.msra.mxu0 0.0
        %2268 = vmatprep.subr.mxu0 0.0
        %2269 = vmatpush1.msra.mxu0 0.0
        %2270 = vmatprep.subr.mxu0 0.0
        %2271 = vmatpush1.msra.mxu0 0.0
        %2272 = vmatprep.subr.mxu0 0.0
        %2273 = vmatpush1.msra.mxu0 0.0
        %2274 = vmatprep.subr.mxu0 0.0
        %2275 = vmatpush1.msra.mxu0 %v2239
        %2276 = vmatprep.subr.mxu0 0.0
        %2277 = vmatpush2.msra.mxu0 0.0
        %2278 = vmatprep.subr.mxu0 0.0
        %2279 = vmatpush2.msra.mxu0 0.0
        %2280 = vmatprep.subr.mxu0 0.0
        %2281 = vmatpush2.msra.mxu0 0.0
        %2282 = vmatprep.subr.mxu0 0.0
        %2283 = vmatpush2.msra.mxu0 0.0
        %2284 = vmatprep.subr.mxu0 0.0
        %2285 = vmatpush2.msra.mxu0 0.0
        %2286 = vmatprep.subr.mxu0 0.0
        %2287 = vmatpush2.msra.mxu0 0.0
        %2288 = vmatprep.subr.mxu0 0.0
        %2289 = vmatpush2.msra.mxu0 0.0
        %2290 = vmatprep.subr.mxu0 0.0
        %2291 = vmatpush2.msra.mxu0 0.0
        %2292 = vmatprep.subr.mxu0 0.0
        %2293 = vmatpush2.msra.mxu0 0.0
        %2294 = vmatprep.subr.mxu0 0.0
        %2295 = vmatpush2.msra.mxu0 0.0
        %2296 = vmatprep.subr.mxu0 0.0
        %2297 = vmatpush2.msra.mxu0 0.0
        %2298 = vmatprep.subr.mxu0 0.0
        %2299 = vmatpush2.msra.mxu0 0.0
        %2300 = vmatprep.subr.mxu0 0.0
        %2301 = vmatpush2.msra.mxu0 0.0
        %2302 = vmatprep.subr.mxu0 0.0
        %2303 = vmatpush2.msra.mxu0 0.0
        %2304 = vmatprep.subr.mxu0 0.0
        %2305 = vmatpush2.msra.mxu0 0.0
        %2306 = vmatprep.subr.mxu0 0.0
        %2307 = vmatpush2.msra.mxu0 0.0
        %2308 = vmatprep.mubr.f32.mxu0 0.0
        %2309 = vmatmul.mubr.f32.gmra.mxu0 %v2242
        %v2310 = vpop.f32.mrf.mxu0
        %v2311 = vadd.f32 0.0, %v2310
        %v2312 = vpop.f32.mrf.mxu0
        %2313 = vdwg.mxu0
        %2315 = vrot.lane.b32.xlu0 %v2311, 28
        %v2316 = vpop.permute.xlu0 %2315
        %vm2318 = vcmask 261344
        %2319 = vst.msk [vmem:[#allocation2] sm:$0xff] %vm2318, %v2316
        %v2320 = vld [vmem:[#allocation2] sm:$0xff]
        %v2321 = vld [vmem:[#allocation15] sm:$0xff]
        %v2322 = vld [vmem:[#allocation15 + $0x8] sm:$0xff]
        %v2323 = vld [vmem:[#allocation15 + $0x10] sm:$0xff]
        %v2324 = vld [vmem:[#allocation15 + $0x18] sm:$0xff]
        %v2325 = vld [vmem:[%s11] sm:$0x1]
        %v2327 = vlaneseq
        %v2328 = vshrl.u32 %v2327, 7
        %v2329 = vsub.s32 0, %v2328
        %v2330 = vrot.slane %v2325, %v2329
        %v2333 = vsel %vm701, %v2320, 0
        %2335 = vmatprep.subr.mxu0 0.0
        %2336 = vmatpush1.msra.mxu0 0.0
        %2337 = vmatprep.subr.mxu0 0.0
        %2338 = vmatpush1.msra.mxu0 0.0
        %2339 = vmatprep.subr.mxu0 0.0
        %2340 = vmatpush1.msra.mxu0 0.0
        %2341 = vmatprep.subr.mxu0 0.0
        %2342 = vmatpush1.msra.mxu0 0.0
        %2343 = vmatprep.subr.mxu0 0.0
        %2344 = vmatpush1.msra.mxu0 0.0
        %2345 = vmatprep.subr.mxu0 0.0
        %2346 = vmatpush1.msra.mxu0 0.0
        %2347 = vmatprep.subr.mxu0 0.0
        %2348 = vmatpush1.msra.mxu0 0.0
        %2349 = vmatprep.subr.mxu0 0.0
        %2350 = vmatpush1.msra.mxu0 0.0
        %2351 = vmatprep.subr.mxu0 0.0
        %2352 = vmatpush1.msra.mxu0 0.0
        %2353 = vmatprep.subr.mxu0 0.0
        %2354 = vmatpush1.msra.mxu0 0.0
        %2355 = vmatprep.subr.mxu0 0.0
        %2356 = vmatpush1.msra.mxu0 0.0
        %2357 = vmatprep.subr.mxu0 0.0
        %2358 = vmatpush1.msra.mxu0 0.0
        %2359 = vmatprep.subr.mxu0 0.0
        %2360 = vmatpush1.msra.mxu0 %v2324
        %2361 = vmatprep.subr.mxu0 0.0
        %2362 = vmatpush1.msra.mxu0 %v2323
        %2363 = vmatprep.subr.mxu0 0.0
        %2364 = vmatpush1.msra.mxu0 %v2322
        %2365 = vmatprep.subr.mxu0 0.0
        %2366 = vmatpush1.msra.mxu0 %v2321
        %2367 = vmatprep.subr.mxu0 0.0
        %2368 = vmatpush2.msra.mxu0 0.0
        %2369 = vmatprep.subr.mxu0 0.0
        %2370 = vmatpush2.msra.mxu0 0.0
        %2371 = vmatprep.subr.mxu0 0.0
        %2372 = vmatpush2.msra.mxu0 0.0
        %2373 = vmatprep.subr.mxu0 0.0
        %2374 = vmatpush2.msra.mxu0 0.0
        %2375 = vmatprep.subr.mxu0 0.0
        %2376 = vmatpush2.msra.mxu0 0.0
        %2377 = vmatprep.subr.mxu0 0.0
        %2378 = vmatpush2.msra.mxu0 0.0
        %2379 = vmatprep.subr.mxu0 0.0
        %2380 = vmatpush2.msra.mxu0 0.0
        %2381 = vmatprep.subr.mxu0 0.0
        %2382 = vmatpush2.msra.mxu0 0.0
        %2383 = vmatprep.subr.mxu0 0.0
        %2384 = vmatpush2.msra.mxu0 0.0
        %2385 = vmatprep.subr.mxu0 0.0
        %2386 = vmatpush2.msra.mxu0 0.0
        %2387 = vmatprep.subr.mxu0 0.0
        %2388 = vmatpush2.msra.mxu0 0.0
        %2389 = vmatprep.subr.mxu0 0.0
        %2390 = vmatpush2.msra.mxu0 0.0
        %2391 = vmatprep.subr.mxu0 0.0
        %2392 = vmatpush2.msra.mxu0 0.0
        %2393 = vmatprep.subr.mxu0 0.0
        %2394 = vmatpush2.msra.mxu0 0.0
        %2395 = vmatprep.subr.mxu0 0.0
        %2396 = vmatpush2.msra.mxu0 0.0
        %2397 = vmatprep.subr.mxu0 0.0
        %2398 = vmatpush2.msra.mxu0 0.0
        %2399 = vmatprep.mubr.f32.mxu0 0.0
        %2400 = vmatmul.mubr.f32.gmra.mxu0 %v2333
        %v2401 = vpop.f32.mrf.mxu0
        %v2402 = vadd.f32 %v2330, %v2401
        %v2403 = vpop.f32.mrf.mxu0
        %2404 = vdwg.mxu0
        %v2405 = vld [vmem:[%s604] sm:$0xff]
        %v2406 = vadd.f32 %v2402, %v2405
        %v2407 = vsel %vm701, %v2406, 0.0
        %2408 = vadd.xlane.f32.xlu0 %v2407
        %v2409 = vpop.xlane.xlu0 %2408
        %v2410 = vrcp.pop 32.0
        %v2411 = vmul.f32 %v2409, %v2410
        %v2412 = vsub.f32 %v2406, %v2411
        %v2413 = vmul.f32 %v2412, %v2412
        %v2414 = vsel %vm701, %v2413, 0.0
        %2415 = vadd.xlane.f32.xlu0 %v2414
        %v2416 = vpop.xlane.xlu0 %2415
        %v2417 = vmul.f32 %v2416, %v2410
        %v2418 = vadd.f32 %v2417, 1e-12
        %v2419 = vrsqrt.pop %v2418
        %v2420 = vmul.f32 %v2412, %v2419
        %v2421 = vld [vmem:[%s12] sm:$0x1]
        %v2423 = vlaneseq
        %v2424 = vshrl.u32 %v2423, 7
        %v2425 = vsub.s32 0, %v2424
        %v2426 = vrot.slane %v2421, %v2425
        %v2428 = vmul.f32 %v2420, %v2426
        %v2429 = vld [vmem:[%s13] sm:$0x1]
        %v2431 = vlaneseq
        %v2432 = vshrl.u32 %v2431, 7
        %v2433 = vsub.s32 0, %v2432
        %v2434 = vrot.slane %v2429, %v2433
        %v2436 = vadd.f32 %v2428, %v2434
        %2437 = vst.msk [vmem:[%s679] sm:$0xff] %vm701, %v2436
        %s2438 = sand.u32 %s366, 1
        %s2439 = scalar_lea.sflag [#allocation5], %s2438
        %s2440 = sand.u32 %s366, 1
        %s2441 = smul.addr %s2440, 8
        %s2442 = scalar_lea.vmem [#allocation17], %s2441
        %s2443 = sand.u32 %s392, 1
        %s2444 = scalar_lea.sflag [#allocation19], %s2443
        %s2445 = sand.u32 %s392, 1
        %s2446 = smul.addr %s2445, 64
        %s2447 = scalar_lea.vmem [#allocation18], %s2446
        // Predicated region
        $region109: #{_lambda_.1} parent=75 // pred_check
          %p2448 = pneg %p376
        $region110: #{_lambda_.1} parent=75 // pred_check_branch
          %2450 = sbr.rel (%p2448) target = $region112
        $region111: #{_lambda_.1} parent=75 // pred_region
          %s2452 = ssub.s32 128, 128
          %2453 = vsyncadd %s2439, %s2452
          %s2454 = smul.addr %s44, 128
          %s2455 = scalar_lea.hbm %s14, %s2454
          %s2457 = sshll.u32 %s2442, 4
          %s2458 = int_to_ptr.vmem [resolvable:$true] %s2457
          %2460 = dma.vmem_to_hbm [thread:$0]  %s2458, 128, %s2455, %s2439
        $region112: #{_lambda_.1} parent=75 // pred_fallthru
          _
        // Predicated region
        $region113: #{_lambda_.1} parent=75 // pred_check
          %p2461 = pneg %p402
        $region114: #{_lambda_.1} parent=75 // pred_check_branch
          %2463 = sbr.rel (%p2461) target = $region116
        $region115: #{_lambda_.1} parent=75 // pred_region
          %s2465 = ssub.s32 1024, 1024
          %2466 = vsyncadd %s2444, %s2465
          %s2467 = smul.addr %s44, 8
          %s2468 = smul.addr %s2467, 128
          %s2469 = scalar_lea.hbm %s15, %s2468
          %s2470 = sshll.u32 %s2447, 4
          %s2471 = int_to_ptr.vmem [resolvable:$true] %s2470
          %2476 = dma.vmem_to_hbm [thread:$0]  %s2471, 1024, %s2469, %s2444, 128, 128, 8
        $region116: #{_lambda_.1} parent=75 // pred_fallthru
          _
      $region76: #{_lambda_.1} parent=5 // pred_fallthru
        _
      %p2477 = scmp.le.s32.totalorder 2, %s39
      // Predicated region
      $region117: #{_lambda_.1} parent=5 // pred_check
        %p2478 = pneg %p2477
      $region118: #{_lambda_.1} parent=5 // pred_check_branch
        %2480 = sbr.rel (%p2478) target = $region120
      $region119: #{_lambda_.1} parent=5 // pred_region
        %s2481 = ssub.s32 %s39, 2
        // Predicated region
        $region121: #{_lambda_.1} parent=119 // pred_check
          %p2482 = pneg %p382
        $region122: #{_lambda_.1} parent=119 // pred_check_branch
          %2484 = sbr.rel (%p2482) target = $region124
        $region123: #{_lambda_.1} parent=119 // pred_region
          %s2485 = sand.u32 %s367, 1
          %s2486 = scalar_lea.sflag [#allocation5], %s2485
          %s2487 = sand.u32 %s367, 1
          %s2488 = smul.addr %s2487, 8
          %s2489 = scalar_lea.vmem [#allocation17], %s2488
          %2490 = dma.done %s2486, 128
        $region124: #{_lambda_.1} parent=119 // pred_fallthru
          _
        // Predicated region
        $region125: #{_lambda_.1} parent=119 // pred_check
          %p2491 = pneg %p408
        $region126: #{_lambda_.1} parent=119 // pred_check_branch
          %2493 = sbr.rel (%p2491) target = $region128
        $region127: #{_lambda_.1} parent=119 // pred_region
          %s2494 = sand.u32 %s393, 1
          %s2495 = scalar_lea.sflag [#allocation19], %s2494
          %s2496 = sand.u32 %s393, 1
          %s2497 = smul.addr %s2496, 64
          %s2498 = scalar_lea.vmem [#allocation18], %s2497
          %2499 = dma.done %s2495, 1024
        $region128: #{_lambda_.1} parent=119 // pred_fallthru
          _
      $region120: #{_lambda_.1} parent=5 // pred_fallthru
        _
    $region6: #{_lambda_.1} parent=1 // loop_footer
      %s43 = sadd.s32 1, %s39
    $region7: #{_lambda_.1} parent=1 // loop_footer_branch
      %38 = sbr.rel target = $region3
    $region8: #{_lambda_.1} parent=1 // loop_exit
      _
    %2500 = vsyncpa [#allocation4], 1
    %s2501 = scalar_lea.sflag [#allocation4], 1
    %2502 = vsyncpa %s2501, 1
    %2503 = vsyncpa [#allocation7], 1
    %s2504 = scalar_lea.sflag [#allocation7], 1
    %2505 = vsyncpa %s2504, 1
    %2506 = vsyncpa [#allocation10], 1
    %s2507 = scalar_lea.sflag [#allocation10], 1
    %2508 = vsyncpa %s2507, 1
    %2509 = vsyncpa [#allocation13], 1
    %2510 = vsyncpa [#allocation16], 1
    %2511 = vsyncpa [#allocation5], 1
    %s2512 = scalar_lea.sflag [#allocation5], 1
    %2513 = vsyncpa %s2512, 1
    %2514 = vsyncpa [#allocation19], 1
    %s2515 = scalar_lea.sflag [#allocation19], 1
    %2516 = vsyncpa %s2515, 1

</llo_original>
